<compile_context>
chip_gen: v7x
topology: tpu7x:2x2x1
jax: 0.10.0
libtpu: 0.0.40
codegen_flags: <defaults>
</compile_context>

<pallas_src>
import random
import numpy as np
import jax
import jax.numpy as jnp
from jax.experimental import pallas as pl
from jax.experimental.pallas import tpu as pltpu

_H = 14                      # spatial size
_HW = _H * _H                # 196 rows (kk*14 + jj) / (n*14 + oh)
_CIN_HALF = 64               # channel half width
_LANE = 128                  # per-(kv,kh) K block width (64 data + 64 zeros)
_KBLOCKS = 9                 # (kv, kh) pairs
_KDIM = _KBLOCKS * _LANE     # 1152 (padded contraction dim)
_COUT = 256


def _make_kernel(shift):
    s = int(shift)
    assert s in (1, -1)

    def kernel(pos_ref, x_ref, w_ref, o_ref, a_ref):
        pos = pos_ref[...]                     # (196,128) int32: row % 14
        m_first = pos == 0                     # within-block index == 0
        m_last = pos == (_H - 1)               # within-block index == 13

        x_low = x_ref[0]                       # (196,128) f32, lanes 64.. are 0
        x_high = x_ref[1]                      # (196,128) f32, lanes 64.. are 0

        def shift_rows(v, d):
            # out[r] = v[r + d], zero fill outside [0, 196)
            if d == 0:
                return v
            z = jnp.zeros((abs(d), _LANE), jnp.float32)
            if d > 0:
                return jnp.concatenate([v[d:, :], z], axis=0)
            return jnp.concatenate([z, v[: _HW + d, :]], axis=0)

        def block_roll(v, r):
            # circular roll by r within each 14-row block:
            #   out[b*14 + j] = v[b*14 + (j - r) % 14],  r in {+1, -1}
            if r == 1:
                return jnp.where(m_first, shift_rows(v, _H - 1), shift_rows(v, -1))
            return jnp.where(m_last, shift_rows(v, -(_H - 1)), shift_rows(v, 1))

        def unfold_rows(v, kh):
            # out[b*14 + oh] = v[b*14 + oh + kh - 1] if 0 <= oh+kh-1 < 14 else 0
            d = kh - 1
            if d == 0:
                return v
            shifted = shift_rows(v, d)
            if d < 0:
                return jnp.where(m_first, 0.0, shifted)
            return jnp.where(m_last, 0.0, shifted)

        # --- torch.roll(t, shift, dim=2): roll along W of the NHWC view -------
        y_low = block_roll(x_low, s)
        y_high = block_roll(x_high, s)

        for kh in range(3):
            # --- first F.unfold (3,1)/pad(1,0) over the rolled axis -----------
            u_low = unfold_rows(y_low, kh)
            u_high = unfold_rows(y_high, kh)
            # --- reshape -> roll(shift) over merged (oh,2) -> pair-sum --------
            if s == 1:
                b = u_low + block_roll(u_high, 1)
            else:
                b = u_high + block_roll(u_low, -1)
            # --- second F.unfold (3,1)/pad(1,0) over the other spatial axis ---
            for kv in range(3):
                col = (kv * 3 + kh) * _LANE            # lane-tile aligned
                a_ref[:, col:col + _LANE] = shift_rows(b, (kv - 1) * _H)

        # --- einsum 'mjnlok,ijlk->mino' as a single MXU matmul ----------------
        #   out[i, n*14+oh] = sum_K w_pad[i, K] * a[n*14+oh, K]
        o_ref[...] = jax.lax.dot_general(
            w_ref[...], a_ref[...],
            dimension_numbers=(((1,), (1,)), ((), ())),
            preferred_element_type=jnp.float32)

    return kernel


def prepare_weight(w):
    # (256,3,3,64) -> (256,1152): each (kv,kh) slice zero-padded 64->128 lanes
    # so every in-kernel column write is lane-tile aligned. Weights never
    # change, so this can (and should) be hoisted out of the per-call path.
    return jnp.pad(
        w, ((0, 0), (0, 0), (0, 0), (0, _LANE - _CIN_HALF))).reshape(_COUT, _KDIM)


def _fused_forward(x, w_prepped, shift):
    # x: (1,128,14,14) f32 NCHW; w_prepped: (256,1152); shift: static +/-1.
    # Split channels into low/high halves, NCHW -> (half, kk*14+jj, c), pad to
    # 128 lanes (the zero upper half pairs with the zero weight columns).
    xh = jnp.transpose(x.reshape(2, _CIN_HALF, _H, _H), (0, 2, 3, 1))
    xh = xh.reshape(2, _HW, _CIN_HALF)
    xr = jnp.pad(xh, ((0, 0), (0, 0), (0, _LANE - _CIN_HALF)))      # (2,196,128)
    pos = jnp.broadcast_to(
        (jnp.arange(_HW, dtype=jnp.int32) % _H)[:, None], (_HW, _LANE))

    out = pl.pallas_call(
        _make_kernel(shift),
        out_shape=jax.ShapeDtypeStruct((_COUT, _HW), jnp.float32),
        in_specs=[pl.BlockSpec(memory_space=pltpu.MemorySpace.VMEM)] * 3,
        out_specs=pl.BlockSpec(memory_space=pltpu.MemorySpace.VMEM),
        scratch_shapes=[pltpu.VMEM((_HW, _KDIM), jnp.float32)],
    )(pos, xr, w_prepped)                                           # (256,196)

    # (256,196) row-major == (1,256,14,14) row-major -> free reshape to NCHW.
    return out.reshape(1, _COUT, _H, _H)


def kernel_generated_3_forward(x, w, shift):
    # Module-equivalent entry point: x (1,128,14,14), w (256,3,3,64), shift +/-1.
    return _fused_forward(x, prepare_weight(w), shift)


def _reference(x, w, shift):
    # Pure-jnp mirror of the torch module, for correctness checking.
    t = jnp.einsum('ilkj->ikjl', x)
    t = jnp.roll(t, shift, axis=2).reshape(1, 14, 14, 128)
    tp = jnp.pad(t, ((0, 0), (0, 0), (1, 1), (0, 0)))
    t = jnp.stack([tp[:, :, kh:kh + 14, :] for kh in range(3)], axis=2)
    t = t.reshape(1, 14, 3, 28, 64)
    t = jnp.roll(t, shift, axis=3).reshape(1, 14, 3, 14, 2, 64).sum(axis=4)
    t3 = t.reshape(1, 14, 3 * 14 * 64)
    t3p = jnp.pad(t3, ((0, 0), (1, 1), (0, 0)))
    t3u = jnp.stack([t3p[:, kv:kv + 14, :] for kv in range(3)], axis=1)
    t3u = t3u.reshape(1, 3, 14, 3, 14, 64)
    return jnp.einsum('mjnlok,ijlk->mino', t3u, w,
                      precision=jax.lax.Precision.HIGHEST)


if __name__ == "__main__":
    # Deterministic stand-in for the module's `random.random() > 0.5` shift.
    random.seed(0)
    module_shift = int((random.random() > 0.5) * 2 - 1)

    key = jax.random.PRNGKey(0)
    kx, kw = jax.random.split(key)
    # Shapes are fixed by the module's hard-coded reshapes: x must be (1,128,14,14).
    x = jax.random.normal(kx, (1, 128, 14, 14), dtype=jnp.float32)
    w = jax.random.normal(kw, (256, 3, 3, 64), dtype=jnp.float32)   # weights[0]

    fwd = jax.jit(kernel_generated_3_forward, static_argnums=2)

    # Check both possible roll directions (the module picks one at random).
    for s in (module_shift, -module_shift):
        y = jax.block_until_ready(fwd(x, w, s))
        assert y.shape == (1, 256, 14, 14) and y.dtype == jnp.float32
        y_ref = jax.block_until_ready(_reference(x, w, s))
        assert np.allclose(np.asarray(y), np.asarray(y_ref),
                           rtol=2e-2, atol=2e-2), f"mismatch for shift={s}"

    print("KERNEL_OK")
</pallas_src>

<mosaic_0001>
module attributes {stable_mosaic.version = 11 : i64} {
  func.func @kernel(%arg0: memref<196x128xi32, #tpu.memory_space<vmem>>, %arg1: memref<2x196x128xf32, #tpu.memory_space<vmem>>, %arg2: memref<256x1152xf32, #tpu.memory_space<vmem>>, %arg3: memref<256x196xf32, #tpu.memory_space<vmem>>, %arg4: memref<196x1152xf32, #tpu.memory_space<vmem>>) attributes {dimension_semantics = [], scalar_prefetch = 0 : i64, scratch_operands = 1 : i64, tpu.core_type = #tpu.core_type<tc>} {
    %c0 = arith.constant 0 : index
    %c0_0 = arith.constant 0 : index
    %0 = vector.load %arg0[%c0, %c0_0] : memref<196x128xi32, #tpu.memory_space<vmem>>, vector<196x128xi32>
    %c0_i32 = arith.constant 0 : i32
    %1 = vector.broadcast %c0_i32 : i32 to vector<196x128xi32>
    %2 = arith.cmpi eq, %0, %1 : vector<196x128xi32>
    %c13_i32 = arith.constant 13 : i32
    %3 = vector.broadcast %c13_i32 : i32 to vector<196x128xi32>
    %4 = arith.cmpi eq, %0, %3 : vector<196x128xi32>
    %c0_1 = arith.constant 0 : index
    %c0_2 = arith.constant 0 : index
    %c0_3 = arith.constant 0 : index
    %5 = vector.load %arg1[%c0_1, %c0_2, %c0_3] : memref<2x196x128xf32, #tpu.memory_space<vmem>>, vector<1x196x128xf32>
    %6 = vector.shape_cast %5 : vector<1x196x128xf32> to vector<196x128xf32>
    %c1 = arith.constant 1 : index
    %c0_4 = arith.constant 0 : index
    %c0_5 = arith.constant 0 : index
    %7 = vector.load %arg1[%c1, %c0_4, %c0_5] : memref<2x196x128xf32, #tpu.memory_space<vmem>>, vector<1x196x128xf32>
    %8 = vector.shape_cast %7 : vector<1x196x128xf32> to vector<196x128xf32>
    %cst = arith.constant 0.000000e+00 : f32
    %9 = vector.broadcast %cst : f32 to vector<13x128xf32>
    %10 = vector.extract_strided_slice %6 {offsets = [13, 0], sizes = [183, 128], strides = [1, 1]} : vector<196x128xf32> to vector<183x128xf32>
    %11 = tpu.concatenate %10, %9 in 0 : vector<183x128xf32>, vector<13x128xf32> -> vector<196x128xf32>
    %cst_6 = arith.constant 0.000000e+00 : f32
    %12 = vector.broadcast %cst_6 : f32 to vector<1x128xf32>
    %13 = vector.extract_strided_slice %6 {offsets = [0, 0], sizes = [195, 128], strides = [1, 1]} : vector<196x128xf32> to vector<195x128xf32>
    %14 = tpu.concatenate %12, %13 in 0 : vector<1x128xf32>, vector<195x128xf32> -> vector<196x128xf32>
    %15 = arith.select %2, %11, %14 : vector<196x128xi1>, vector<196x128xf32>
    %cst_7 = arith.constant 0.000000e+00 : f32
    %16 = vector.broadcast %cst_7 : f32 to vector<13x128xf32>
    %17 = vector.extract_strided_slice %8 {offsets = [13, 0], sizes = [183, 128], strides = [1, 1]} : vector<196x128xf32> to vector<183x128xf32>
    %18 = tpu.concatenate %17, %16 in 0 : vector<183x128xf32>, vector<13x128xf32> -> vector<196x128xf32>
    %cst_8 = arith.constant 0.000000e+00 : f32
    %19 = vector.broadcast %cst_8 : f32 to vector<1x128xf32>
    %20 = vector.extract_strided_slice %8 {offsets = [0, 0], sizes = [195, 128], strides = [1, 1]} : vector<196x128xf32> to vector<195x128xf32>
    %21 = tpu.concatenate %19, %20 in 0 : vector<1x128xf32>, vector<195x128xf32> -> vector<196x128xf32>
    %22 = arith.select %2, %18, %21 : vector<196x128xi1>, vector<196x128xf32>
    %cst_9 = arith.constant 0.000000e+00 : f32
    %23 = vector.broadcast %cst_9 : f32 to vector<1x128xf32>
    %24 = vector.extract_strided_slice %15 {offsets = [0, 0], sizes = [195, 128], strides = [1, 1]} : vector<196x128xf32> to vector<195x128xf32>
    %25 = tpu.concatenate %23, %24 in 0 : vector<1x128xf32>, vector<195x128xf32> -> vector<196x128xf32>
    %cst_10 = arith.constant 0.000000e+00 : f32
    %26 = vector.broadcast %cst_10 : f32 to vector<196x128xf32>
    %27 = arith.select %2, %26, %25 : vector<196x128xi1>, vector<196x128xf32>
    %cst_11 = arith.constant 0.000000e+00 : f32
    %28 = vector.broadcast %cst_11 : f32 to vector<1x128xf32>
    %29 = vector.extract_strided_slice %22 {offsets = [0, 0], sizes = [195, 128], strides = [1, 1]} : vector<196x128xf32> to vector<195x128xf32>
    %30 = tpu.concatenate %28, %29 in 0 : vector<1x128xf32>, vector<195x128xf32> -> vector<196x128xf32>
    %cst_12 = arith.constant 0.000000e+00 : f32
    %31 = vector.broadcast %cst_12 : f32 to vector<196x128xf32>
    %32 = arith.select %2, %31, %30 : vector<196x128xi1>, vector<196x128xf32>
    %cst_13 = arith.constant 0.000000e+00 : f32
    %33 = vector.broadcast %cst_13 : f32 to vector<13x128xf32>
    %34 = vector.extract_strided_slice %32 {offsets = [13, 0], sizes = [183, 128], strides = [1, 1]} : vector<196x128xf32> to vector<183x128xf32>
    %35 = tpu.concatenate %34, %33 in 0 : vector<183x128xf32>, vector<13x128xf32> -> vector<196x128xf32>
    %cst_14 = arith.constant 0.000000e+00 : f32
    %36 = vector.broadcast %cst_14 : f32 to vector<1x128xf32>
    %37 = vector.extract_strided_slice %32 {offsets = [0, 0], sizes = [195, 128], strides = [1, 1]} : vector<196x128xf32> to vector<195x128xf32>
    %38 = tpu.concatenate %36, %37 in 0 : vector<1x128xf32>, vector<195x128xf32> -> vector<196x128xf32>
    %39 = arith.select %2, %35, %38 : vector<196x128xi1>, vector<196x128xf32>
    %40 = arith.addf %27, %39 : vector<196x128xf32>
    %cst_15 = arith.constant 0.000000e+00 : f32
    %41 = vector.broadcast %cst_15 : f32 to vector<14x128xf32>
    %42 = vector.extract_strided_slice %40 {offsets = [0, 0], sizes = [182, 128], strides = [1, 1]} : vector<196x128xf32> to vector<182x128xf32>
    %43 = tpu.concatenate %41, %42 in 0 : vector<14x128xf32>, vector<182x128xf32> -> vector<196x128xf32>
    %c0_16 = arith.constant 0 : index
    %c0_17 = arith.constant 0 : index
    %44 = vector.load %arg4[%c0_16, %c0_17] : memref<196x1152xf32, #tpu.memory_space<vmem>>, vector<196x128xf32>
    tpu.vector_store %arg4[%c0_16, %c0_17], %43 {strides = array<i32>} : memref<196x1152xf32, #tpu.memory_space<vmem>>, vector<196x128xf32>,
    %c0_18 = arith.constant 0 : index
    %c384 = arith.constant 384 : index
    %45 = vector.load %arg4[%c0_18, %c384] : memref<196x1152xf32, #tpu.memory_space<vmem>>, vector<196x128xf32>
    tpu.vector_store %arg4[%c0_18, %c384], %40 {strides = array<i32>} : memref<196x1152xf32, #tpu.memory_space<vmem>>, vector<196x128xf32>,
    %cst_19 = arith.constant 0.000000e+00 : f32
    %46 = vector.broadcast %cst_19 : f32 to vector<14x128xf32>
    %47 = vector.extract_strided_slice %40 {offsets = [14, 0], sizes = [182, 128], strides = [1, 1]} : vector<196x128xf32> to vector<182x128xf32>
    %48 = tpu.concatenate %47, %46 in 0 : vector<182x128xf32>, vector<14x128xf32> -> vector<196x128xf32>
    %c0_20 = arith.constant 0 : index
    %c768 = arith.constant 768 : index
    %49 = vector.load %arg4[%c0_20, %c768] : memref<196x1152xf32, #tpu.memory_space<vmem>>, vector<196x128xf32>
    tpu.vector_store %arg4[%c0_20, %c768], %48 {strides = array<i32>} : memref<196x1152xf32, #tpu.memory_space<vmem>>, vector<196x128xf32>,
    %cst_21 = arith.constant 0.000000e+00 : f32
    %50 = vector.broadcast %cst_21 : f32 to vector<13x128xf32>
    %51 = vector.extract_strided_slice %22 {offsets = [13, 0], sizes = [183, 128], strides = [1, 1]} : vector<196x128xf32> to vector<183x128xf32>
    %52 = tpu.concatenate %51, %50 in 0 : vector<183x128xf32>, vector<13x128xf32> -> vector<196x128xf32>
    %cst_22 = arith.constant 0.000000e+00 : f32
    %53 = vector.broadcast %cst_22 : f32 to vector<1x128xf32>
    %54 = vector.extract_strided_slice %22 {offsets = [0, 0], sizes = [195, 128], strides = [1, 1]} : vector<196x128xf32> to vector<195x128xf32>
    %55 = tpu.concatenate %53, %54 in 0 : vector<1x128xf32>, vector<195x128xf32> -> vector<196x128xf32>
    %56 = arith.select %2, %52, %55 : vector<196x128xi1>, vector<196x128xf32>
    %57 = arith.addf %15, %56 : vector<196x128xf32>
    %cst_23 = arith.constant 0.000000e+00 : f32
    %58 = vector.broadcast %cst_23 : f32 to vector<14x128xf32>
    %59 = vector.extract_strided_slice %57 {offsets = [0, 0], sizes = [182, 128], strides = [1, 1]} : vector<196x128xf32> to vector<182x128xf32>
    %60 = tpu.concatenate %58, %59 in 0 : vector<14x128xf32>, vector<182x128xf32> -> vector<196x128xf32>
    %c0_24 = arith.constant 0 : index
    %c128 = arith.constant 128 : index
    %61 = vector.load %arg4[%c0_24, %c128] : memref<196x1152xf32, #tpu.memory_space<vmem>>, vector<196x128xf32>
    tpu.vector_store %arg4[%c0_24, %c128], %60 {strides = array<i32>} : memref<196x1152xf32, #tpu.memory_space<vmem>>, vector<196x128xf32>,
    %c0_25 = arith.constant 0 : index
    %c512 = arith.constant 512 : index
    %62 = vector.load %arg4[%c0_25, %c512] : memref<196x1152xf32, #tpu.memory_space<vmem>>, vector<196x128xf32>
    tpu.vector_store %arg4[%c0_25, %c512], %57 {strides = array<i32>} : memref<196x1152xf32, #tpu.memory_space<vmem>>, vector<196x128xf32>,
    %cst_26 = arith.constant 0.000000e+00 : f32
    %63 = vector.broadcast %cst_26 : f32 to vector<14x128xf32>
    %64 = vector.extract_strided_slice %57 {offsets = [14, 0], sizes = [182, 128], strides = [1, 1]} : vector<196x128xf32> to vector<182x128xf32>
    %65 = tpu.concatenate %64, %63 in 0 : vector<182x128xf32>, vector<14x128xf32> -> vector<196x128xf32>
    %c0_27 = arith.constant 0 : index
    %c896 = arith.constant 896 : index
    %66 = vector.load %arg4[%c0_27, %c896] : memref<196x1152xf32, #tpu.memory_space<vmem>>, vector<196x128xf32>
    tpu.vector_store %arg4[%c0_27, %c896], %65 {strides = array<i32>} : memref<196x1152xf32, #tpu.memory_space<vmem>>, vector<196x128xf32>,
    %cst_28 = arith.constant 0.000000e+00 : f32
    %67 = vector.broadcast %cst_28 : f32 to vector<1x128xf32>
    %68 = vector.extract_strided_slice %15 {offsets = [1, 0], sizes = [195, 128], strides = [1, 1]} : vector<196x128xf32> to vector<195x128xf32>
    %69 = tpu.concatenate %68, %67 in 0 : vector<195x128xf32>, vector<1x128xf32> -> vector<196x128xf32>
    %cst_29 = arith.constant 0.000000e+00 : f32
    %70 = vector.broadcast %cst_29 : f32 to vector<196x128xf32>
    %71 = arith.select %4, %70, %69 : vector<196x128xi1>, vector<196x128xf32>
    %cst_30 = arith.constant 0.000000e+00 : f32
    %72 = vector.broadcast %cst_30 : f32 to vector<1x128xf32>
    %73 = vector.extract_strided_slice %22 {offsets = [1, 0], sizes = [195, 128], strides = [1, 1]} : vector<196x128xf32> to vector<195x128xf32>
    %74 = tpu.concatenate %73, %72 in 0 : vector<195x128xf32>, vector<1x128xf32> -> vector<196x128xf32>
    %cst_31 = arith.constant 0.000000e+00 : f32
    %75 = vector.broadcast %cst_31 : f32 to vector<196x128xf32>
    %76 = arith.select %4, %75, %74 : vector<196x128xi1>, vector<196x128xf32>
    %cst_32 = arith.constant 0.000000e+00 : f32
    %77 = vector.broadcast %cst_32 : f32 to vector<13x128xf32>
    %78 = vector.extract_strided_slice %76 {offsets = [13, 0], sizes = [183, 128], strides = [1, 1]} : vector<196x128xf32> to vector<183x128xf32>
    %79 = tpu.concatenate %78, %77 in 0 : vector<183x128xf32>, vector<13x128xf32> -> vector<196x128xf32>
    %cst_33 = arith.constant 0.000000e+00 : f32
    %80 = vector.broadcast %cst_33 : f32 to vector<1x128xf32>
    %81 = vector.extract_strided_slice %76 {offsets = [0, 0], sizes = [195, 128], strides = [1, 1]} : vector<196x128xf32> to vector<195x128xf32>
    %82 = tpu.concatenate %80, %81 in 0 : vector<1x128xf32>, vector<195x128xf32> -> vector<196x128xf32>
    %83 = arith.select %2, %79, %82 : vector<196x128xi1>, vector<196x128xf32>
    %84 = arith.addf %71, %83 : vector<196x128xf32>
    %cst_34 = arith.constant 0.000000e+00 : f32
    %85 = vector.broadcast %cst_34 : f32 to vector<14x128xf32>
    %86 = vector.extract_strided_slice %84 {offsets = [0, 0], sizes = [182, 128], strides = [1, 1]} : vector<196x128xf32> to vector<182x128xf32>
    %87 = tpu.concatenate %85, %86 in 0 : vector<14x128xf32>, vector<182x128xf32> -> vector<196x128xf32>
    %c0_35 = arith.constant 0 : index
    %c256 = arith.constant 256 : index
    %88 = vector.load %arg4[%c0_35, %c256] : memref<196x1152xf32, #tpu.memory_space<vmem>>, vector<196x128xf32>
    tpu.vector_store %arg4[%c0_35, %c256], %87 {strides = array<i32>} : memref<196x1152xf32, #tpu.memory_space<vmem>>, vector<196x128xf32>,
    %c0_36 = arith.constant 0 : index
    %c640 = arith.constant 640 : index
    %89 = vector.load %arg4[%c0_36, %c640] : memref<196x1152xf32, #tpu.memory_space<vmem>>, vector<196x128xf32>
    tpu.vector_store %arg4[%c0_36, %c640], %84 {strides = array<i32>} : memref<196x1152xf32, #tpu.memory_space<vmem>>, vector<196x128xf32>,
    %cst_37 = arith.constant 0.000000e+00 : f32
    %90 = vector.broadcast %cst_37 : f32 to vector<14x128xf32>
    %91 = vector.extract_strided_slice %84 {offsets = [14, 0], sizes = [182, 128], strides = [1, 1]} : vector<196x128xf32> to vector<182x128xf32>
    %92 = tpu.concatenate %91, %90 in 0 : vector<182x128xf32>, vector<14x128xf32> -> vector<196x128xf32>
    %c0_38 = arith.constant 0 : index
    %c1024 = arith.constant 1024 : index
    %93 = vector.load %arg4[%c0_38, %c1024] : memref<196x1152xf32, #tpu.memory_space<vmem>>, vector<196x128xf32>
    tpu.vector_store %arg4[%c0_38, %c1024], %92 {strides = array<i32>} : memref<196x1152xf32, #tpu.memory_space<vmem>>, vector<196x128xf32>,
    %c0_39 = arith.constant 0 : index
    %c0_40 = arith.constant 0 : index
    %94 = vector.load %arg2[%c0_39, %c0_40] : memref<256x1152xf32, #tpu.memory_space<vmem>>, vector<256x1152xf32>
    %c0_41 = arith.constant 0 : index
    %c0_42 = arith.constant 0 : index
    %95 = vector.load %arg4[%c0_41, %c0_42] : memref<196x1152xf32, #tpu.memory_space<vmem>>, vector<196x1152xf32>
    %cst_43 = arith.constant dense<0.000000e+00> : vector<256x196xf32>
    %96 = tpu.matmul %94, %95, %cst_43 {dimension_numbers = #tpu.dot_dimension_numbers<[1], [1], [0], [0], [0, 0, 1, 0], [], []>} : vector<256x1152xf32>, vector<196x1152xf32>, vector<256x196xf32> -> vector<256x196xf32>
    %c0_44 = arith.constant 0 : index
    %c0_45 = arith.constant 0 : index
    %97 = vector.load %arg3[%c0_44, %c0_45] : memref<256x196xf32, #tpu.memory_space<vmem>>, vector<256x196xf32>
    tpu.vector_store %arg3[%c0_44, %c0_45], %96 {strides = array<i32>} : memref<256x196xf32, #tpu.memory_space<vmem>>, vector<256x196xf32>,
    return
  }
}

</mosaic_0001>

<llo_original>
// kernel: kernel_generated_3_forward.1
$region0: #{kernel_generated_3_forward.1}
  #allocation0 [shape = 'u32[]', space=smem, size = 0x4, offset = 0x4, fixed_abs, tag = 'smem constant byte address 0x4 - core index']
  #allocation1 [shape = 'u32[144,128]{1,0:T(1,128)}', space=vmem, size = 0x12000, scoped, tag = 'internal scratch']
  #allocation2 [shape = 'f32[196,1152]{1,0:T(8,128)}', space=vmem, size = 0xe1000, scoped, tag = 'scratch operand']
  %s0 = inlined_call_operand.vmem [shape: s32[196,128], index: 0, kind: input, shape index: {}]
  %s1 = inlined_call_operand.vmem [shape: f32[2,196,128], index: 1, kind: input, shape index: {}]
  %s2 = inlined_call_operand.vmem [shape: f32[256,1152], index: 2, kind: input, shape index: {}]
  %s3 = inlined_call_operand.vmem [shape: f32[256,196], index: 3, kind: output, shape index: {}]
  %s4 = sld [smem:[#allocation0]]
  $region22: #{kernel_generated_3_forward.1} parent=0
    _
  %s6 = ssub.s32 1, %s4
  %s7 = scalar_select 0, %s6, %s4
  // Predicated region
  $region2: #{kernel_generated_3_forward.1} parent=0 // pred_check
    _
  $region3: #{kernel_generated_3_forward.1} parent=0 // pred_check_branch
    %9 = sbr.rel (0) target = $region5
  $region4: #{kernel_generated_3_forward.1} parent=0 // pred_region
    _
  $region5: #{kernel_generated_3_forward.1} parent=0 // pred_fallthru
    _
  // Predicated region
  $region6: #{kernel_generated_3_forward.1} parent=0 // pred_check
    _
  $region7: #{kernel_generated_3_forward.1} parent=0 // pred_check_branch
    %11 = sbr.rel (0) target = $region9
  $region8: #{kernel_generated_3_forward.1} parent=0 // pred_region
    _
  $region9: #{kernel_generated_3_forward.1} parent=0 // pred_fallthru
    _
  // Predicated region
  $region10: #{kernel_generated_3_forward.1} parent=0 // pred_check
    _
  $region11: #{kernel_generated_3_forward.1} parent=0 // pred_check_branch
    %13 = sbr.rel (0) target = $region13
  $region12: #{kernel_generated_3_forward.1} parent=0 // pred_region
    _
  $region13: #{kernel_generated_3_forward.1} parent=0 // pred_fallthru
    _
  %v14 = vld [vmem:[%s0] sm:$0xff]
  %v15 = vld [vmem:[%s0 + $0x8] sm:$0xff]
  %v16 = vld [vmem:[%s0 + $0x10] sm:$0xff]
  %v17 = vld [vmem:[%s0 + $0x18] sm:$0xff]
  %v18 = vld [vmem:[%s0 + $0x20] sm:$0xff]
  %v19 = vld [vmem:[%s0 + $0x28] sm:$0xff]
  %v20 = vld [vmem:[%s0 + $0x30] sm:$0xff]
  %v21 = vld [vmem:[%s0 + $0x38] sm:$0xff]
  %v22 = vld [vmem:[%s0 + $0x40] sm:$0xff]
  %v23 = vld [vmem:[%s0 + $0x48] sm:$0xff]
  %v24 = vld [vmem:[%s0 + $0x50] sm:$0xff]
  %v25 = vld [vmem:[%s0 + $0x58] sm:$0xff]
  %v26 = vld [vmem:[%s0 + $0x60] sm:$0xff]
  %v27 = vld [vmem:[%s0 + $0x68] sm:$0xff]
  %v28 = vld [vmem:[%s0 + $0x70] sm:$0xff]
  %v29 = vld [vmem:[%s0 + $0x78] sm:$0xff]
  %v30 = vld [vmem:[%s0 + $0x80] sm:$0xff]
  %v31 = vld [vmem:[%s0 + $0x88] sm:$0xff]
  %v32 = vld [vmem:[%s0 + $0x90] sm:$0xff]
  %v33 = vld [vmem:[%s0 + $0x98] sm:$0xff]
  %v34 = vld [vmem:[%s0 + $0xa0] sm:$0xff]
  %v35 = vld [vmem:[%s0 + $0xa8] sm:$0xff]
  %v36 = vld [vmem:[%s0 + $0xb0] sm:$0xff]
  %v37 = vld [vmem:[%s0 + $0xb8] sm:$0xff]
  %v38 = vld [vmem:[%s0 + $0xc0] sm:$0xf]
  %vm39 = vcmp.eq.s32.totalorder %v14, 0
  %vm40 = vcmp.eq.s32.totalorder %v15, 0
  %vm41 = vcmp.eq.s32.totalorder %v16, 0
  %vm42 = vcmp.eq.s32.totalorder %v17, 0
  %vm43 = vcmp.eq.s32.totalorder %v18, 0
  %vm44 = vcmp.eq.s32.totalorder %v19, 0
  %vm45 = vcmp.eq.s32.totalorder %v20, 0
  %vm46 = vcmp.eq.s32.totalorder %v21, 0
  %vm47 = vcmp.eq.s32.totalorder %v22, 0
  %vm48 = vcmp.eq.s32.totalorder %v23, 0
  %vm49 = vcmp.eq.s32.totalorder %v24, 0
  %vm50 = vcmp.eq.s32.totalorder %v25, 0
  %vm51 = vcmp.eq.s32.totalorder %v26, 0
  %vm52 = vcmp.eq.s32.totalorder %v27, 0
  %vm53 = vcmp.eq.s32.totalorder %v28, 0
  %vm54 = vcmp.eq.s32.totalorder %v29, 0
  %vm55 = vcmp.eq.s32.totalorder %v30, 0
  %vm56 = vcmp.eq.s32.totalorder %v31, 0
  %vm57 = vcmp.eq.s32.totalorder %v32, 0
  %vm58 = vcmp.eq.s32.totalorder %v33, 0
  %vm59 = vcmp.eq.s32.totalorder %v34, 0
  %vm60 = vcmp.eq.s32.totalorder %v35, 0
  %vm61 = vcmp.eq.s32.totalorder %v36, 0
  %vm62 = vcmp.eq.s32.totalorder %v37, 0
  %vm63 = vcmp.eq.s32.totalorder %v38, 0
  %vm64 = vcmp.eq.s32.totalorder %v14, 13
  %vm65 = vcmp.eq.s32.totalorder %v15, 13
  %vm66 = vcmp.eq.s32.totalorder %v16, 13
  %vm67 = vcmp.eq.s32.totalorder %v17, 13
  %vm68 = vcmp.eq.s32.totalorder %v18, 13
  %vm69 = vcmp.eq.s32.totalorder %v19, 13
  %vm70 = vcmp.eq.s32.totalorder %v20, 13
  %vm71 = vcmp.eq.s32.totalorder %v21, 13
  %vm72 = vcmp.eq.s32.totalorder %v22, 13
  %vm73 = vcmp.eq.s32.totalorder %v23, 13
  %vm74 = vcmp.eq.s32.totalorder %v24, 13
  %vm75 = vcmp.eq.s32.totalorder %v25, 13
  %vm76 = vcmp.eq.s32.totalorder %v26, 13
  %vm77 = vcmp.eq.s32.totalorder %v27, 13
  %vm78 = vcmp.eq.s32.totalorder %v28, 13
  %vm79 = vcmp.eq.s32.totalorder %v29, 13
  %vm80 = vcmp.eq.s32.totalorder %v30, 13
  %vm81 = vcmp.eq.s32.totalorder %v31, 13
  %vm82 = vcmp.eq.s32.totalorder %v32, 13
  %vm83 = vcmp.eq.s32.totalorder %v33, 13
  %vm84 = vcmp.eq.s32.totalorder %v34, 13
  %vm85 = vcmp.eq.s32.totalorder %v35, 13
  %vm86 = vcmp.eq.s32.totalorder %v36, 13
  %vm87 = vcmp.eq.s32.totalorder %v37, 13
  %vm88 = vcmp.eq.s32.totalorder %v38, 13
  %v89 = vld [vmem:[%s1] sm:$0xff]
  %v90 = vld [vmem:[%s1 + $0x8] sm:$0xff]
  %v91 = vld [vmem:[%s1 + $0x10] sm:$0xff]
  %v92 = vld [vmem:[%s1 + $0x18] sm:$0xff]
  %v93 = vld [vmem:[%s1 + $0x20] sm:$0xff]
  %v94 = vld [vmem:[%s1 + $0x28] sm:$0xff]
  %v95 = vld [vmem:[%s1 + $0x30] sm:$0xff]
  %v96 = vld [vmem:[%s1 + $0x38] sm:$0xff]
  %v97 = vld [vmem:[%s1 + $0x40] sm:$0xff]
  %v98 = vld [vmem:[%s1 + $0x48] sm:$0xff]
  %v99 = vld [vmem:[%s1 + $0x50] sm:$0xff]
  %v100 = vld [vmem:[%s1 + $0x58] sm:$0xff]
  %v101 = vld [vmem:[%s1 + $0x60] sm:$0xff]
  %v102 = vld [vmem:[%s1 + $0x68] sm:$0xff]
  %v103 = vld [vmem:[%s1 + $0x70] sm:$0xff]
  %v104 = vld [vmem:[%s1 + $0x78] sm:$0xff]
  %v105 = vld [vmem:[%s1 + $0x80] sm:$0xff]
  %v106 = vld [vmem:[%s1 + $0x88] sm:$0xff]
  %v107 = vld [vmem:[%s1 + $0x90] sm:$0xff]
  %v108 = vld [vmem:[%s1 + $0x98] sm:$0xff]
  %v109 = vld [vmem:[%s1 + $0xa0] sm:$0xff]
  %v110 = vld [vmem:[%s1 + $0xa8] sm:$0xff]
  %v111 = vld [vmem:[%s1 + $0xb0] sm:$0xff]
  %v112 = vld [vmem:[%s1 + $0xb8] sm:$0xff]
  %v113 = vld [vmem:[%s1 + $0xc0] sm:$0xf]
  %s114 = scalar_lea.vmem %s1, 200
  %v115 = vld [vmem:[%s114] sm:$0xff]
  %v116 = vld [vmem:[%s114 + $0x8] sm:$0xff]
  %v117 = vld [vmem:[%s114 + $0x10] sm:$0xff]
  %v118 = vld [vmem:[%s114 + $0x18] sm:$0xff]
  %v119 = vld [vmem:[%s114 + $0x20] sm:$0xff]
  %v120 = vld [vmem:[%s114 + $0x28] sm:$0xff]
  %v121 = vld [vmem:[%s114 + $0x30] sm:$0xff]
  %v122 = vld [vmem:[%s114 + $0x38] sm:$0xff]
  %v123 = vld [vmem:[%s114 + $0x40] sm:$0xff]
  %v124 = vld [vmem:[%s114 + $0x48] sm:$0xff]
  %v125 = vld [vmem:[%s114 + $0x50] sm:$0xff]
  %v126 = vld [vmem:[%s114 + $0x58] sm:$0xff]
  %v127 = vld [vmem:[%s114 + $0x60] sm:$0xff]
  %v128 = vld [vmem:[%s114 + $0x68] sm:$0xff]
  %v129 = vld [vmem:[%s114 + $0x70] sm:$0xff]
  %v130 = vld [vmem:[%s114 + $0x78] sm:$0xff]
  %v131 = vld [vmem:[%s114 + $0x80] sm:$0xff]
  %v132 = vld [vmem:[%s114 + $0x88] sm:$0xff]
  %v133 = vld [vmem:[%s114 + $0x90] sm:$0xff]
  %v134 = vld [vmem:[%s114 + $0x98] sm:$0xff]
  %v135 = vld [vmem:[%s114 + $0xa0] sm:$0xff]
  %v136 = vld [vmem:[%s114 + $0xa8] sm:$0xff]
  %v137 = vld [vmem:[%s114 + $0xb0] sm:$0xff]
  %v138 = vld [vmem:[%s114 + $0xb8] sm:$0xff]
  %v139 = vld [vmem:[%s114 + $0xc0] sm:$0xf]
  %vm164 = vcmask 1042432
  %v165 = vrot.slane %v90, 5
  %v166 = vrot.slane %v91, 5
  %v167 = vsel %vm164, %v165, %v166
  %v168 = vrot.slane %v92, 5
  %v169 = vsel %vm164, %v166, %v168
  %v170 = vrot.slane %v93, 5
  %v171 = vsel %vm164, %v168, %v170
  %v172 = vrot.slane %v94, 5
  %v173 = vsel %vm164, %v170, %v172
  %v174 = vrot.slane %v95, 5
  %v175 = vsel %vm164, %v172, %v174
  %v176 = vrot.slane %v96, 5
  %v177 = vsel %vm164, %v174, %v176
  %v178 = vrot.slane %v97, 5
  %v179 = vsel %vm164, %v176, %v178
  %v180 = vrot.slane %v98, 5
  %v181 = vsel %vm164, %v178, %v180
  %v182 = vrot.slane %v99, 5
  %v183 = vsel %vm164, %v180, %v182
  %v184 = vrot.slane %v100, 5
  %v185 = vsel %vm164, %v182, %v184
  %v186 = vrot.slane %v101, 5
  %v187 = vsel %vm164, %v184, %v186
  %v188 = vrot.slane %v102, 5
  %v189 = vsel %vm164, %v186, %v188
  %v190 = vrot.slane %v103, 5
  %v191 = vsel %vm164, %v188, %v190
  %v192 = vrot.slane %v104, 5
  %v193 = vsel %vm164, %v190, %v192
  %v194 = vrot.slane %v105, 5
  %v195 = vsel %vm164, %v192, %v194
  %v196 = vrot.slane %v106, 5
  %v197 = vsel %vm164, %v194, %v196
  %v198 = vrot.slane %v107, 5
  %v199 = vsel %vm164, %v196, %v198
  %v200 = vrot.slane %v108, 5
  %v201 = vsel %vm164, %v198, %v200
  %v202 = vrot.slane %v109, 5
  %v203 = vsel %vm164, %v200, %v202
  %v204 = vrot.slane %v110, 5
  %v205 = vsel %vm164, %v202, %v204
  %v206 = vrot.slane %v111, 5
  %v207 = vsel %vm164, %v204, %v206
  %v208 = vrot.slane %v112, 5
  %v209 = vsel %vm164, %v206, %v208
  %v210 = vrot.slane %v113, 5
  %v211 = vsel %vm164, %v208, %v210
  %vm235 = vcmask 1046528
  %v236 = vsel %vm235, %v211, 0.0
  %vm238 = vcmask 1040384
  %v239 = vrot.slane %v89, 7
  %v240 = vrot.slane %v90, 7
  %v241 = vsel %vm238, %v239, %v240
  %v242 = vrot.slane %v91, 7
  %v243 = vsel %vm238, %v240, %v242
  %v244 = vrot.slane %v92, 7
  %v245 = vsel %vm238, %v242, %v244
  %v246 = vrot.slane %v93, 7
  %v247 = vsel %vm238, %v244, %v246
  %v248 = vrot.slane %v94, 7
  %v249 = vsel %vm238, %v246, %v248
  %v250 = vrot.slane %v95, 7
  %v251 = vsel %vm238, %v248, %v250
  %v252 = vrot.slane %v96, 7
  %v253 = vsel %vm238, %v250, %v252
  %v254 = vrot.slane %v97, 7
  %v255 = vsel %vm238, %v252, %v254
  %v256 = vrot.slane %v98, 7
  %v257 = vsel %vm238, %v254, %v256
  %v258 = vrot.slane %v99, 7
  %v259 = vsel %vm238, %v256, %v258
  %v260 = vrot.slane %v100, 7
  %v261 = vsel %vm238, %v258, %v260
  %v262 = vrot.slane %v101, 7
  %v263 = vsel %vm238, %v260, %v262
  %v264 = vrot.slane %v102, 7
  %v265 = vsel %vm238, %v262, %v264
  %v266 = vrot.slane %v103, 7
  %v267 = vsel %vm238, %v264, %v266
  %v268 = vrot.slane %v104, 7
  %v269 = vsel %vm238, %v266, %v268
  %v270 = vrot.slane %v105, 7
  %v271 = vsel %vm238, %v268, %v270
  %v272 = vrot.slane %v106, 7
  %v273 = vsel %vm238, %v270, %v272
  %v274 = vrot.slane %v107, 7
  %v275 = vsel %vm238, %v272, %v274
  %v276 = vrot.slane %v108, 7
  %v277 = vsel %vm238, %v274, %v276
  %v278 = vrot.slane %v109, 7
  %v279 = vsel %vm238, %v276, %v278
  %v280 = vrot.slane %v110, 7
  %v281 = vsel %vm238, %v278, %v280
  %v282 = vrot.slane %v111, 7
  %v283 = vsel %vm238, %v280, %v282
  %v284 = vrot.slane %v112, 7
  %v285 = vsel %vm238, %v282, %v284
  %v286 = vrot.slane %v113, 7
  %v287 = vsel %vm238, %v284, %v286
  %v313 = vsel %vm238, 0.0, %v239
  %v314 = vsel %vm39, %v167, %v313
  %v315 = vsel %vm40, %v169, %v241
  %v316 = vsel %vm41, %v171, %v243
  %v317 = vsel %vm42, %v173, %v245
  %v318 = vsel %vm43, %v175, %v247
  %v319 = vsel %vm44, %v177, %v249
  %v320 = vsel %vm45, %v179, %v251
  %v321 = vsel %vm46, %v181, %v253
  %v322 = vsel %vm47, %v183, %v255
  %v323 = vsel %vm48, %v185, %v257
  %v324 = vsel %vm49, %v187, %v259
  %v325 = vsel %vm50, %v189, %v261
  %v326 = vsel %vm51, %v191, %v263
  %v327 = vsel %vm52, %v193, %v265
  %v328 = vsel %vm53, %v195, %v267
  %v329 = vsel %vm54, %v197, %v269
  %v330 = vsel %vm55, %v199, %v271
  %v331 = vsel %vm56, %v201, %v273
  %v332 = vsel %vm57, %v203, %v275
  %v333 = vsel %vm58, %v205, %v277
  %v334 = vsel %vm59, %v207, %v279
  %v335 = vsel %vm60, %v209, %v281
  %v336 = vsel %vm61, %v236, %v283
  %v337 = vsel %vm62, 0.0, %v285
  %v338 = vsel %vm63, 0.0, %v287
  %v363 = vrot.slane %v116, 5
  %v364 = vrot.slane %v117, 5
  %v365 = vsel %vm164, %v363, %v364
  %v366 = vrot.slane %v118, 5
  %v367 = vsel %vm164, %v364, %v366
  %v368 = vrot.slane %v119, 5
  %v369 = vsel %vm164, %v366, %v368
  %v370 = vrot.slane %v120, 5
  %v371 = vsel %vm164, %v368, %v370
  %v372 = vrot.slane %v121, 5
  %v373 = vsel %vm164, %v370, %v372
  %v374 = vrot.slane %v122, 5
  %v375 = vsel %vm164, %v372, %v374
  %v376 = vrot.slane %v123, 5
  %v377 = vsel %vm164, %v374, %v376
  %v378 = vrot.slane %v124, 5
  %v379 = vsel %vm164, %v376, %v378
  %v380 = vrot.slane %v125, 5
  %v381 = vsel %vm164, %v378, %v380
  %v382 = vrot.slane %v126, 5
  %v383 = vsel %vm164, %v380, %v382
  %v384 = vrot.slane %v127, 5
  %v385 = vsel %vm164, %v382, %v384
  %v386 = vrot.slane %v128, 5
  %v387 = vsel %vm164, %v384, %v386
  %v388 = vrot.slane %v129, 5
  %v389 = vsel %vm164, %v386, %v388
  %v390 = vrot.slane %v130, 5
  %v391 = vsel %vm164, %v388, %v390
  %v392 = vrot.slane %v131, 5
  %v393 = vsel %vm164, %v390, %v392
  %v394 = vrot.slane %v132, 5
  %v395 = vsel %vm164, %v392, %v394
  %v396 = vrot.slane %v133, 5
  %v397 = vsel %vm164, %v394, %v396
  %v398 = vrot.slane %v134, 5
  %v399 = vsel %vm164, %v396, %v398
  %v400 = vrot.slane %v135, 5
  %v401 = vsel %vm164, %v398, %v400
  %v402 = vrot.slane %v136, 5
  %v403 = vsel %vm164, %v400, %v402
  %v404 = vrot.slane %v137, 5
  %v405 = vsel %vm164, %v402, %v404
  %v406 = vrot.slane %v138, 5
  %v407 = vsel %vm164, %v404, %v406
  %v408 = vrot.slane %v139, 5
  %v409 = vsel %vm164, %v406, %v408
  %v433 = vsel %vm235, %v409, 0.0
  %v435 = vrot.slane %v115, 7
  %v436 = vrot.slane %v116, 7
  %v437 = vsel %vm238, %v435, %v436
  %v438 = vrot.slane %v117, 7
  %v439 = vsel %vm238, %v436, %v438
  %v440 = vrot.slane %v118, 7
  %v441 = vsel %vm238, %v438, %v440
  %v442 = vrot.slane %v119, 7
  %v443 = vsel %vm238, %v440, %v442
  %v444 = vrot.slane %v120, 7
  %v445 = vsel %vm238, %v442, %v444
  %v446 = vrot.slane %v121, 7
  %v447 = vsel %vm238, %v444, %v446
  %v448 = vrot.slane %v122, 7
  %v449 = vsel %vm238, %v446, %v448
  %v450 = vrot.slane %v123, 7
  %v451 = vsel %vm238, %v448, %v450
  %v452 = vrot.slane %v124, 7
  %v453 = vsel %vm238, %v450, %v452
  %v454 = vrot.slane %v125, 7
  %v455 = vsel %vm238, %v452, %v454
  %v456 = vrot.slane %v126, 7
  %v457 = vsel %vm238, %v454, %v456
  %v458 = vrot.slane %v127, 7
  %v459 = vsel %vm238, %v456, %v458
  %v460 = vrot.slane %v128, 7
  %v461 = vsel %vm238, %v458, %v460
  %v462 = vrot.slane %v129, 7
  %v463 = vsel %vm238, %v460, %v462
  %v464 = vrot.slane %v130, 7
  %v465 = vsel %vm238, %v462, %v464
  %v466 = vrot.slane %v131, 7
  %v467 = vsel %vm238, %v464, %v466
  %v468 = vrot.slane %v132, 7
  %v469 = vsel %vm238, %v466, %v468
  %v470 = vrot.slane %v133, 7
  %v471 = vsel %vm238, %v468, %v470
  %v472 = vrot.slane %v134, 7
  %v473 = vsel %vm238, %v470, %v472
  %v474 = vrot.slane %v135, 7
  %v475 = vsel %vm238, %v472, %v474
  %v476 = vrot.slane %v136, 7
  %v477 = vsel %vm238, %v474, %v476
  %v478 = vrot.slane %v137, 7
  %v479 = vsel %vm238, %v476, %v478
  %v480 = vrot.slane %v138, 7
  %v481 = vsel %vm238, %v478, %v480
  %v482 = vrot.slane %v139, 7
  %v483 = vsel %vm238, %v480, %v482
  %v509 = vsel %vm238, 0.0, %v435
  %v510 = vsel %vm39, %v365, %v509
  %v511 = vsel %vm40, %v367, %v437
  %v512 = vsel %vm41, %v369, %v439
  %v513 = vsel %vm42, %v371, %v441
  %v514 = vsel %vm43, %v373, %v443
  %v515 = vsel %vm44, %v375, %v445
  %v516 = vsel %vm45, %v377, %v447
  %v517 = vsel %vm46, %v379, %v449
  %v518 = vsel %vm47, %v381, %v451
  %v519 = vsel %vm48, %v383, %v453
  %v520 = vsel %vm49, %v385, %v455
  %v521 = vsel %vm50, %v387, %v457
  %v522 = vsel %vm51, %v389, %v459
  %v523 = vsel %vm52, %v391, %v461
  %v524 = vsel %vm53, %v393, %v463
  %v525 = vsel %vm54, %v395, %v465
  %v526 = vsel %vm55, %v397, %v467
  %v527 = vsel %vm56, %v399, %v469
  %v528 = vsel %vm57, %v401, %v471
  %v529 = vsel %vm58, %v403, %v473
  %v530 = vsel %vm59, %v405, %v475
  %v531 = vsel %vm60, %v407, %v477
  %v532 = vsel %vm61, %v433, %v479
  %v533 = vsel %vm62, 0.0, %v481
  %v534 = vsel %vm63, 0.0, %v483
  %v560 = vrot.slane %v314, 7
  %v561 = vrot.slane %v315, 7
  %v562 = vsel %vm238, %v560, %v561
  %v563 = vrot.slane %v316, 7
  %v564 = vsel %vm238, %v561, %v563
  %v565 = vrot.slane %v317, 7
  %v566 = vsel %vm238, %v563, %v565
  %v567 = vrot.slane %v318, 7
  %v568 = vsel %vm238, %v565, %v567
  %v569 = vrot.slane %v319, 7
  %v570 = vsel %vm238, %v567, %v569
  %v571 = vrot.slane %v320, 7
  %v572 = vsel %vm238, %v569, %v571
  %v573 = vrot.slane %v321, 7
  %v574 = vsel %vm238, %v571, %v573
  %v575 = vrot.slane %v322, 7
  %v576 = vsel %vm238, %v573, %v575
  %v577 = vrot.slane %v323, 7
  %v578 = vsel %vm238, %v575, %v577
  %v579 = vrot.slane %v324, 7
  %v580 = vsel %vm238, %v577, %v579
  %v581 = vrot.slane %v325, 7
  %v582 = vsel %vm238, %v579, %v581
  %v583 = vrot.slane %v326, 7
  %v584 = vsel %vm238, %v581, %v583
  %v585 = vrot.slane %v327, 7
  %v586 = vsel %vm238, %v583, %v585
  %v587 = vrot.slane %v328, 7
  %v588 = vsel %vm238, %v585, %v587
  %v589 = vrot.slane %v329, 7
  %v590 = vsel %vm238, %v587, %v589
  %v591 = vrot.slane %v330, 7
  %v592 = vsel %vm238, %v589, %v591
  %v593 = vrot.slane %v331, 7
  %v594 = vsel %vm238, %v591, %v593
  %v595 = vrot.slane %v332, 7
  %v596 = vsel %vm238, %v593, %v595
  %v597 = vrot.slane %v333, 7
  %v598 = vsel %vm238, %v595, %v597
  %v599 = vrot.slane %v334, 7
  %v600 = vsel %vm238, %v597, %v599
  %v601 = vrot.slane %v335, 7
  %v602 = vsel %vm238, %v599, %v601
  %v603 = vrot.slane %v336, 7
  %v604 = vsel %vm238, %v601, %v603
  %v605 = vrot.slane %v337, 7
  %v606 = vsel %vm238, %v603, %v605
  %v607 = vrot.slane %v338, 7
  %v608 = vsel %vm238, %v605, %v607
  %v634 = vsel %vm238, 0.0, %v560
  %v635 = vsel %vm39, 0.0, %v634
  %v636 = vsel %vm40, 0.0, %v562
  %v637 = vsel %vm41, 0.0, %v564
  %v638 = vsel %vm42, 0.0, %v566
  %v639 = vsel %vm43, 0.0, %v568
  %v640 = vsel %vm44, 0.0, %v570
  %v641 = vsel %vm45, 0.0, %v572
  %v642 = vsel %vm46, 0.0, %v574
  %v643 = vsel %vm47, 0.0, %v576
  %v644 = vsel %vm48, 0.0, %v578
  %v645 = vsel %vm49, 0.0, %v580
  %v646 = vsel %vm50, 0.0, %v582
  %v647 = vsel %vm51, 0.0, %v584
  %v648 = vsel %vm52, 0.0, %v586
  %v649 = vsel %vm53, 0.0, %v588
  %v650 = vsel %vm54, 0.0, %v590
  %v651 = vsel %vm55, 0.0, %v592
  %v652 = vsel %vm56, 0.0, %v594
  %v653 = vsel %vm57, 0.0, %v596
  %v654 = vsel %vm58, 0.0, %v598
  %v655 = vsel %vm59, 0.0, %v600
  %v656 = vsel %vm60, 0.0, %v602
  %v657 = vsel %vm61, 0.0, %v604
  %v658 = vsel %vm62, 0.0, %v606
  %v659 = vsel %vm63, 0.0, %v608
  %v685 = vrot.slane %v510, 7
  %v686 = vrot.slane %v511, 7
  %v687 = vsel %vm238, %v685, %v686
  %v688 = vrot.slane %v512, 7
  %v689 = vsel %vm238, %v686, %v688
  %v690 = vrot.slane %v513, 7
  %v691 = vsel %vm238, %v688, %v690
  %v692 = vrot.slane %v514, 7
  %v693 = vsel %vm238, %v690, %v692
  %v694 = vrot.slane %v515, 7
  %v695 = vsel %vm238, %v692, %v694
  %v696 = vrot.slane %v516, 7
  %v697 = vsel %vm238, %v694, %v696
  %v698 = vrot.slane %v517, 7
  %v699 = vsel %vm238, %v696, %v698
  %v700 = vrot.slane %v518, 7
  %v701 = vsel %vm238, %v698, %v700
  %v702 = vrot.slane %v519, 7
  %v703 = vsel %vm238, %v700, %v702
  %v704 = vrot.slane %v520, 7
  %v705 = vsel %vm238, %v702, %v704
  %v706 = vrot.slane %v521, 7
  %v707 = vsel %vm238, %v704, %v706
  %v708 = vrot.slane %v522, 7
  %v709 = vsel %vm238, %v706, %v708
  %v710 = vrot.slane %v523, 7
  %v711 = vsel %vm238, %v708, %v710
  %v712 = vrot.slane %v524, 7
  %v713 = vsel %vm238, %v710, %v712
  %v714 = vrot.slane %v525, 7
  %v715 = vsel %vm238, %v712, %v714
  %v716 = vrot.slane %v526, 7
  %v717 = vsel %vm238, %v714, %v716
  %v718 = vrot.slane %v527, 7
  %v719 = vsel %vm238, %v716, %v718
  %v720 = vrot.slane %v528, 7
  %v721 = vsel %vm238, %v718, %v720
  %v722 = vrot.slane %v529, 7
  %v723 = vsel %vm238, %v720, %v722
  %v724 = vrot.slane %v530, 7
  %v725 = vsel %vm238, %v722, %v724
  %v726 = vrot.slane %v531, 7
  %v727 = vsel %vm238, %v724, %v726
  %v728 = vrot.slane %v532, 7
  %v729 = vsel %vm238, %v726, %v728
  %v730 = vrot.slane %v533, 7
  %v731 = vsel %vm238, %v728, %v730
  %v732 = vrot.slane %v534, 7
  %v733 = vsel %vm238, %v730, %v732
  %v759 = vsel %vm238, 0.0, %v685
  %v760 = vsel %vm39, 0.0, %v759
  %v761 = vsel %vm40, 0.0, %v687
  %v762 = vsel %vm41, 0.0, %v689
  %v763 = vsel %vm42, 0.0, %v691
  %v764 = vsel %vm43, 0.0, %v693
  %v765 = vsel %vm44, 0.0, %v695
  %v766 = vsel %vm45, 0.0, %v697
  %v767 = vsel %vm46, 0.0, %v699
  %v768 = vsel %vm47, 0.0, %v701
  %v769 = vsel %vm48, 0.0, %v703
  %v770 = vsel %vm49, 0.0, %v705
  %v771 = vsel %vm50, 0.0, %v707
  %v772 = vsel %vm51, 0.0, %v709
  %v773 = vsel %vm52, 0.0, %v711
  %v774 = vsel %vm53, 0.0, %v713
  %v775 = vsel %vm54, 0.0, %v715
  %v776 = vsel %vm55, 0.0, %v717
  %v777 = vsel %vm56, 0.0, %v719
  %v778 = vsel %vm57, 0.0, %v721
  %v779 = vsel %vm58, 0.0, %v723
  %v780 = vsel %vm59, 0.0, %v725
  %v781 = vsel %vm60, 0.0, %v727
  %v782 = vsel %vm61, 0.0, %v729
  %v783 = vsel %vm62, 0.0, %v731
  %v784 = vsel %vm63, 0.0, %v733
  %v809 = vrot.slane %v761, 5
  %v810 = vrot.slane %v762, 5
  %v811 = vsel %vm164, %v809, %v810
  %v812 = vrot.slane %v763, 5
  %v813 = vsel %vm164, %v810, %v812
  %v814 = vrot.slane %v764, 5
  %v815 = vsel %vm164, %v812, %v814
  %v816 = vrot.slane %v765, 5
  %v817 = vsel %vm164, %v814, %v816
  %v818 = vrot.slane %v766, 5
  %v819 = vsel %vm164, %v816, %v818
  %v820 = vrot.slane %v767, 5
  %v821 = vsel %vm164, %v818, %v820
  %v822 = vrot.slane %v768, 5
  %v823 = vsel %vm164, %v820, %v822
  %v824 = vrot.slane %v769, 5
  %v825 = vsel %vm164, %v822, %v824
  %v826 = vrot.slane %v770, 5
  %v827 = vsel %vm164, %v824, %v826
  %v828 = vrot.slane %v771, 5
  %v829 = vsel %vm164, %v826, %v828
  %v830 = vrot.slane %v772, 5
  %v831 = vsel %vm164, %v828, %v830
  %v832 = vrot.slane %v773, 5
  %v833 = vsel %vm164, %v830, %v832
  %v834 = vrot.slane %v774, 5
  %v835 = vsel %vm164, %v832, %v834
  %v836 = vrot.slane %v775, 5
  %v837 = vsel %vm164, %v834, %v836
  %v838 = vrot.slane %v776, 5
  %v839 = vsel %vm164, %v836, %v838
  %v840 = vrot.slane %v777, 5
  %v841 = vsel %vm164, %v838, %v840
  %v842 = vrot.slane %v778, 5
  %v843 = vsel %vm164, %v840, %v842
  %v844 = vrot.slane %v779, 5
  %v845 = vsel %vm164, %v842, %v844
  %v846 = vrot.slane %v780, 5
  %v847 = vsel %vm164, %v844, %v846
  %v848 = vrot.slane %v781, 5
  %v849 = vsel %vm164, %v846, %v848
  %v850 = vrot.slane %v782, 5
  %v851 = vsel %vm164, %v848, %v850
  %v852 = vrot.slane %v783, 5
  %v853 = vsel %vm164, %v850, %v852
  %v854 = vrot.slane %v784, 5
  %v855 = vsel %vm164, %v852, %v854
  %v879 = vsel %vm235, %v855, 0.0
  %v881 = vrot.slane %v760, 7
  %v882 = vrot.slane %v761, 7
  %v883 = vsel %vm238, %v881, %v882
  %v884 = vrot.slane %v762, 7
  %v885 = vsel %vm238, %v882, %v884
  %v886 = vrot.slane %v763, 7
  %v887 = vsel %vm238, %v884, %v886
  %v888 = vrot.slane %v764, 7
  %v889 = vsel %vm238, %v886, %v888
  %v890 = vrot.slane %v765, 7
  %v891 = vsel %vm238, %v888, %v890
  %v892 = vrot.slane %v766, 7
  %v893 = vsel %vm238, %v890, %v892
  %v894 = vrot.slane %v767, 7
  %v895 = vsel %vm238, %v892, %v894
  %v896 = vrot.slane %v768, 7
  %v897 = vsel %vm238, %v894, %v896
  %v898 = vrot.slane %v769, 7
  %v899 = vsel %vm238, %v896, %v898
  %v900 = vrot.slane %v770, 7
  %v901 = vsel %vm238, %v898, %v900
  %v902 = vrot.slane %v771, 7
  %v903 = vsel %vm238, %v900, %v902
  %v904 = vrot.slane %v772, 7
  %v905 = vsel %vm238, %v902, %v904
  %v906 = vrot.slane %v773, 7
  %v907 = vsel %vm238, %v904, %v906
  %v908 = vrot.slane %v774, 7
  %v909 = vsel %vm238, %v906, %v908
  %v910 = vrot.slane %v775, 7
  %v911 = vsel %vm238, %v908, %v910
  %v912 = vrot.slane %v776, 7
  %v913 = vsel %vm238, %v910, %v912
  %v914 = vrot.slane %v777, 7
  %v915 = vsel %vm238, %v912, %v914
  %v916 = vrot.slane %v778, 7
  %v917 = vsel %vm238, %v914, %v916
  %v918 = vrot.slane %v779, 7
  %v919 = vsel %vm238, %v916, %v918
  %v920 = vrot.slane %v780, 7
  %v921 = vsel %vm238, %v918, %v920
  %v922 = vrot.slane %v781, 7
  %v923 = vsel %vm238, %v920, %v922
  %v924 = vrot.slane %v782, 7
  %v925 = vsel %vm238, %v922, %v924
  %v926 = vrot.slane %v783, 7
  %v927 = vsel %vm238, %v924, %v926
  %v928 = vrot.slane %v784, 7
  %v929 = vsel %vm238, %v926, %v928
  %v955 = vsel %vm238, 0.0, %v881
  %v956 = vsel %vm39, %v811, %v955
  %v957 = vsel %vm40, %v813, %v883
  %v958 = vsel %vm41, %v815, %v885
  %v959 = vsel %vm42, %v817, %v887
  %v960 = vsel %vm43, %v819, %v889
  %v961 = vsel %vm44, %v821, %v891
  %v962 = vsel %vm45, %v823, %v893
  %v963 = vsel %vm46, %v825, %v895
  %v964 = vsel %vm47, %v827, %v897
  %v965 = vsel %vm48, %v829, %v899
  %v966 = vsel %vm49, %v831, %v901
  %v967 = vsel %vm50, %v833, %v903
  %v968 = vsel %vm51, %v835, %v905
  %v969 = vsel %vm52, %v837, %v907
  %v970 = vsel %vm53, %v839, %v909
  %v971 = vsel %vm54, %v841, %v911
  %v972 = vsel %vm55, %v843, %v913
  %v973 = vsel %vm56, %v845, %v915
  %v974 = vsel %vm57, %v847, %v917
  %v975 = vsel %vm58, %v849, %v919
  %v976 = vsel %vm59, %v851, %v921
  %v977 = vsel %vm60, %v853, %v923
  %v978 = vsel %vm61, %v879, %v925
  %v979 = vsel %vm62, 0.0, %v927
  %v980 = vsel %vm63, 0.0, %v929
  %v981 = vadd.f32 %v635, %v956
  %v982 = vadd.f32 %v636, %v957
  %v983 = vadd.f32 %v637, %v958
  %v984 = vadd.f32 %v638, %v959
  %v985 = vadd.f32 %v639, %v960
  %v986 = vadd.f32 %v640, %v961
  %v987 = vadd.f32 %v641, %v962
  %v988 = vadd.f32 %v642, %v963
  %v989 = vadd.f32 %v643, %v964
  %v990 = vadd.f32 %v644, %v965
  %v991 = vadd.f32 %v645, %v966
  %v992 = vadd.f32 %v646, %v967
  %v993 = vadd.f32 %v647, %v968
  %v994 = vadd.f32 %v648, %v969
  %v995 = vadd.f32 %v649, %v970
  %v996 = vadd.f32 %v650, %v971
  %v997 = vadd.f32 %v651, %v972
  %v998 = vadd.f32 %v652, %v973
  %v999 = vadd.f32 %v653, %v974
  %v1000 = vadd.f32 %v654, %v975
  %v1001 = vadd.f32 %v655, %v976
  %v1002 = vadd.f32 %v656, %v977
  %v1003 = vadd.f32 %v657, %v978
  %v1004 = vadd.f32 %v658, %v979
  %v1005 = vadd.f32 %v659, %v980
  %vm1029 = vcmask 1045504
  %v1030 = vrot.slane %v981, 2
  %v1031 = vrot.slane %v982, 2
  %v1032 = vsel %vm1029, %v1030, %v1031
  %v1033 = vrot.slane %v983, 2
  %v1034 = vsel %vm1029, %v1031, %v1033
  %v1035 = vrot.slane %v984, 2
  %v1036 = vsel %vm1029, %v1033, %v1035
  %v1037 = vrot.slane %v985, 2
  %v1038 = vsel %vm1029, %v1035, %v1037
  %v1039 = vrot.slane %v986, 2
  %v1040 = vsel %vm1029, %v1037, %v1039
  %v1041 = vrot.slane %v987, 2
  %v1042 = vsel %vm1029, %v1039, %v1041
  %v1043 = vrot.slane %v988, 2
  %v1044 = vsel %vm1029, %v1041, %v1043
  %v1045 = vrot.slane %v989, 2
  %v1046 = vsel %vm1029, %v1043, %v1045
  %v1047 = vrot.slane %v990, 2
  %v1048 = vsel %vm1029, %v1045, %v1047
  %v1049 = vrot.slane %v991, 2
  %v1050 = vsel %vm1029, %v1047, %v1049
  %v1051 = vrot.slane %v992, 2
  %v1052 = vsel %vm1029, %v1049, %v1051
  %v1053 = vrot.slane %v993, 2
  %v1054 = vsel %vm1029, %v1051, %v1053
  %v1055 = vrot.slane %v994, 2
  %v1056 = vsel %vm1029, %v1053, %v1055
  %v1057 = vrot.slane %v995, 2
  %v1058 = vsel %vm1029, %v1055, %v1057
  %v1059 = vrot.slane %v996, 2
  %v1060 = vsel %vm1029, %v1057, %v1059
  %v1061 = vrot.slane %v997, 2
  %v1062 = vsel %vm1029, %v1059, %v1061
  %v1063 = vrot.slane %v998, 2
  %v1064 = vsel %vm1029, %v1061, %v1063
  %v1065 = vrot.slane %v999, 2
  %v1066 = vsel %vm1029, %v1063, %v1065
  %v1067 = vrot.slane %v1000, 2
  %v1068 = vsel %vm1029, %v1065, %v1067
  %v1069 = vrot.slane %v1001, 2
  %v1070 = vsel %vm1029, %v1067, %v1069
  %v1071 = vrot.slane %v1002, 2
  %v1072 = vsel %vm1029, %v1069, %v1071
  %v1073 = vrot.slane %v1003, 2
  %v1074 = vsel %vm1029, %v1071, %v1073
  %v1099 = vsel %vm1029, 0.0, %v1030
  %1100 = vst [vmem:[#allocation2] sm:$0xff] 0.0
  %1101 = vst [vmem:[#allocation2 + $0x48] sm:$0xff] %v1099
  %1102 = vst [vmem:[#allocation2 + $0x90] sm:$0xff] %v1032
  %1103 = vst [vmem:[#allocation2 + $0xd8] sm:$0xff] %v1034
  %1104 = vst [vmem:[#allocation2 + $0x120] sm:$0xff] %v1036
  %1105 = vst [vmem:[#allocation2 + $0x168] sm:$0xff] %v1038
  %1106 = vst [vmem:[#allocation2 + $0x1b0] sm:$0xff] %v1040
  %1107 = vst [vmem:[#allocation2 + $0x1f8] sm:$0xff] %v1042
  %1108 = vst [vmem:[#allocation2 + $0x240] sm:$0xff] %v1044
  %1109 = vst [vmem:[#allocation2 + $0x288] sm:$0xff] %v1046
  %1110 = vst [vmem:[#allocation2 + $0x2d0] sm:$0xff] %v1048
  %1111 = vst [vmem:[#allocation2 + $0x318] sm:$0xff] %v1050
  %1112 = vst [vmem:[#allocation2 + $0x360] sm:$0xff] %v1052
  %1113 = vst [vmem:[#allocation2 + $0x3a8] sm:$0xff] %v1054
  %1114 = vst [vmem:[#allocation2 + $0x3f0] sm:$0xff] %v1056
  %1115 = vst [vmem:[#allocation2 + $0x438] sm:$0xff] %v1058
  %1116 = vst [vmem:[#allocation2 + $0x480] sm:$0xff] %v1060
  %1117 = vst [vmem:[#allocation2 + $0x4c8] sm:$0xff] %v1062
  %1118 = vst [vmem:[#allocation2 + $0x510] sm:$0xff] %v1064
  %1119 = vst [vmem:[#allocation2 + $0x558] sm:$0xff] %v1066
  %1120 = vst [vmem:[#allocation2 + $0x5a0] sm:$0xff] %v1068
  %1121 = vst [vmem:[#allocation2 + $0x5e8] sm:$0xff] %v1070
  %1122 = vst [vmem:[#allocation2 + $0x630] sm:$0xff] %v1072
  %1123 = vst [vmem:[#allocation2 + $0x678] sm:$0xff] %v1074
  %1124 = vst [vmem:[#allocation2 + $0x6c0] sm:$0xf] %v1073
  %1125 = vst [vmem:[#allocation2 + $0x18] sm:$0xff] %v981
  %1126 = vst [vmem:[#allocation2 + $0x60] sm:$0xff] %v982
  %1127 = vst [vmem:[#allocation2 + $0xa8] sm:$0xff] %v983
  %1128 = vst [vmem:[#allocation2 + $0xf0] sm:$0xff] %v984
  %1129 = vst [vmem:[#allocation2 + $0x138] sm:$0xff] %v985
  %1130 = vst [vmem:[#allocation2 + $0x180] sm:$0xff] %v986
  %1131 = vst [vmem:[#allocation2 + $0x1c8] sm:$0xff] %v987
  %1132 = vst [vmem:[#allocation2 + $0x210] sm:$0xff] %v988
  %1133 = vst [vmem:[#allocation2 + $0x258] sm:$0xff] %v989
  %1134 = vst [vmem:[#allocation2 + $0x2a0] sm:$0xff] %v990
  %1135 = vst [vmem:[#allocation2 + $0x2e8] sm:$0xff] %v991
  %1136 = vst [vmem:[#allocation2 + $0x330] sm:$0xff] %v992
  %1137 = vst [vmem:[#allocation2 + $0x378] sm:$0xff] %v993
  %1138 = vst [vmem:[#allocation2 + $0x3c0] sm:$0xff] %v994
  %1139 = vst [vmem:[#allocation2 + $0x408] sm:$0xff] %v995
  %1140 = vst [vmem:[#allocation2 + $0x450] sm:$0xff] %v996
  %1141 = vst [vmem:[#allocation2 + $0x498] sm:$0xff] %v997
  %1142 = vst [vmem:[#allocation2 + $0x4e0] sm:$0xff] %v998
  %1143 = vst [vmem:[#allocation2 + $0x528] sm:$0xff] %v999
  %1144 = vst [vmem:[#allocation2 + $0x570] sm:$0xff] %v1000
  %1145 = vst [vmem:[#allocation2 + $0x5b8] sm:$0xff] %v1001
  %1146 = vst [vmem:[#allocation2 + $0x600] sm:$0xff] %v1002
  %1147 = vst [vmem:[#allocation2 + $0x648] sm:$0xff] %v1003
  %1148 = vst [vmem:[#allocation2 + $0x690] sm:$0xff] %v1004
  %1149 = vst [vmem:[#allocation2 + $0x6d8] sm:$0xf] %v1005
  %vm1152 = vcmask 1041408
  %v1153 = vrot.slane %v982, 6
  %v1154 = vrot.slane %v983, 6
  %v1155 = vsel %vm1152, %v1153, %v1154
  %v1156 = vrot.slane %v984, 6
  %v1157 = vsel %vm1152, %v1154, %v1156
  %v1158 = vrot.slane %v985, 6
  %v1159 = vsel %vm1152, %v1156, %v1158
  %v1160 = vrot.slane %v986, 6
  %v1161 = vsel %vm1152, %v1158, %v1160
  %v1162 = vrot.slane %v987, 6
  %v1163 = vsel %vm1152, %v1160, %v1162
  %v1164 = vrot.slane %v988, 6
  %v1165 = vsel %vm1152, %v1162, %v1164
  %v1166 = vrot.slane %v989, 6
  %v1167 = vsel %vm1152, %v1164, %v1166
  %v1168 = vrot.slane %v990, 6
  %v1169 = vsel %vm1152, %v1166, %v1168
  %v1170 = vrot.slane %v991, 6
  %v1171 = vsel %vm1152, %v1168, %v1170
  %v1172 = vrot.slane %v992, 6
  %v1173 = vsel %vm1152, %v1170, %v1172
  %v1174 = vrot.slane %v993, 6
  %v1175 = vsel %vm1152, %v1172, %v1174
  %v1176 = vrot.slane %v994, 6
  %v1177 = vsel %vm1152, %v1174, %v1176
  %v1178 = vrot.slane %v995, 6
  %v1179 = vsel %vm1152, %v1176, %v1178
  %v1180 = vrot.slane %v996, 6
  %v1181 = vsel %vm1152, %v1178, %v1180
  %v1182 = vrot.slane %v997, 6
  %v1183 = vsel %vm1152, %v1180, %v1182
  %v1184 = vrot.slane %v998, 6
  %v1185 = vsel %vm1152, %v1182, %v1184
  %v1186 = vrot.slane %v999, 6
  %v1187 = vsel %vm1152, %v1184, %v1186
  %v1188 = vrot.slane %v1000, 6
  %v1189 = vsel %vm1152, %v1186, %v1188
  %v1190 = vrot.slane %v1001, 6
  %v1191 = vsel %vm1152, %v1188, %v1190
  %v1192 = vrot.slane %v1002, 6
  %v1193 = vsel %vm1152, %v1190, %v1192
  %v1194 = vrot.slane %v1003, 6
  %v1195 = vsel %vm1152, %v1192, %v1194
  %v1196 = vrot.slane %v1004, 6
  %v1197 = vsel %vm1152, %v1194, %v1196
  %v1198 = vrot.slane %v1005, 6
  %v1199 = vsel %vm1152, %v1196, %v1198
  %v1223 = vsel %vm1029, %v1199, 0.0
  %1224 = vst [vmem:[#allocation2 + $0x30] sm:$0xff] %v1155
  %1225 = vst [vmem:[#allocation2 + $0x78] sm:$0xff] %v1157
  %1226 = vst [vmem:[#allocation2 + $0xc0] sm:$0xff] %v1159
  %1227 = vst [vmem:[#allocation2 + $0x108] sm:$0xff] %v1161
  %1228 = vst [vmem:[#allocation2 + $0x150] sm:$0xff] %v1163
  %1229 = vst [vmem:[#allocation2 + $0x198] sm:$0xff] %v1165
  %1230 = vst [vmem:[#allocation2 + $0x1e0] sm:$0xff] %v1167
  %1231 = vst [vmem:[#allocation2 + $0x228] sm:$0xff] %v1169
  %1232 = vst [vmem:[#allocation2 + $0x270] sm:$0xff] %v1171
  %1233 = vst [vmem:[#allocation2 + $0x2b8] sm:$0xff] %v1173
  %1234 = vst [vmem:[#allocation2 + $0x300] sm:$0xff] %v1175
  %1235 = vst [vmem:[#allocation2 + $0x348] sm:$0xff] %v1177
  %1236 = vst [vmem:[#allocation2 + $0x390] sm:$0xff] %v1179
  %1237 = vst [vmem:[#allocation2 + $0x3d8] sm:$0xff] %v1181
  %1238 = vst [vmem:[#allocation2 + $0x420] sm:$0xff] %v1183
  %1239 = vst [vmem:[#allocation2 + $0x468] sm:$0xff] %v1185
  %1240 = vst [vmem:[#allocation2 + $0x4b0] sm:$0xff] %v1187
  %1241 = vst [vmem:[#allocation2 + $0x4f8] sm:$0xff] %v1189
  %1242 = vst [vmem:[#allocation2 + $0x540] sm:$0xff] %v1191
  %1243 = vst [vmem:[#allocation2 + $0x588] sm:$0xff] %v1193
  %1244 = vst [vmem:[#allocation2 + $0x5d0] sm:$0xff] %v1195
  %1245 = vst [vmem:[#allocation2 + $0x618] sm:$0xff] %v1197
  %1246 = vst [vmem:[#allocation2 + $0x660] sm:$0xff] %v1223
  %1247 = vst [vmem:[#allocation2 + $0x6a8] sm:$0xff] 0.0
  %1248 = vst [vmem:[#allocation2 + $0x6f0] sm:$0xf] 0.0
  %v1249 = vrot.slane %v511, 5
  %v1250 = vrot.slane %v512, 5
  %v1251 = vsel %vm164, %v1249, %v1250
  %v1252 = vrot.slane %v513, 5
  %v1253 = vsel %vm164, %v1250, %v1252
  %v1254 = vrot.slane %v514, 5
  %v1255 = vsel %vm164, %v1252, %v1254
  %v1256 = vrot.slane %v515, 5
  %v1257 = vsel %vm164, %v1254, %v1256
  %v1258 = vrot.slane %v516, 5
  %v1259 = vsel %vm164, %v1256, %v1258
  %v1260 = vrot.slane %v517, 5
  %v1261 = vsel %vm164, %v1258, %v1260
  %v1262 = vrot.slane %v518, 5
  %v1263 = vsel %vm164, %v1260, %v1262
  %v1264 = vrot.slane %v519, 5
  %v1265 = vsel %vm164, %v1262, %v1264
  %v1266 = vrot.slane %v520, 5
  %v1267 = vsel %vm164, %v1264, %v1266
  %v1268 = vrot.slane %v521, 5
  %v1269 = vsel %vm164, %v1266, %v1268
  %v1270 = vrot.slane %v522, 5
  %v1271 = vsel %vm164, %v1268, %v1270
  %v1272 = vrot.slane %v523, 5
  %v1273 = vsel %vm164, %v1270, %v1272
  %v1274 = vrot.slane %v524, 5
  %v1275 = vsel %vm164, %v1272, %v1274
  %v1276 = vrot.slane %v525, 5
  %v1277 = vsel %vm164, %v1274, %v1276
  %v1278 = vrot.slane %v526, 5
  %v1279 = vsel %vm164, %v1276, %v1278
  %v1280 = vrot.slane %v527, 5
  %v1281 = vsel %vm164, %v1278, %v1280
  %v1282 = vrot.slane %v528, 5
  %v1283 = vsel %vm164, %v1280, %v1282
  %v1284 = vrot.slane %v529, 5
  %v1285 = vsel %vm164, %v1282, %v1284
  %v1286 = vrot.slane %v530, 5
  %v1287 = vsel %vm164, %v1284, %v1286
  %v1288 = vrot.slane %v531, 5
  %v1289 = vsel %vm164, %v1286, %v1288
  %v1290 = vrot.slane %v532, 5
  %v1291 = vsel %vm164, %v1288, %v1290
  %v1292 = vrot.slane %v533, 5
  %v1293 = vsel %vm164, %v1290, %v1292
  %v1294 = vrot.slane %v534, 5
  %v1295 = vsel %vm164, %v1292, %v1294
  %v1319 = vsel %vm235, %v1295, 0.0
  %v1320 = vsel %vm39, %v1251, %v759
  %v1321 = vsel %vm40, %v1253, %v687
  %v1322 = vsel %vm41, %v1255, %v689
  %v1323 = vsel %vm42, %v1257, %v691
  %v1324 = vsel %vm43, %v1259, %v693
  %v1325 = vsel %vm44, %v1261, %v695
  %v1326 = vsel %vm45, %v1263, %v697
  %v1327 = vsel %vm46, %v1265, %v699
  %v1328 = vsel %vm47, %v1267, %v701
  %v1329 = vsel %vm48, %v1269, %v703
  %v1330 = vsel %vm49, %v1271, %v705
  %v1331 = vsel %vm50, %v1273, %v707
  %v1332 = vsel %vm51, %v1275, %v709
  %v1333 = vsel %vm52, %v1277, %v711
  %v1334 = vsel %vm53, %v1279, %v713
  %v1335 = vsel %vm54, %v1281, %v715
  %v1336 = vsel %vm55, %v1283, %v717
  %v1337 = vsel %vm56, %v1285, %v719
  %v1338 = vsel %vm57, %v1287, %v721
  %v1339 = vsel %vm58, %v1289, %v723
  %v1340 = vsel %vm59, %v1291, %v725
  %v1341 = vsel %vm60, %v1293, %v727
  %v1342 = vsel %vm61, %v1319, %v729
  %v1343 = vadd.f32 %v314, %v1320
  %v1344 = vadd.f32 %v315, %v1321
  %v1345 = vadd.f32 %v316, %v1322
  %v1346 = vadd.f32 %v317, %v1323
  %v1347 = vadd.f32 %v318, %v1324
  %v1348 = vadd.f32 %v319, %v1325
  %v1349 = vadd.f32 %v320, %v1326
  %v1350 = vadd.f32 %v321, %v1327
  %v1351 = vadd.f32 %v322, %v1328
  %v1352 = vadd.f32 %v323, %v1329
  %v1353 = vadd.f32 %v324, %v1330
  %v1354 = vadd.f32 %v325, %v1331
  %v1355 = vadd.f32 %v326, %v1332
  %v1356 = vadd.f32 %v327, %v1333
  %v1357 = vadd.f32 %v328, %v1334
  %v1358 = vadd.f32 %v329, %v1335
  %v1359 = vadd.f32 %v330, %v1336
  %v1360 = vadd.f32 %v331, %v1337
  %v1361 = vadd.f32 %v332, %v1338
  %v1362 = vadd.f32 %v333, %v1339
  %v1363 = vadd.f32 %v334, %v1340
  %v1364 = vadd.f32 %v335, %v1341
  %v1365 = vadd.f32 %v336, %v1342
  %v1366 = vadd.f32 %v337, %v783
  %v1367 = vadd.f32 %v338, %v784
  %v1391 = vrot.slane %v1343, 2
  %v1392 = vrot.slane %v1344, 2
  %v1393 = vsel %vm1029, %v1391, %v1392
  %v1394 = vrot.slane %v1345, 2
  %v1395 = vsel %vm1029, %v1392, %v1394
  %v1396 = vrot.slane %v1346, 2
  %v1397 = vsel %vm1029, %v1394, %v1396
  %v1398 = vrot.slane %v1347, 2
  %v1399 = vsel %vm1029, %v1396, %v1398
  %v1400 = vrot.slane %v1348, 2
  %v1401 = vsel %vm1029, %v1398, %v1400
  %v1402 = vrot.slane %v1349, 2
  %v1403 = vsel %vm1029, %v1400, %v1402
  %v1404 = vrot.slane %v1350, 2
  %v1405 = vsel %vm1029, %v1402, %v1404
  %v1406 = vrot.slane %v1351, 2
  %v1407 = vsel %vm1029, %v1404, %v1406
  %v1408 = vrot.slane %v1352, 2
  %v1409 = vsel %vm1029, %v1406, %v1408
  %v1410 = vrot.slane %v1353, 2
  %v1411 = vsel %vm1029, %v1408, %v1410
  %v1412 = vrot.slane %v1354, 2
  %v1413 = vsel %vm1029, %v1410, %v1412
  %v1414 = vrot.slane %v1355, 2
  %v1415 = vsel %vm1029, %v1412, %v1414
  %v1416 = vrot.slane %v1356, 2
  %v1417 = vsel %vm1029, %v1414, %v1416
  %v1418 = vrot.slane %v1357, 2
  %v1419 = vsel %vm1029, %v1416, %v1418
  %v1420 = vrot.slane %v1358, 2
  %v1421 = vsel %vm1029, %v1418, %v1420
  %v1422 = vrot.slane %v1359, 2
  %v1423 = vsel %vm1029, %v1420, %v1422
  %v1424 = vrot.slane %v1360, 2
  %v1425 = vsel %vm1029, %v1422, %v1424
  %v1426 = vrot.slane %v1361, 2
  %v1427 = vsel %vm1029, %v1424, %v1426
  %v1428 = vrot.slane %v1362, 2
  %v1429 = vsel %vm1029, %v1426, %v1428
  %v1430 = vrot.slane %v1363, 2
  %v1431 = vsel %vm1029, %v1428, %v1430
  %v1432 = vrot.slane %v1364, 2
  %v1433 = vsel %vm1029, %v1430, %v1432
  %v1434 = vrot.slane %v1365, 2
  %v1435 = vsel %vm1029, %v1432, %v1434
  %v1460 = vsel %vm1029, 0.0, %v1391
  %1461 = vst [vmem:[#allocation2 + $0x8] sm:$0xff] 0.0
  %1462 = vst [vmem:[#allocation2 + $0x50] sm:$0xff] %v1460
  %1463 = vst [vmem:[#allocation2 + $0x98] sm:$0xff] %v1393
  %1464 = vst [vmem:[#allocation2 + $0xe0] sm:$0xff] %v1395
  %1465 = vst [vmem:[#allocation2 + $0x128] sm:$0xff] %v1397
  %1466 = vst [vmem:[#allocation2 + $0x170] sm:$0xff] %v1399
  %1467 = vst [vmem:[#allocation2 + $0x1b8] sm:$0xff] %v1401
  %1468 = vst [vmem:[#allocation2 + $0x200] sm:$0xff] %v1403
  %1469 = vst [vmem:[#allocation2 + $0x248] sm:$0xff] %v1405
  %1470 = vst [vmem:[#allocation2 + $0x290] sm:$0xff] %v1407
  %1471 = vst [vmem:[#allocation2 + $0x2d8] sm:$0xff] %v1409
  %1472 = vst [vmem:[#allocation2 + $0x320] sm:$0xff] %v1411
  %1473 = vst [vmem:[#allocation2 + $0x368] sm:$0xff] %v1413
  %1474 = vst [vmem:[#allocation2 + $0x3b0] sm:$0xff] %v1415
  %1475 = vst [vmem:[#allocation2 + $0x3f8] sm:$0xff] %v1417
  %1476 = vst [vmem:[#allocation2 + $0x440] sm:$0xff] %v1419
  %1477 = vst [vmem:[#allocation2 + $0x488] sm:$0xff] %v1421
  %1478 = vst [vmem:[#allocation2 + $0x4d0] sm:$0xff] %v1423
  %1479 = vst [vmem:[#allocation2 + $0x518] sm:$0xff] %v1425
  %1480 = vst [vmem:[#allocation2 + $0x560] sm:$0xff] %v1427
  %1481 = vst [vmem:[#allocation2 + $0x5a8] sm:$0xff] %v1429
  %1482 = vst [vmem:[#allocation2 + $0x5f0] sm:$0xff] %v1431
  %1483 = vst [vmem:[#allocation2 + $0x638] sm:$0xff] %v1433
  %1484 = vst [vmem:[#allocation2 + $0x680] sm:$0xff] %v1435
  %1485 = vst [vmem:[#allocation2 + $0x6c8] sm:$0xf] %v1434
  %1486 = vst [vmem:[#allocation2 + $0x20] sm:$0xff] %v1343
  %1487 = vst [vmem:[#allocation2 + $0x68] sm:$0xff] %v1344
  %1488 = vst [vmem:[#allocation2 + $0xb0] sm:$0xff] %v1345
  %1489 = vst [vmem:[#allocation2 + $0xf8] sm:$0xff] %v1346
  %1490 = vst [vmem:[#allocation2 + $0x140] sm:$0xff] %v1347
  %1491 = vst [vmem:[#allocation2 + $0x188] sm:$0xff] %v1348
  %1492 = vst [vmem:[#allocation2 + $0x1d0] sm:$0xff] %v1349
  %1493 = vst [vmem:[#allocation2 + $0x218] sm:$0xff] %v1350
  %1494 = vst [vmem:[#allocation2 + $0x260] sm:$0xff] %v1351
  %1495 = vst [vmem:[#allocation2 + $0x2a8] sm:$0xff] %v1352
  %1496 = vst [vmem:[#allocation2 + $0x2f0] sm:$0xff] %v1353
  %1497 = vst [vmem:[#allocation2 + $0x338] sm:$0xff] %v1354
  %1498 = vst [vmem:[#allocation2 + $0x380] sm:$0xff] %v1355
  %1499 = vst [vmem:[#allocation2 + $0x3c8] sm:$0xff] %v1356
  %1500 = vst [vmem:[#allocation2 + $0x410] sm:$0xff] %v1357
  %1501 = vst [vmem:[#allocation2 + $0x458] sm:$0xff] %v1358
  %1502 = vst [vmem:[#allocation2 + $0x4a0] sm:$0xff] %v1359
  %1503 = vst [vmem:[#allocation2 + $0x4e8] sm:$0xff] %v1360
  %1504 = vst [vmem:[#allocation2 + $0x530] sm:$0xff] %v1361
  %1505 = vst [vmem:[#allocation2 + $0x578] sm:$0xff] %v1362
  %1506 = vst [vmem:[#allocation2 + $0x5c0] sm:$0xff] %v1363
  %1507 = vst [vmem:[#allocation2 + $0x608] sm:$0xff] %v1364
  %1508 = vst [vmem:[#allocation2 + $0x650] sm:$0xff] %v1365
  %1509 = vst [vmem:[#allocation2 + $0x698] sm:$0xff] %v1366
  %1510 = vst [vmem:[#allocation2 + $0x6e0] sm:$0xf] %v1367
  %v1513 = vrot.slane %v1344, 6
  %v1514 = vrot.slane %v1345, 6
  %v1515 = vsel %vm1152, %v1513, %v1514
  %v1516 = vrot.slane %v1346, 6
  %v1517 = vsel %vm1152, %v1514, %v1516
  %v1518 = vrot.slane %v1347, 6
  %v1519 = vsel %vm1152, %v1516, %v1518
  %v1520 = vrot.slane %v1348, 6
  %v1521 = vsel %vm1152, %v1518, %v1520
  %v1522 = vrot.slane %v1349, 6
  %v1523 = vsel %vm1152, %v1520, %v1522
  %v1524 = vrot.slane %v1350, 6
  %v1525 = vsel %vm1152, %v1522, %v1524
  %v1526 = vrot.slane %v1351, 6
  %v1527 = vsel %vm1152, %v1524, %v1526
  %v1528 = vrot.slane %v1352, 6
  %v1529 = vsel %vm1152, %v1526, %v1528
  %v1530 = vrot.slane %v1353, 6
  %v1531 = vsel %vm1152, %v1528, %v1530
  %v1532 = vrot.slane %v1354, 6
  %v1533 = vsel %vm1152, %v1530, %v1532
  %v1534 = vrot.slane %v1355, 6
  %v1535 = vsel %vm1152, %v1532, %v1534
  %v1536 = vrot.slane %v1356, 6
  %v1537 = vsel %vm1152, %v1534, %v1536
  %v1538 = vrot.slane %v1357, 6
  %v1539 = vsel %vm1152, %v1536, %v1538
  %v1540 = vrot.slane %v1358, 6
  %v1541 = vsel %vm1152, %v1538, %v1540
  %v1542 = vrot.slane %v1359, 6
  %v1543 = vsel %vm1152, %v1540, %v1542
  %v1544 = vrot.slane %v1360, 6
  %v1545 = vsel %vm1152, %v1542, %v1544
  %v1546 = vrot.slane %v1361, 6
  %v1547 = vsel %vm1152, %v1544, %v1546
  %v1548 = vrot.slane %v1362, 6
  %v1549 = vsel %vm1152, %v1546, %v1548
  %v1550 = vrot.slane %v1363, 6
  %v1551 = vsel %vm1152, %v1548, %v1550
  %v1552 = vrot.slane %v1364, 6
  %v1553 = vsel %vm1152, %v1550, %v1552
  %v1554 = vrot.slane %v1365, 6
  %v1555 = vsel %vm1152, %v1552, %v1554
  %v1556 = vrot.slane %v1366, 6
  %v1557 = vsel %vm1152, %v1554, %v1556
  %v1558 = vrot.slane %v1367, 6
  %v1559 = vsel %vm1152, %v1556, %v1558
  %v1583 = vsel %vm1029, %v1559, 0.0
  %1584 = vst [vmem:[#allocation2 + $0x38] sm:$0xff] %v1515
  %1585 = vst [vmem:[#allocation2 + $0x80] sm:$0xff] %v1517
  %1586 = vst [vmem:[#allocation2 + $0xc8] sm:$0xff] %v1519
  %1587 = vst [vmem:[#allocation2 + $0x110] sm:$0xff] %v1521
  %1588 = vst [vmem:[#allocation2 + $0x158] sm:$0xff] %v1523
  %1589 = vst [vmem:[#allocation2 + $0x1a0] sm:$0xff] %v1525
  %1590 = vst [vmem:[#allocation2 + $0x1e8] sm:$0xff] %v1527
  %1591 = vst [vmem:[#allocation2 + $0x230] sm:$0xff] %v1529
  %1592 = vst [vmem:[#allocation2 + $0x278] sm:$0xff] %v1531
  %1593 = vst [vmem:[#allocation2 + $0x2c0] sm:$0xff] %v1533
  %1594 = vst [vmem:[#allocation2 + $0x308] sm:$0xff] %v1535
  %1595 = vst [vmem:[#allocation2 + $0x350] sm:$0xff] %v1537
  %1596 = vst [vmem:[#allocation2 + $0x398] sm:$0xff] %v1539
  %1597 = vst [vmem:[#allocation2 + $0x3e0] sm:$0xff] %v1541
  %1598 = vst [vmem:[#allocation2 + $0x428] sm:$0xff] %v1543
  %1599 = vst [vmem:[#allocation2 + $0x470] sm:$0xff] %v1545
  %1600 = vst [vmem:[#allocation2 + $0x4b8] sm:$0xff] %v1547
  %1601 = vst [vmem:[#allocation2 + $0x500] sm:$0xff] %v1549
  %1602 = vst [vmem:[#allocation2 + $0x548] sm:$0xff] %v1551
  %1603 = vst [vmem:[#allocation2 + $0x590] sm:$0xff] %v1553
  %1604 = vst [vmem:[#allocation2 + $0x5d8] sm:$0xff] %v1555
  %1605 = vst [vmem:[#allocation2 + $0x620] sm:$0xff] %v1557
  %1606 = vst [vmem:[#allocation2 + $0x668] sm:$0xff] %v1583
  %1607 = vst [vmem:[#allocation2 + $0x6b0] sm:$0xff] 0.0
  %1608 = vst [vmem:[#allocation2 + $0x6f8] sm:$0xf] 0.0
  %v1609 = vrot.slane %v314, 1
  %v1610 = vrot.slane %v315, 1
  %v1611 = vsel %vm235, %v1609, %v1610
  %v1612 = vrot.slane %v316, 1
  %v1613 = vsel %vm235, %v1610, %v1612
  %v1614 = vrot.slane %v317, 1
  %v1615 = vsel %vm235, %v1612, %v1614
  %v1616 = vrot.slane %v318, 1
  %v1617 = vsel %vm235, %v1614, %v1616
  %v1618 = vrot.slane %v319, 1
  %v1619 = vsel %vm235, %v1616, %v1618
  %v1620 = vrot.slane %v320, 1
  %v1621 = vsel %vm235, %v1618, %v1620
  %v1622 = vrot.slane %v321, 1
  %v1623 = vsel %vm235, %v1620, %v1622
  %v1624 = vrot.slane %v322, 1
  %v1625 = vsel %vm235, %v1622, %v1624
  %v1626 = vrot.slane %v323, 1
  %v1627 = vsel %vm235, %v1624, %v1626
  %v1628 = vrot.slane %v324, 1
  %v1629 = vsel %vm235, %v1626, %v1628
  %v1630 = vrot.slane %v325, 1
  %v1631 = vsel %vm235, %v1628, %v1630
  %v1632 = vrot.slane %v326, 1
  %v1633 = vsel %vm235, %v1630, %v1632
  %v1634 = vrot.slane %v327, 1
  %v1635 = vsel %vm235, %v1632, %v1634
  %v1636 = vrot.slane %v328, 1
  %v1637 = vsel %vm235, %v1634, %v1636
  %v1638 = vrot.slane %v329, 1
  %v1639 = vsel %vm235, %v1636, %v1638
  %v1640 = vrot.slane %v330, 1
  %v1641 = vsel %vm235, %v1638, %v1640
  %v1642 = vrot.slane %v331, 1
  %v1643 = vsel %vm235, %v1640, %v1642
  %v1644 = vrot.slane %v332, 1
  %v1645 = vsel %vm235, %v1642, %v1644
  %v1646 = vrot.slane %v333, 1
  %v1647 = vsel %vm235, %v1644, %v1646
  %v1648 = vrot.slane %v334, 1
  %v1649 = vsel %vm235, %v1646, %v1648
  %v1650 = vrot.slane %v335, 1
  %v1651 = vsel %vm235, %v1648, %v1650
  %v1652 = vrot.slane %v336, 1
  %v1653 = vsel %vm235, %v1650, %v1652
  %v1654 = vrot.slane %v337, 1
  %v1655 = vsel %vm235, %v1652, %v1654
  %v1656 = vrot.slane %v338, 1
  %v1657 = vsel %vm235, %v1654, %v1656
  %v1683 = vsel %vm164, %v1656, 0.0
  %v1684 = vsel %vm64, 0.0, %v1611
  %v1685 = vsel %vm65, 0.0, %v1613
  %v1686 = vsel %vm66, 0.0, %v1615
  %v1687 = vsel %vm67, 0.0, %v1617
  %v1688 = vsel %vm68, 0.0, %v1619
  %v1689 = vsel %vm69, 0.0, %v1621
  %v1690 = vsel %vm70, 0.0, %v1623
  %v1691 = vsel %vm71, 0.0, %v1625
  %v1692 = vsel %vm72, 0.0, %v1627
  %v1693 = vsel %vm73, 0.0, %v1629
  %v1694 = vsel %vm74, 0.0, %v1631
  %v1695 = vsel %vm75, 0.0, %v1633
  %v1696 = vsel %vm76, 0.0, %v1635
  %v1697 = vsel %vm77, 0.0, %v1637
  %v1698 = vsel %vm78, 0.0, %v1639
  %v1699 = vsel %vm79, 0.0, %v1641
  %v1700 = vsel %vm80, 0.0, %v1643
  %v1701 = vsel %vm81, 0.0, %v1645
  %v1702 = vsel %vm82, 0.0, %v1647
  %v1703 = vsel %vm83, 0.0, %v1649
  %v1704 = vsel %vm84, 0.0, %v1651
  %v1705 = vsel %vm85, 0.0, %v1653
  %v1706 = vsel %vm86, 0.0, %v1655
  %v1707 = vsel %vm87, 0.0, %v1657
  %v1708 = vsel %vm88, 0.0, %v1683
  %v1709 = vrot.slane %v510, 1
  %v1710 = vrot.slane %v511, 1
  %v1711 = vsel %vm235, %v1709, %v1710
  %v1712 = vrot.slane %v512, 1
  %v1713 = vsel %vm235, %v1710, %v1712
  %v1714 = vrot.slane %v513, 1
  %v1715 = vsel %vm235, %v1712, %v1714
  %v1716 = vrot.slane %v514, 1
  %v1717 = vsel %vm235, %v1714, %v1716
  %v1718 = vrot.slane %v515, 1
  %v1719 = vsel %vm235, %v1716, %v1718
  %v1720 = vrot.slane %v516, 1
  %v1721 = vsel %vm235, %v1718, %v1720
  %v1722 = vrot.slane %v517, 1
  %v1723 = vsel %vm235, %v1720, %v1722
  %v1724 = vrot.slane %v518, 1
  %v1725 = vsel %vm235, %v1722, %v1724
  %v1726 = vrot.slane %v519, 1
  %v1727 = vsel %vm235, %v1724, %v1726
  %v1728 = vrot.slane %v520, 1
  %v1729 = vsel %vm235, %v1726, %v1728
  %v1730 = vrot.slane %v521, 1
  %v1731 = vsel %vm235, %v1728, %v1730
  %v1732 = vrot.slane %v522, 1
  %v1733 = vsel %vm235, %v1730, %v1732
  %v1734 = vrot.slane %v523, 1
  %v1735 = vsel %vm235, %v1732, %v1734
  %v1736 = vrot.slane %v524, 1
  %v1737 = vsel %vm235, %v1734, %v1736
  %v1738 = vrot.slane %v525, 1
  %v1739 = vsel %vm235, %v1736, %v1738
  %v1740 = vrot.slane %v526, 1
  %v1741 = vsel %vm235, %v1738, %v1740
  %v1742 = vrot.slane %v527, 1
  %v1743 = vsel %vm235, %v1740, %v1742
  %v1744 = vrot.slane %v528, 1
  %v1745 = vsel %vm235, %v1742, %v1744
  %v1746 = vrot.slane %v529, 1
  %v1747 = vsel %vm235, %v1744, %v1746
  %v1748 = vrot.slane %v530, 1
  %v1749 = vsel %vm235, %v1746, %v1748
  %v1750 = vrot.slane %v531, 1
  %v1751 = vsel %vm235, %v1748, %v1750
  %v1752 = vrot.slane %v532, 1
  %v1753 = vsel %vm235, %v1750, %v1752
  %v1754 = vrot.slane %v533, 1
  %v1755 = vsel %vm235, %v1752, %v1754
  %v1756 = vrot.slane %v534, 1
  %v1757 = vsel %vm235, %v1754, %v1756
  %v1783 = vsel %vm164, %v1756, 0.0
  %v1784 = vsel %vm64, 0.0, %v1711
  %v1785 = vsel %vm65, 0.0, %v1713
  %v1786 = vsel %vm66, 0.0, %v1715
  %v1787 = vsel %vm67, 0.0, %v1717
  %v1788 = vsel %vm68, 0.0, %v1719
  %v1789 = vsel %vm69, 0.0, %v1721
  %v1790 = vsel %vm70, 0.0, %v1723
  %v1791 = vsel %vm71, 0.0, %v1725
  %v1792 = vsel %vm72, 0.0, %v1727
  %v1793 = vsel %vm73, 0.0, %v1729
  %v1794 = vsel %vm74, 0.0, %v1731
  %v1795 = vsel %vm75, 0.0, %v1733
  %v1796 = vsel %vm76, 0.0, %v1735
  %v1797 = vsel %vm77, 0.0, %v1737
  %v1798 = vsel %vm78, 0.0, %v1739
  %v1799 = vsel %vm79, 0.0, %v1741
  %v1800 = vsel %vm80, 0.0, %v1743
  %v1801 = vsel %vm81, 0.0, %v1745
  %v1802 = vsel %vm82, 0.0, %v1747
  %v1803 = vsel %vm83, 0.0, %v1749
  %v1804 = vsel %vm84, 0.0, %v1751
  %v1805 = vsel %vm85, 0.0, %v1753
  %v1806 = vsel %vm86, 0.0, %v1755
  %v1807 = vsel %vm87, 0.0, %v1757
  %v1808 = vsel %vm88, 0.0, %v1783
  %v1833 = vrot.slane %v1785, 5
  %v1834 = vrot.slane %v1786, 5
  %v1835 = vsel %vm164, %v1833, %v1834
  %v1836 = vrot.slane %v1787, 5
  %v1837 = vsel %vm164, %v1834, %v1836
  %v1838 = vrot.slane %v1788, 5
  %v1839 = vsel %vm164, %v1836, %v1838
  %v1840 = vrot.slane %v1789, 5
  %v1841 = vsel %vm164, %v1838, %v1840
  %v1842 = vrot.slane %v1790, 5
  %v1843 = vsel %vm164, %v1840, %v1842
  %v1844 = vrot.slane %v1791, 5
  %v1845 = vsel %vm164, %v1842, %v1844
  %v1846 = vrot.slane %v1792, 5
  %v1847 = vsel %vm164, %v1844, %v1846
  %v1848 = vrot.slane %v1793, 5
  %v1849 = vsel %vm164, %v1846, %v1848
  %v1850 = vrot.slane %v1794, 5
  %v1851 = vsel %vm164, %v1848, %v1850
  %v1852 = vrot.slane %v1795, 5
  %v1853 = vsel %vm164, %v1850, %v1852
  %v1854 = vrot.slane %v1796, 5
  %v1855 = vsel %vm164, %v1852, %v1854
  %v1856 = vrot.slane %v1797, 5
  %v1857 = vsel %vm164, %v1854, %v1856
  %v1858 = vrot.slane %v1798, 5
  %v1859 = vsel %vm164, %v1856, %v1858
  %v1860 = vrot.slane %v1799, 5
  %v1861 = vsel %vm164, %v1858, %v1860
  %v1862 = vrot.slane %v1800, 5
  %v1863 = vsel %vm164, %v1860, %v1862
  %v1864 = vrot.slane %v1801, 5
  %v1865 = vsel %vm164, %v1862, %v1864
  %v1866 = vrot.slane %v1802, 5
  %v1867 = vsel %vm164, %v1864, %v1866
  %v1868 = vrot.slane %v1803, 5
  %v1869 = vsel %vm164, %v1866, %v1868
  %v1870 = vrot.slane %v1804, 5
  %v1871 = vsel %vm164, %v1868, %v1870
  %v1872 = vrot.slane %v1805, 5
  %v1873 = vsel %vm164, %v1870, %v1872
  %v1874 = vrot.slane %v1806, 5
  %v1875 = vsel %vm164, %v1872, %v1874
  %v1876 = vrot.slane %v1807, 5
  %v1877 = vsel %vm164, %v1874, %v1876
  %v1878 = vrot.slane %v1808, 5
  %v1879 = vsel %vm164, %v1876, %v1878
  %v1903 = vsel %vm235, %v1879, 0.0
  %v1905 = vrot.slane %v1784, 7
  %v1906 = vrot.slane %v1785, 7
  %v1907 = vsel %vm238, %v1905, %v1906
  %v1908 = vrot.slane %v1786, 7
  %v1909 = vsel %vm238, %v1906, %v1908
  %v1910 = vrot.slane %v1787, 7
  %v1911 = vsel %vm238, %v1908, %v1910
  %v1912 = vrot.slane %v1788, 7
  %v1913 = vsel %vm238, %v1910, %v1912
  %v1914 = vrot.slane %v1789, 7
  %v1915 = vsel %vm238, %v1912, %v1914
  %v1916 = vrot.slane %v1790, 7
  %v1917 = vsel %vm238, %v1914, %v1916
  %v1918 = vrot.slane %v1791, 7
  %v1919 = vsel %vm238, %v1916, %v1918
  %v1920 = vrot.slane %v1792, 7
  %v1921 = vsel %vm238, %v1918, %v1920
  %v1922 = vrot.slane %v1793, 7
  %v1923 = vsel %vm238, %v1920, %v1922
  %v1924 = vrot.slane %v1794, 7
  %v1925 = vsel %vm238, %v1922, %v1924
  %v1926 = vrot.slane %v1795, 7
  %v1927 = vsel %vm238, %v1924, %v1926
  %v1928 = vrot.slane %v1796, 7
  %v1929 = vsel %vm238, %v1926, %v1928
  %v1930 = vrot.slane %v1797, 7
  %v1931 = vsel %vm238, %v1928, %v1930
  %v1932 = vrot.slane %v1798, 7
  %v1933 = vsel %vm238, %v1930, %v1932
  %v1934 = vrot.slane %v1799, 7
  %v1935 = vsel %vm238, %v1932, %v1934
  %v1936 = vrot.slane %v1800, 7
  %v1937 = vsel %vm238, %v1934, %v1936
  %v1938 = vrot.slane %v1801, 7
  %v1939 = vsel %vm238, %v1936, %v1938
  %v1940 = vrot.slane %v1802, 7
  %v1941 = vsel %vm238, %v1938, %v1940
  %v1942 = vrot.slane %v1803, 7
  %v1943 = vsel %vm238, %v1940, %v1942
  %v1944 = vrot.slane %v1804, 7
  %v1945 = vsel %vm238, %v1942, %v1944
  %v1946 = vrot.slane %v1805, 7
  %v1947 = vsel %vm238, %v1944, %v1946
  %v1948 = vrot.slane %v1806, 7
  %v1949 = vsel %vm238, %v1946, %v1948
  %v1950 = vrot.slane %v1807, 7
  %v1951 = vsel %vm238, %v1948, %v1950
  %v1952 = vrot.slane %v1808, 7
  %v1953 = vsel %vm238, %v1950, %v1952
  %v1979 = vsel %vm238, 0.0, %v1905
  %v1980 = vsel %vm39, %v1835, %v1979
  %v1981 = vsel %vm40, %v1837, %v1907
  %v1982 = vsel %vm41, %v1839, %v1909
  %v1983 = vsel %vm42, %v1841, %v1911
  %v1984 = vsel %vm43, %v1843, %v1913
  %v1985 = vsel %vm44, %v1845, %v1915
  %v1986 = vsel %vm45, %v1847, %v1917
  %v1987 = vsel %vm46, %v1849, %v1919
  %v1988 = vsel %vm47, %v1851, %v1921
  %v1989 = vsel %vm48, %v1853, %v1923
  %v1990 = vsel %vm49, %v1855, %v1925
  %v1991 = vsel %vm50, %v1857, %v1927
  %v1992 = vsel %vm51, %v1859, %v1929
  %v1993 = vsel %vm52, %v1861, %v1931
  %v1994 = vsel %vm53, %v1863, %v1933
  %v1995 = vsel %vm54, %v1865, %v1935
  %v1996 = vsel %vm55, %v1867, %v1937
  %v1997 = vsel %vm56, %v1869, %v1939
  %v1998 = vsel %vm57, %v1871, %v1941
  %v1999 = vsel %vm58, %v1873, %v1943
  %v2000 = vsel %vm59, %v1875, %v1945
  %v2001 = vsel %vm60, %v1877, %v1947
  %v2002 = vsel %vm61, %v1903, %v1949
  %v2003 = vsel %vm62, 0.0, %v1951
  %v2004 = vsel %vm63, 0.0, %v1953
  %v2005 = vadd.f32 %v1684, %v1980
  %v2006 = vadd.f32 %v1685, %v1981
  %v2007 = vadd.f32 %v1686, %v1982
  %v2008 = vadd.f32 %v1687, %v1983
  %v2009 = vadd.f32 %v1688, %v1984
  %v2010 = vadd.f32 %v1689, %v1985
  %v2011 = vadd.f32 %v1690, %v1986
  %v2012 = vadd.f32 %v1691, %v1987
  %v2013 = vadd.f32 %v1692, %v1988
  %v2014 = vadd.f32 %v1693, %v1989
  %v2015 = vadd.f32 %v1694, %v1990
  %v2016 = vadd.f32 %v1695, %v1991
  %v2017 = vadd.f32 %v1696, %v1992
  %v2018 = vadd.f32 %v1697, %v1993
  %v2019 = vadd.f32 %v1698, %v1994
  %v2020 = vadd.f32 %v1699, %v1995
  %v2021 = vadd.f32 %v1700, %v1996
  %v2022 = vadd.f32 %v1701, %v1997
  %v2023 = vadd.f32 %v1702, %v1998
  %v2024 = vadd.f32 %v1703, %v1999
  %v2025 = vadd.f32 %v1704, %v2000
  %v2026 = vadd.f32 %v1705, %v2001
  %v2027 = vadd.f32 %v1706, %v2002
  %v2028 = vadd.f32 %v1707, %v2003
  %v2029 = vadd.f32 %v1708, %v2004
  %v2053 = vrot.slane %v2005, 2
  %v2054 = vrot.slane %v2006, 2
  %v2055 = vsel %vm1029, %v2053, %v2054
  %v2056 = vrot.slane %v2007, 2
  %v2057 = vsel %vm1029, %v2054, %v2056
  %v2058 = vrot.slane %v2008, 2
  %v2059 = vsel %vm1029, %v2056, %v2058
  %v2060 = vrot.slane %v2009, 2
  %v2061 = vsel %vm1029, %v2058, %v2060
  %v2062 = vrot.slane %v2010, 2
  %v2063 = vsel %vm1029, %v2060, %v2062
  %v2064 = vrot.slane %v2011, 2
  %v2065 = vsel %vm1029, %v2062, %v2064
  %v2066 = vrot.slane %v2012, 2
  %v2067 = vsel %vm1029, %v2064, %v2066
  %v2068 = vrot.slane %v2013, 2
  %v2069 = vsel %vm1029, %v2066, %v2068
  %v2070 = vrot.slane %v2014, 2
  %v2071 = vsel %vm1029, %v2068, %v2070
  %v2072 = vrot.slane %v2015, 2
  %v2073 = vsel %vm1029, %v2070, %v2072
  %v2074 = vrot.slane %v2016, 2
  %v2075 = vsel %vm1029, %v2072, %v2074
  %v2076 = vrot.slane %v2017, 2
  %v2077 = vsel %vm1029, %v2074, %v2076
  %v2078 = vrot.slane %v2018, 2
  %v2079 = vsel %vm1029, %v2076, %v2078
  %v2080 = vrot.slane %v2019, 2
  %v2081 = vsel %vm1029, %v2078, %v2080
  %v2082 = vrot.slane %v2020, 2
  %v2083 = vsel %vm1029, %v2080, %v2082
  %v2084 = vrot.slane %v2021, 2
  %v2085 = vsel %vm1029, %v2082, %v2084
  %v2086 = vrot.slane %v2022, 2
  %v2087 = vsel %vm1029, %v2084, %v2086
  %v2088 = vrot.slane %v2023, 2
  %v2089 = vsel %vm1029, %v2086, %v2088
  %v2090 = vrot.slane %v2024, 2
  %v2091 = vsel %vm1029, %v2088, %v2090
  %v2092 = vrot.slane %v2025, 2
  %v2093 = vsel %vm1029, %v2090, %v2092
  %v2094 = vrot.slane %v2026, 2
  %v2095 = vsel %vm1029, %v2092, %v2094
  %v2096 = vrot.slane %v2027, 2
  %v2097 = vsel %vm1029, %v2094, %v2096
  %v2122 = vsel %vm1029, 0.0, %v2053
  %2123 = vst [vmem:[#allocation2 + $0x10] sm:$0xff] 0.0
  %2124 = vst [vmem:[#allocation2 + $0x58] sm:$0xff] %v2122
  %2125 = vst [vmem:[#allocation2 + $0xa0] sm:$0xff] %v2055
  %2126 = vst [vmem:[#allocation2 + $0xe8] sm:$0xff] %v2057
  %2127 = vst [vmem:[#allocation2 + $0x130] sm:$0xff] %v2059
  %2128 = vst [vmem:[#allocation2 + $0x178] sm:$0xff] %v2061
  %2129 = vst [vmem:[#allocation2 + $0x1c0] sm:$0xff] %v2063
  %2130 = vst [vmem:[#allocation2 + $0x208] sm:$0xff] %v2065
  %2131 = vst [vmem:[#allocation2 + $0x250] sm:$0xff] %v2067
  %2132 = vst [vmem:[#allocation2 + $0x298] sm:$0xff] %v2069
  %2133 = vst [vmem:[#allocation2 + $0x2e0] sm:$0xff] %v2071
  %2134 = vst [vmem:[#allocation2 + $0x328] sm:$0xff] %v2073
  %2135 = vst [vmem:[#allocation2 + $0x370] sm:$0xff] %v2075
  %2136 = vst [vmem:[#allocation2 + $0x3b8] sm:$0xff] %v2077
  %2137 = vst [vmem:[#allocation2 + $0x400] sm:$0xff] %v2079
  %2138 = vst [vmem:[#allocation2 + $0x448] sm:$0xff] %v2081
  %2139 = vst [vmem:[#allocation2 + $0x490] sm:$0xff] %v2083
  %2140 = vst [vmem:[#allocation2 + $0x4d8] sm:$0xff] %v2085
  %2141 = vst [vmem:[#allocation2 + $0x520] sm:$0xff] %v2087
  %2142 = vst [vmem:[#allocation2 + $0x568] sm:$0xff] %v2089
  %2143 = vst [vmem:[#allocation2 + $0x5b0] sm:$0xff] %v2091
  %2144 = vst [vmem:[#allocation2 + $0x5f8] sm:$0xff] %v2093
  %2145 = vst [vmem:[#allocation2 + $0x640] sm:$0xff] %v2095
  %2146 = vst [vmem:[#allocation2 + $0x688] sm:$0xff] %v2097
  %2147 = vst [vmem:[#allocation2 + $0x6d0] sm:$0xf] %v2096
  %2148 = vst [vmem:[#allocation2 + $0x28] sm:$0xff] %v2005
  %2149 = vst [vmem:[#allocation2 + $0x70] sm:$0xff] %v2006
  %2150 = vst [vmem:[#allocation2 + $0xb8] sm:$0xff] %v2007
  %2151 = vst [vmem:[#allocation2 + $0x100] sm:$0xff] %v2008
  %2152 = vst [vmem:[#allocation2 + $0x148] sm:$0xff] %v2009
  %2153 = vst [vmem:[#allocation2 + $0x190] sm:$0xff] %v2010
  %2154 = vst [vmem:[#allocation2 + $0x1d8] sm:$0xff] %v2011
  %2155 = vst [vmem:[#allocation2 + $0x220] sm:$0xff] %v2012
  %2156 = vst [vmem:[#allocation2 + $0x268] sm:$0xff] %v2013
  %2157 = vst [vmem:[#allocation2 + $0x2b0] sm:$0xff] %v2014
  %2158 = vst [vmem:[#allocation2 + $0x2f8] sm:$0xff] %v2015
  %2159 = vst [vmem:[#allocation2 + $0x340] sm:$0xff] %v2016
  %2160 = vst [vmem:[#allocation2 + $0x388] sm:$0xff] %v2017
  %2161 = vst [vmem:[#allocation2 + $0x3d0] sm:$0xff] %v2018
  %2162 = vst [vmem:[#allocation2 + $0x418] sm:$0xff] %v2019
  %2163 = vst [vmem:[#allocation2 + $0x460] sm:$0xff] %v2020
  %2164 = vst [vmem:[#allocation2 + $0x4a8] sm:$0xff] %v2021
  %2165 = vst [vmem:[#allocation2 + $0x4f0] sm:$0xff] %v2022
  %2166 = vst [vmem:[#allocation2 + $0x538] sm:$0xff] %v2023
  %2167 = vst [vmem:[#allocation2 + $0x580] sm:$0xff] %v2024
  %2168 = vst [vmem:[#allocation2 + $0x5c8] sm:$0xff] %v2025
  %2169 = vst [vmem:[#allocation2 + $0x610] sm:$0xff] %v2026
  %2170 = vst [vmem:[#allocation2 + $0x658] sm:$0xff] %v2027
  %2171 = vst [vmem:[#allocation2 + $0x6a0] sm:$0xff] %v2028
  %2172 = vst [vmem:[#allocation2 + $0x6e8] sm:$0xf] %v2029
  %v2175 = vrot.slane %v2006, 6
  %v2176 = vrot.slane %v2007, 6
  %v2177 = vsel %vm1152, %v2175, %v2176
  %v2178 = vrot.slane %v2008, 6
  %v2179 = vsel %vm1152, %v2176, %v2178
  %v2180 = vrot.slane %v2009, 6
  %v2181 = vsel %vm1152, %v2178, %v2180
  %v2182 = vrot.slane %v2010, 6
  %v2183 = vsel %vm1152, %v2180, %v2182
  %v2184 = vrot.slane %v2011, 6
  %v2185 = vsel %vm1152, %v2182, %v2184
  %v2186 = vrot.slane %v2012, 6
  %v2187 = vsel %vm1152, %v2184, %v2186
  %v2188 = vrot.slane %v2013, 6
  %v2189 = vsel %vm1152, %v2186, %v2188
  %v2190 = vrot.slane %v2014, 6
  %v2191 = vsel %vm1152, %v2188, %v2190
  %v2192 = vrot.slane %v2015, 6
  %v2193 = vsel %vm1152, %v2190, %v2192
  %v2194 = vrot.slane %v2016, 6
  %v2195 = vsel %vm1152, %v2192, %v2194
  %v2196 = vrot.slane %v2017, 6
  %v2197 = vsel %vm1152, %v2194, %v2196
  %v2198 = vrot.slane %v2018, 6
  %v2199 = vsel %vm1152, %v2196, %v2198
  %v2200 = vrot.slane %v2019, 6
  %v2201 = vsel %vm1152, %v2198, %v2200
  %v2202 = vrot.slane %v2020, 6
  %v2203 = vsel %vm1152, %v2200, %v2202
  %v2204 = vrot.slane %v2021, 6
  %v2205 = vsel %vm1152, %v2202, %v2204
  %v2206 = vrot.slane %v2022, 6
  %v2207 = vsel %vm1152, %v2204, %v2206
  %v2208 = vrot.slane %v2023, 6
  %v2209 = vsel %vm1152, %v2206, %v2208
  %v2210 = vrot.slane %v2024, 6
  %v2211 = vsel %vm1152, %v2208, %v2210
  %v2212 = vrot.slane %v2025, 6
  %v2213 = vsel %vm1152, %v2210, %v2212
  %v2214 = vrot.slane %v2026, 6
  %v2215 = vsel %vm1152, %v2212, %v2214
  %v2216 = vrot.slane %v2027, 6
  %v2217 = vsel %vm1152, %v2214, %v2216
  %v2218 = vrot.slane %v2028, 6
  %v2219 = vsel %vm1152, %v2216, %v2218
  %v2220 = vrot.slane %v2029, 6
  %v2221 = vsel %vm1152, %v2218, %v2220
  %v2245 = vsel %vm1029, %v2221, 0.0
  %2246 = vst [vmem:[#allocation2 + $0x40] sm:$0xff] %v2177
  %2247 = vst [vmem:[#allocation2 + $0x88] sm:$0xff] %v2179
  %2248 = vst [vmem:[#allocation2 + $0xd0] sm:$0xff] %v2181
  %2249 = vst [vmem:[#allocation2 + $0x118] sm:$0xff] %v2183
  %2250 = vst [vmem:[#allocation2 + $0x160] sm:$0xff] %v2185
  %2251 = vst [vmem:[#allocation2 + $0x1a8] sm:$0xff] %v2187
  %2252 = vst [vmem:[#allocation2 + $0x1f0] sm:$0xff] %v2189
  %2253 = vst [vmem:[#allocation2 + $0x238] sm:$0xff] %v2191
  %2254 = vst [vmem:[#allocation2 + $0x280] sm:$0xff] %v2193
  %2255 = vst [vmem:[#allocation2 + $0x2c8] sm:$0xff] %v2195
  %2256 = vst [vmem:[#allocation2 + $0x310] sm:$0xff] %v2197
  %2257 = vst [vmem:[#allocation2 + $0x358] sm:$0xff] %v2199
  %2258 = vst [vmem:[#allocation2 + $0x3a0] sm:$0xff] %v2201
  %2259 = vst [vmem:[#allocation2 + $0x3e8] sm:$0xff] %v2203
  %2260 = vst [vmem:[#allocation2 + $0x430] sm:$0xff] %v2205
  %2261 = vst [vmem:[#allocation2 + $0x478] sm:$0xff] %v2207
  %2262 = vst [vmem:[#allocation2 + $0x4c0] sm:$0xff] %v2209
  %2263 = vst [vmem:[#allocation2 + $0x508] sm:$0xff] %v2211
  %2264 = vst [vmem:[#allocation2 + $0x550] sm:$0xff] %v2213
  %2265 = vst [vmem:[#allocation2 + $0x598] sm:$0xff] %v2215
  %2266 = vst [vmem:[#allocation2 + $0x5e0] sm:$0xff] %v2217
  %2267 = vst [vmem:[#allocation2 + $0x628] sm:$0xff] %v2219
  %2268 = vst [vmem:[#allocation2 + $0x670] sm:$0xff] %v2245
  %2269 = vst [vmem:[#allocation2 + $0x6b8] sm:$0xff] 0.0
  %2270 = vst [vmem:[#allocation2 + $0x700] sm:$0xf] 0.0
  %v2271 = vld [vmem:[%s2] sm:$0xff]
  %v2272 = vld [vmem:[%s2 + $0x8] sm:$0xff]
  %v2273 = vld [vmem:[%s2 + $0x10] sm:$0xff]
  %v2274 = vld [vmem:[%s2 + $0x18] sm:$0xff]
  %v2275 = vld [vmem:[%s2 + $0x20] sm:$0xff]
  %v2276 = vld [vmem:[%s2 + $0x28] sm:$0xff]
  %v2277 = vld [vmem:[%s2 + $0x30] sm:$0xff]
  %v2278 = vld [vmem:[%s2 + $0x38] sm:$0xff]
  %v2279 = vld [vmem:[%s2 + $0x40] sm:$0xff]
  %v2280 = vld [vmem:[%s2 + $0x48] sm:$0xff]
  %v2281 = vld [vmem:[%s2 + $0x50] sm:$0xff]
  %v2282 = vld [vmem:[%s2 + $0x58] sm:$0xff]
  %v2283 = vld [vmem:[%s2 + $0x60] sm:$0xff]
  %v2284 = vld [vmem:[%s2 + $0x68] sm:$0xff]
  %v2285 = vld [vmem:[%s2 + $0x70] sm:$0xff]
  %v2286 = vld [vmem:[%s2 + $0x78] sm:$0xff]
  %v2287 = vld [vmem:[%s2 + $0x80] sm:$0xff]
  %v2288 = vld [vmem:[%s2 + $0x88] sm:$0xff]
  %v2289 = vld [vmem:[%s2 + $0x90] sm:$0xff]
  %v2290 = vld [vmem:[%s2 + $0x98] sm:$0xff]
  %v2291 = vld [vmem:[%s2 + $0xa0] sm:$0xff]
  %v2292 = vld [vmem:[%s2 + $0xa8] sm:$0xff]
  %v2293 = vld [vmem:[%s2 + $0xb0] sm:$0xff]
  %v2294 = vld [vmem:[%s2 + $0xb8] sm:$0xff]
  %v2295 = vld [vmem:[%s2 + $0xc0] sm:$0xff]
  %v2296 = vld [vmem:[%s2 + $0xc8] sm:$0xff]
  %v2297 = vld [vmem:[%s2 + $0xd0] sm:$0xff]
  %v2298 = vld [vmem:[%s2 + $0xd8] sm:$0xff]
  %v2299 = vld [vmem:[%s2 + $0xe0] sm:$0xff]
  %v2300 = vld [vmem:[%s2 + $0xe8] sm:$0xff]
  %v2301 = vld [vmem:[%s2 + $0xf0] sm:$0xff]
  %v2302 = vld [vmem:[%s2 + $0xf8] sm:$0xff]
  %v2303 = vld [vmem:[%s2 + $0x100] sm:$0xff]
  %v2304 = vld [vmem:[%s2 + $0x108] sm:$0xff]
  %v2305 = vld [vmem:[%s2 + $0x110] sm:$0xff]
  %v2306 = vld [vmem:[%s2 + $0x118] sm:$0xff]
  %v2307 = vld [vmem:[%s2 + $0x120] sm:$0xff]
  %v2308 = vld [vmem:[%s2 + $0x128] sm:$0xff]
  %v2309 = vld [vmem:[%s2 + $0x130] sm:$0xff]
  %v2310 = vld [vmem:[%s2 + $0x138] sm:$0xff]
  %v2311 = vld [vmem:[%s2 + $0x140] sm:$0xff]
  %v2312 = vld [vmem:[%s2 + $0x148] sm:$0xff]
  %v2313 = vld [vmem:[%s2 + $0x150] sm:$0xff]
  %v2314 = vld [vmem:[%s2 + $0x158] sm:$0xff]
  %v2315 = vld [vmem:[%s2 + $0x160] sm:$0xff]
  %v2316 = vld [vmem:[%s2 + $0x168] sm:$0xff]
  %v2317 = vld [vmem:[%s2 + $0x170] sm:$0xff]
  %v2318 = vld [vmem:[%s2 + $0x178] sm:$0xff]
  %v2319 = vld [vmem:[%s2 + $0x180] sm:$0xff]
  %v2320 = vld [vmem:[%s2 + $0x188] sm:$0xff]
  %v2321 = vld [vmem:[%s2 + $0x190] sm:$0xff]
  %v2322 = vld [vmem:[%s2 + $0x198] sm:$0xff]
  %v2323 = vld [vmem:[%s2 + $0x1a0] sm:$0xff]
  %v2324 = vld [vmem:[%s2 + $0x1a8] sm:$0xff]
  %v2325 = vld [vmem:[%s2 + $0x1b0] sm:$0xff]
  %v2326 = vld [vmem:[%s2 + $0x1b8] sm:$0xff]
  %v2327 = vld [vmem:[%s2 + $0x1c0] sm:$0xff]
  %v2328 = vld [vmem:[%s2 + $0x1c8] sm:$0xff]
  %v2329 = vld [vmem:[%s2 + $0x1d0] sm:$0xff]
  %v2330 = vld [vmem:[%s2 + $0x1d8] sm:$0xff]
  %v2331 = vld [vmem:[%s2 + $0x1e0] sm:$0xff]
  %v2332 = vld [vmem:[%s2 + $0x1e8] sm:$0xff]
  %v2333 = vld [vmem:[%s2 + $0x1f0] sm:$0xff]
  %v2334 = vld [vmem:[%s2 + $0x1f8] sm:$0xff]
  %v2335 = vld [vmem:[%s2 + $0x200] sm:$0xff]
  %v2336 = vld [vmem:[%s2 + $0x208] sm:$0xff]
  %v2337 = vld [vmem:[%s2 + $0x210] sm:$0xff]
  %v2338 = vld [vmem:[%s2 + $0x218] sm:$0xff]
  %v2339 = vld [vmem:[%s2 + $0x220] sm:$0xff]
  %v2340 = vld [vmem:[%s2 + $0x228] sm:$0xff]
  %v2341 = vld [vmem:[%s2 + $0x230] sm:$0xff]
  %v2342 = vld [vmem:[%s2 + $0x238] sm:$0xff]
  %v2343 = vld [vmem:[%s2 + $0x240] sm:$0xff]
  %v2344 = vld [vmem:[%s2 + $0x248] sm:$0xff]
  %v2345 = vld [vmem:[%s2 + $0x250] sm:$0xff]
  %v2346 = vld [vmem:[%s2 + $0x258] sm:$0xff]
  %v2347 = vld [vmem:[%s2 + $0x260] sm:$0xff]
  %v2348 = vld [vmem:[%s2 + $0x268] sm:$0xff]
  %v2349 = vld [vmem:[%s2 + $0x270] sm:$0xff]
  %v2350 = vld [vmem:[%s2 + $0x278] sm:$0xff]
  %v2351 = vld [vmem:[%s2 + $0x280] sm:$0xff]
  %v2352 = vld [vmem:[%s2 + $0x288] sm:$0xff]
  %v2353 = vld [vmem:[%s2 + $0x290] sm:$0xff]
  %v2354 = vld [vmem:[%s2 + $0x298] sm:$0xff]
  %v2355 = vld [vmem:[%s2 + $0x2a0] sm:$0xff]
  %v2356 = vld [vmem:[%s2 + $0x2a8] sm:$0xff]
  %v2357 = vld [vmem:[%s2 + $0x2b0] sm:$0xff]
  %v2358 = vld [vmem:[%s2 + $0x2b8] sm:$0xff]
  %v2359 = vld [vmem:[%s2 + $0x2c0] sm:$0xff]
  %v2360 = vld [vmem:[%s2 + $0x2c8] sm:$0xff]
  %v2361 = vld [vmem:[%s2 + $0x2d0] sm:$0xff]
  %v2362 = vld [vmem:[%s2 + $0x2d8] sm:$0xff]
  %v2363 = vld [vmem:[%s2 + $0x2e0] sm:$0xff]
  %v2364 = vld [vmem:[%s2 + $0x2e8] sm:$0xff]
  %v2365 = vld [vmem:[%s2 + $0x2f0] sm:$0xff]
  %v2366 = vld [vmem:[%s2 + $0x2f8] sm:$0xff]
  %v2367 = vld [vmem:[%s2 + $0x300] sm:$0xff]
  %v2368 = vld [vmem:[%s2 + $0x308] sm:$0xff]
  %v2369 = vld [vmem:[%s2 + $0x310] sm:$0xff]
  %v2370 = vld [vmem:[%s2 + $0x318] sm:$0xff]
  %v2371 = vld [vmem:[%s2 + $0x320] sm:$0xff]
  %v2372 = vld [vmem:[%s2 + $0x328] sm:$0xff]
  %v2373 = vld [vmem:[%s2 + $0x330] sm:$0xff]
  %v2374 = vld [vmem:[%s2 + $0x338] sm:$0xff]
  %v2375 = vld [vmem:[%s2 + $0x340] sm:$0xff]
  %v2376 = vld [vmem:[%s2 + $0x348] sm:$0xff]
  %v2377 = vld [vmem:[%s2 + $0x350] sm:$0xff]
  %v2378 = vld [vmem:[%s2 + $0x358] sm:$0xff]
  %v2379 = vld [vmem:[%s2 + $0x360] sm:$0xff]
  %v2380 = vld [vmem:[%s2 + $0x368] sm:$0xff]
  %v2381 = vld [vmem:[%s2 + $0x370] sm:$0xff]
  %v2382 = vld [vmem:[%s2 + $0x378] sm:$0xff]
  %v2383 = vld [vmem:[%s2 + $0x380] sm:$0xff]
  %v2384 = vld [vmem:[%s2 + $0x388] sm:$0xff]
  %v2385 = vld [vmem:[%s2 + $0x390] sm:$0xff]
  %v2386 = vld [vmem:[%s2 + $0x398] sm:$0xff]
  %v2387 = vld [vmem:[%s2 + $0x3a0] sm:$0xff]
  %v2388 = vld [vmem:[%s2 + $0x3a8] sm:$0xff]
  %v2389 = vld [vmem:[%s2 + $0x3b0] sm:$0xff]
  %v2390 = vld [vmem:[%s2 + $0x3b8] sm:$0xff]
  %v2391 = vld [vmem:[%s2 + $0x3c0] sm:$0xff]
  %v2392 = vld [vmem:[%s2 + $0x3c8] sm:$0xff]
  %v2393 = vld [vmem:[%s2 + $0x3d0] sm:$0xff]
  %v2394 = vld [vmem:[%s2 + $0x3d8] sm:$0xff]
  %v2395 = vld [vmem:[%s2 + $0x3e0] sm:$0xff]
  %v2396 = vld [vmem:[%s2 + $0x3e8] sm:$0xff]
  %v2397 = vld [vmem:[%s2 + $0x3f0] sm:$0xff]
  %v2398 = vld [vmem:[%s2 + $0x3f8] sm:$0xff]
  %v2399 = vld [vmem:[%s2 + $0x400] sm:$0xff]
  %v2400 = vld [vmem:[%s2 + $0x408] sm:$0xff]
  %v2401 = vld [vmem:[%s2 + $0x410] sm:$0xff]
  %v2402 = vld [vmem:[%s2 + $0x418] sm:$0xff]
  %v2403 = vld [vmem:[%s2 + $0x420] sm:$0xff]
  %v2404 = vld [vmem:[%s2 + $0x428] sm:$0xff]
  %v2405 = vld [vmem:[%s2 + $0x430] sm:$0xff]
  %v2406 = vld [vmem:[%s2 + $0x438] sm:$0xff]
  %v2407 = vld [vmem:[%s2 + $0x440] sm:$0xff]
  %v2408 = vld [vmem:[%s2 + $0x448] sm:$0xff]
  %v2409 = vld [vmem:[%s2 + $0x450] sm:$0xff]
  %v2410 = vld [vmem:[%s2 + $0x458] sm:$0xff]
  %v2411 = vld [vmem:[%s2 + $0x460] sm:$0xff]
  %v2412 = vld [vmem:[%s2 + $0x468] sm:$0xff]
  %v2413 = vld [vmem:[%s2 + $0x470] sm:$0xff]
  %v2414 = vld [vmem:[%s2 + $0x478] sm:$0xff]
  %v2415 = vld [vmem:[%s2 + $0x480] sm:$0xff]
  %v2416 = vld [vmem:[%s2 + $0x488] sm:$0xff]
  %v2417 = vld [vmem:[%s2 + $0x490] sm:$0xff]
  %v2418 = vld [vmem:[%s2 + $0x498] sm:$0xff]
  %v2419 = vld [vmem:[%s2 + $0x4a0] sm:$0xff]
  %v2420 = vld [vmem:[%s2 + $0x4a8] sm:$0xff]
  %v2421 = vld [vmem:[%s2 + $0x4b0] sm:$0xff]
  %v2422 = vld [vmem:[%s2 + $0x4b8] sm:$0xff]
  %v2423 = vld [vmem:[%s2 + $0x4c0] sm:$0xff]
  %v2424 = vld [vmem:[%s2 + $0x4c8] sm:$0xff]
  %v2425 = vld [vmem:[%s2 + $0x4d0] sm:$0xff]
  %v2426 = vld [vmem:[%s2 + $0x4d8] sm:$0xff]
  %v2427 = vld [vmem:[%s2 + $0x4e0] sm:$0xff]
  %v2428 = vld [vmem:[%s2 + $0x4e8] sm:$0xff]
  %v2429 = vld [vmem:[%s2 + $0x4f0] sm:$0xff]
  %v2430 = vld [vmem:[%s2 + $0x4f8] sm:$0xff]
  %v2431 = vld [vmem:[%s2 + $0x500] sm:$0xff]
  %v2432 = vld [vmem:[%s2 + $0x508] sm:$0xff]
  %v2433 = vld [vmem:[%s2 + $0x510] sm:$0xff]
  %v2434 = vld [vmem:[%s2 + $0x518] sm:$0xff]
  %v2435 = vld [vmem:[%s2 + $0x520] sm:$0xff]
  %v2436 = vld [vmem:[%s2 + $0x528] sm:$0xff]
  %v2437 = vld [vmem:[%s2 + $0x530] sm:$0xff]
  %v2438 = vld [vmem:[%s2 + $0x538] sm:$0xff]
  %v2439 = vld [vmem:[%s2 + $0x540] sm:$0xff]
  %v2440 = vld [vmem:[%s2 + $0x548] sm:$0xff]
  %v2441 = vld [vmem:[%s2 + $0x550] sm:$0xff]
  %v2442 = vld [vmem:[%s2 + $0x558] sm:$0xff]
  %v2443 = vld [vmem:[%s2 + $0x560] sm:$0xff]
  %v2444 = vld [vmem:[%s2 + $0x568] sm:$0xff]
  %v2445 = vld [vmem:[%s2 + $0x570] sm:$0xff]
  %v2446 = vld [vmem:[%s2 + $0x578] sm:$0xff]
  %v2447 = vld [vmem:[%s2 + $0x580] sm:$0xff]
  %v2448 = vld [vmem:[%s2 + $0x588] sm:$0xff]
  %v2449 = vld [vmem:[%s2 + $0x590] sm:$0xff]
  %v2450 = vld [vmem:[%s2 + $0x598] sm:$0xff]
  %v2451 = vld [vmem:[%s2 + $0x5a0] sm:$0xff]
  %v2452 = vld [vmem:[%s2 + $0x5a8] sm:$0xff]
  %v2453 = vld [vmem:[%s2 + $0x5b0] sm:$0xff]
  %v2454 = vld [vmem:[%s2 + $0x5b8] sm:$0xff]
  %v2455 = vld [vmem:[%s2 + $0x5c0] sm:$0xff]
  %v2456 = vld [vmem:[%s2 + $0x5c8] sm:$0xff]
  %v2457 = vld [vmem:[%s2 + $0x5d0] sm:$0xff]
  %v2458 = vld [vmem:[%s2 + $0x5d8] sm:$0xff]
  %v2459 = vld [vmem:[%s2 + $0x5e0] sm:$0xff]
  %v2460 = vld [vmem:[%s2 + $0x5e8] sm:$0xff]
  %v2461 = vld [vmem:[%s2 + $0x5f0] sm:$0xff]
  %v2462 = vld [vmem:[%s2 + $0x5f8] sm:$0xff]
  %v2463 = vld [vmem:[%s2 + $0x600] sm:$0xff]
  %v2464 = vld [vmem:[%s2 + $0x608] sm:$0xff]
  %v2465 = vld [vmem:[%s2 + $0x610] sm:$0xff]
  %v2466 = vld [vmem:[%s2 + $0x618] sm:$0xff]
  %v2467 = vld [vmem:[%s2 + $0x620] sm:$0xff]
  %v2468 = vld [vmem:[%s2 + $0x628] sm:$0xff]
  %v2469 = vld [vmem:[%s2 + $0x630] sm:$0xff]
  %v2470 = vld [vmem:[%s2 + $0x638] sm:$0xff]
  %v2471 = vld [vmem:[%s2 + $0x640] sm:$0xff]
  %v2472 = vld [vmem:[%s2 + $0x648] sm:$0xff]
  %v2473 = vld [vmem:[%s2 + $0x650] sm:$0xff]
  %v2474 = vld [vmem:[%s2 + $0x658] sm:$0xff]
  %v2475 = vld [vmem:[%s2 + $0x660] sm:$0xff]
  %v2476 = vld [vmem:[%s2 + $0x668] sm:$0xff]
  %v2477 = vld [vmem:[%s2 + $0x670] sm:$0xff]
  %v2478 = vld [vmem:[%s2 + $0x678] sm:$0xff]
  %v2479 = vld [vmem:[%s2 + $0x680] sm:$0xff]
  %v2480 = vld [vmem:[%s2 + $0x688] sm:$0xff]
  %v2481 = vld [vmem:[%s2 + $0x690] sm:$0xff]
  %v2482 = vld [vmem:[%s2 + $0x698] sm:$0xff]
  %v2483 = vld [vmem:[%s2 + $0x6a0] sm:$0xff]
  %v2484 = vld [vmem:[%s2 + $0x6a8] sm:$0xff]
  %v2485 = vld [vmem:[%s2 + $0x6b0] sm:$0xff]
  %v2486 = vld [vmem:[%s2 + $0x6b8] sm:$0xff]
  %v2487 = vld [vmem:[%s2 + $0x6c0] sm:$0xff]
  %v2488 = vld [vmem:[%s2 + $0x6c8] sm:$0xff]
  %v2489 = vld [vmem:[%s2 + $0x6d0] sm:$0xff]
  %v2490 = vld [vmem:[%s2 + $0x6d8] sm:$0xff]
  %v2491 = vld [vmem:[%s2 + $0x6e0] sm:$0xff]
  %v2492 = vld [vmem:[%s2 + $0x6e8] sm:$0xff]
  %v2493 = vld [vmem:[%s2 + $0x6f0] sm:$0xff]
  %v2494 = vld [vmem:[%s2 + $0x6f8] sm:$0xff]
  %v2495 = vld [vmem:[%s2 + $0x700] sm:$0xff]
  %v2496 = vld [vmem:[%s2 + $0x708] sm:$0xff]
  %v2497 = vld [vmem:[%s2 + $0x710] sm:$0xff]
  %v2498 = vld [vmem:[%s2 + $0x718] sm:$0xff]
  %v2499 = vld [vmem:[%s2 + $0x720] sm:$0xff]
  %v2500 = vld [vmem:[%s2 + $0x728] sm:$0xff]
  %v2501 = vld [vmem:[%s2 + $0x730] sm:$0xff]
  %v2502 = vld [vmem:[%s2 + $0x738] sm:$0xff]
  %v2503 = vld [vmem:[%s2 + $0x740] sm:$0xff]
  %v2504 = vld [vmem:[%s2 + $0x748] sm:$0xff]
  %v2505 = vld [vmem:[%s2 + $0x750] sm:$0xff]
  %v2506 = vld [vmem:[%s2 + $0x758] sm:$0xff]
  %v2507 = vld [vmem:[%s2 + $0x760] sm:$0xff]
  %v2508 = vld [vmem:[%s2 + $0x768] sm:$0xff]
  %v2509 = vld [vmem:[%s2 + $0x770] sm:$0xff]
  %v2510 = vld [vmem:[%s2 + $0x778] sm:$0xff]
  %v2511 = vld [vmem:[%s2 + $0x780] sm:$0xff]
  %v2512 = vld [vmem:[%s2 + $0x788] sm:$0xff]
  %v2513 = vld [vmem:[%s2 + $0x790] sm:$0xff]
  %v2514 = vld [vmem:[%s2 + $0x798] sm:$0xff]
  %v2515 = vld [vmem:[%s2 + $0x7a0] sm:$0xff]
  %v2516 = vld [vmem:[%s2 + $0x7a8] sm:$0xff]
  %v2517 = vld [vmem:[%s2 + $0x7b0] sm:$0xff]
  %v2518 = vld [vmem:[%s2 + $0x7b8] sm:$0xff]
  %v2519 = vld [vmem:[%s2 + $0x7c0] sm:$0xff]
  %v2520 = vld [vmem:[%s2 + $0x7c8] sm:$0xff]
  %v2521 = vld [vmem:[%s2 + $0x7d0] sm:$0xff]
  %v2522 = vld [vmem:[%s2 + $0x7d8] sm:$0xff]
  %v2523 = vld [vmem:[%s2 + $0x7e0] sm:$0xff]
  %v2524 = vld [vmem:[%s2 + $0x7e8] sm:$0xff]
  %v2525 = vld [vmem:[%s2 + $0x7f0] sm:$0xff]
  %v2526 = vld [vmem:[%s2 + $0x7f8] sm:$0xff]
  %v2527 = vld [vmem:[%s2 + $0x800] sm:$0xff]
  %v2528 = vld [vmem:[%s2 + $0x808] sm:$0xff]
  %v2529 = vld [vmem:[%s2 + $0x810] sm:$0xff]
  %v2530 = vld [vmem:[%s2 + $0x818] sm:$0xff]
  %v2531 = vld [vmem:[%s2 + $0x820] sm:$0xff]
  %v2532 = vld [vmem:[%s2 + $0x828] sm:$0xff]
  %v2533 = vld [vmem:[%s2 + $0x830] sm:$0xff]
  %v2534 = vld [vmem:[%s2 + $0x838] sm:$0xff]
  %v2535 = vld [vmem:[%s2 + $0x840] sm:$0xff]
  %v2536 = vld [vmem:[%s2 + $0x848] sm:$0xff]
  %v2537 = vld [vmem:[%s2 + $0x850] sm:$0xff]
  %v2538 = vld [vmem:[%s2 + $0x858] sm:$0xff]
  %v2539 = vld [vmem:[%s2 + $0x860] sm:$0xff]
  %v2540 = vld [vmem:[%s2 + $0x868] sm:$0xff]
  %v2541 = vld [vmem:[%s2 + $0x870] sm:$0xff]
  %v2542 = vld [vmem:[%s2 + $0x878] sm:$0xff]
  %v2543 = vld [vmem:[%s2 + $0x880] sm:$0xff]
  %v2544 = vld [vmem:[%s2 + $0x888] sm:$0xff]
  %v2545 = vld [vmem:[%s2 + $0x890] sm:$0xff]
  %v2546 = vld [vmem:[%s2 + $0x898] sm:$0xff]
  %v2547 = vld [vmem:[%s2 + $0x8a0] sm:$0xff]
  %v2548 = vld [vmem:[%s2 + $0x8a8] sm:$0xff]
  %v2549 = vld [vmem:[%s2 + $0x8b0] sm:$0xff]
  %v2550 = vld [vmem:[%s2 + $0x8b8] sm:$0xff]
  %v2551 = vld [vmem:[%s2 + $0x8c0] sm:$0xff]
  %v2552 = vld [vmem:[%s2 + $0x8c8] sm:$0xff]
  %v2553 = vld [vmem:[%s2 + $0x8d0] sm:$0xff]
  %v2554 = vld [vmem:[%s2 + $0x8d8] sm:$0xff]
  %v2555 = vld [vmem:[%s2 + $0x8e0] sm:$0xff]
  %v2556 = vld [vmem:[%s2 + $0x8e8] sm:$0xff]
  %v2557 = vld [vmem:[%s2 + $0x8f0] sm:$0xff]
  %v2558 = vld [vmem:[%s2 + $0x8f8] sm:$0xff]
  %v2559 = vld [vmem:[#allocation2] sm:$0xff]
  %v2560 = vld [vmem:[#allocation2 + $0x8] sm:$0xff]
  %v2561 = vld [vmem:[#allocation2 + $0x10] sm:$0xff]
  %v2562 = vld [vmem:[#allocation2 + $0x18] sm:$0xff]
  %v2563 = vld [vmem:[#allocation2 + $0x20] sm:$0xff]
  %v2564 = vld [vmem:[#allocation2 + $0x28] sm:$0xff]
  %v2565 = vld [vmem:[#allocation2 + $0x30] sm:$0xff]
  %v2566 = vld [vmem:[#allocation2 + $0x38] sm:$0xff]
  %v2567 = vld [vmem:[#allocation2 + $0x40] sm:$0xff]
  %v2568 = vld [vmem:[#allocation2 + $0x48] sm:$0xff]
  %v2569 = vld [vmem:[#allocation2 + $0x50] sm:$0xff]
  %v2570 = vld [vmem:[#allocation2 + $0x58] sm:$0xff]
  %v2571 = vld [vmem:[#allocation2 + $0x60] sm:$0xff]
  %v2572 = vld [vmem:[#allocation2 + $0x68] sm:$0xff]
  %v2573 = vld [vmem:[#allocation2 + $0x70] sm:$0xff]
  %v2574 = vld [vmem:[#allocation2 + $0x78] sm:$0xff]
  %v2575 = vld [vmem:[#allocation2 + $0x80] sm:$0xff]
  %v2576 = vld [vmem:[#allocation2 + $0x88] sm:$0xff]
  %v2577 = vld [vmem:[#allocation2 + $0x90] sm:$0xff]
  %v2578 = vld [vmem:[#allocation2 + $0x98] sm:$0xff]
  %v2579 = vld [vmem:[#allocation2 + $0xa0] sm:$0xff]
  %v2580 = vld [vmem:[#allocation2 + $0xa8] sm:$0xff]
  %v2581 = vld [vmem:[#allocation2 + $0xb0] sm:$0xff]
  %v2582 = vld [vmem:[#allocation2 + $0xb8] sm:$0xff]
  %v2583 = vld [vmem:[#allocation2 + $0xc0] sm:$0xff]
  %v2584 = vld [vmem:[#allocation2 + $0xc8] sm:$0xff]
  %v2585 = vld [vmem:[#allocation2 + $0xd0] sm:$0xff]
  %v2586 = vld [vmem:[#allocation2 + $0xd8] sm:$0xff]
  %v2587 = vld [vmem:[#allocation2 + $0xe0] sm:$0xff]
  %v2588 = vld [vmem:[#allocation2 + $0xe8] sm:$0xff]
  %v2589 = vld [vmem:[#allocation2 + $0xf0] sm:$0xff]
  %v2590 = vld [vmem:[#allocation2 + $0xf8] sm:$0xff]
  %v2591 = vld [vmem:[#allocation2 + $0x100] sm:$0xff]
  %v2592 = vld [vmem:[#allocation2 + $0x108] sm:$0xff]
  %v2593 = vld [vmem:[#allocation2 + $0x110] sm:$0xff]
  %v2594 = vld [vmem:[#allocation2 + $0x118] sm:$0xff]
  %v2595 = vld [vmem:[#allocation2 + $0x120] sm:$0xff]
  %v2596 = vld [vmem:[#allocation2 + $0x128] sm:$0xff]
  %v2597 = vld [vmem:[#allocation2 + $0x130] sm:$0xff]
  %v2598 = vld [vmem:[#allocation2 + $0x138] sm:$0xff]
  %v2599 = vld [vmem:[#allocation2 + $0x140] sm:$0xff]
  %v2600 = vld [vmem:[#allocation2 + $0x148] sm:$0xff]
  %v2601 = vld [vmem:[#allocation2 + $0x150] sm:$0xff]
  %v2602 = vld [vmem:[#allocation2 + $0x158] sm:$0xff]
  %v2603 = vld [vmem:[#allocation2 + $0x160] sm:$0xff]
  %v2604 = vld [vmem:[#allocation2 + $0x168] sm:$0xff]
  %v2605 = vld [vmem:[#allocation2 + $0x170] sm:$0xff]
  %v2606 = vld [vmem:[#allocation2 + $0x178] sm:$0xff]
  %v2607 = vld [vmem:[#allocation2 + $0x180] sm:$0xff]
  %v2608 = vld [vmem:[#allocation2 + $0x188] sm:$0xff]
  %v2609 = vld [vmem:[#allocation2 + $0x190] sm:$0xff]
  %v2610 = vld [vmem:[#allocation2 + $0x198] sm:$0xff]
  %v2611 = vld [vmem:[#allocation2 + $0x1a0] sm:$0xff]
  %v2612 = vld [vmem:[#allocation2 + $0x1a8] sm:$0xff]
  %v2613 = vld [vmem:[#allocation2 + $0x1b0] sm:$0xff]
  %v2614 = vld [vmem:[#allocation2 + $0x1b8] sm:$0xff]
  %v2615 = vld [vmem:[#allocation2 + $0x1c0] sm:$0xff]
  %v2616 = vld [vmem:[#allocation2 + $0x1c8] sm:$0xff]
  %v2617 = vld [vmem:[#allocation2 + $0x1d0] sm:$0xff]
  %v2618 = vld [vmem:[#allocation2 + $0x1d8] sm:$0xff]
  %v2619 = vld [vmem:[#allocation2 + $0x1e0] sm:$0xff]
  %v2620 = vld [vmem:[#allocation2 + $0x1e8] sm:$0xff]
  %v2621 = vld [vmem:[#allocation2 + $0x1f0] sm:$0xff]
  %v2622 = vld [vmem:[#allocation2 + $0x1f8] sm:$0xff]
  %v2623 = vld [vmem:[#allocation2 + $0x200] sm:$0xff]
  %v2624 = vld [vmem:[#allocation2 + $0x208] sm:$0xff]
  %v2625 = vld [vmem:[#allocation2 + $0x210] sm:$0xff]
  %v2626 = vld [vmem:[#allocation2 + $0x218] sm:$0xff]
  %v2627 = vld [vmem:[#allocation2 + $0x220] sm:$0xff]
  %v2628 = vld [vmem:[#allocation2 + $0x228] sm:$0xff]
  %v2629 = vld [vmem:[#allocation2 + $0x230] sm:$0xff]
  %v2630 = vld [vmem:[#allocation2 + $0x238] sm:$0xff]
  %v2631 = vld [vmem:[#allocation2 + $0x240] sm:$0xff]
  %v2632 = vld [vmem:[#allocation2 + $0x248] sm:$0xff]
  %v2633 = vld [vmem:[#allocation2 + $0x250] sm:$0xff]
  %v2634 = vld [vmem:[#allocation2 + $0x258] sm:$0xff]
  %v2635 = vld [vmem:[#allocation2 + $0x260] sm:$0xff]
  %v2636 = vld [vmem:[#allocation2 + $0x268] sm:$0xff]
  %v2637 = vld [vmem:[#allocation2 + $0x270] sm:$0xff]
  %v2638 = vld [vmem:[#allocation2 + $0x278] sm:$0xff]
  %v2639 = vld [vmem:[#allocation2 + $0x280] sm:$0xff]
  %v2640 = vld [vmem:[#allocation2 + $0x288] sm:$0xff]
  %v2641 = vld [vmem:[#allocation2 + $0x290] sm:$0xff]
  %v2642 = vld [vmem:[#allocation2 + $0x298] sm:$0xff]
  %v2643 = vld [vmem:[#allocation2 + $0x2a0] sm:$0xff]
  %v2644 = vld [vmem:[#allocation2 + $0x2a8] sm:$0xff]
  %v2645 = vld [vmem:[#allocation2 + $0x2b0] sm:$0xff]
  %v2646 = vld [vmem:[#allocation2 + $0x2b8] sm:$0xff]
  %v2647 = vld [vmem:[#allocation2 + $0x2c0] sm:$0xff]
  %v2648 = vld [vmem:[#allocation2 + $0x2c8] sm:$0xff]
  %v2649 = vld [vmem:[#allocation2 + $0x2d0] sm:$0xff]
  %v2650 = vld [vmem:[#allocation2 + $0x2d8] sm:$0xff]
  %v2651 = vld [vmem:[#allocation2 + $0x2e0] sm:$0xff]
  %v2652 = vld [vmem:[#allocation2 + $0x2e8] sm:$0xff]
  %v2653 = vld [vmem:[#allocation2 + $0x2f0] sm:$0xff]
  %v2654 = vld [vmem:[#allocation2 + $0x2f8] sm:$0xff]
  %v2655 = vld [vmem:[#allocation2 + $0x300] sm:$0xff]
  %v2656 = vld [vmem:[#allocation2 + $0x308] sm:$0xff]
  %v2657 = vld [vmem:[#allocation2 + $0x310] sm:$0xff]
  %v2658 = vld [vmem:[#allocation2 + $0x318] sm:$0xff]
  %v2659 = vld [vmem:[#allocation2 + $0x320] sm:$0xff]
  %v2660 = vld [vmem:[#allocation2 + $0x328] sm:$0xff]
  %v2661 = vld [vmem:[#allocation2 + $0x330] sm:$0xff]
  %v2662 = vld [vmem:[#allocation2 + $0x338] sm:$0xff]
  %v2663 = vld [vmem:[#allocation2 + $0x340] sm:$0xff]
  %v2664 = vld [vmem:[#allocation2 + $0x348] sm:$0xff]
  %v2665 = vld [vmem:[#allocation2 + $0x350] sm:$0xff]
  %v2666 = vld [vmem:[#allocation2 + $0x358] sm:$0xff]
  %v2667 = vld [vmem:[#allocation2 + $0x360] sm:$0xff]
  %v2668 = vld [vmem:[#allocation2 + $0x368] sm:$0xff]
  %v2669 = vld [vmem:[#allocation2 + $0x370] sm:$0xff]
  %v2670 = vld [vmem:[#allocation2 + $0x378] sm:$0xff]
  %v2671 = vld [vmem:[#allocation2 + $0x380] sm:$0xff]
  %v2672 = vld [vmem:[#allocation2 + $0x388] sm:$0xff]
  %v2673 = vld [vmem:[#allocation2 + $0x390] sm:$0xff]
  %v2674 = vld [vmem:[#allocation2 + $0x398] sm:$0xff]
  %v2675 = vld [vmem:[#allocation2 + $0x3a0] sm:$0xff]
  %v2676 = vld [vmem:[#allocation2 + $0x3a8] sm:$0xff]
  %v2677 = vld [vmem:[#allocation2 + $0x3b0] sm:$0xff]
  %v2678 = vld [vmem:[#allocation2 + $0x3b8] sm:$0xff]
  %v2679 = vld [vmem:[#allocation2 + $0x3c0] sm:$0xff]
  %v2680 = vld [vmem:[#allocation2 + $0x3c8] sm:$0xff]
  %v2681 = vld [vmem:[#allocation2 + $0x3d0] sm:$0xff]
  %v2682 = vld [vmem:[#allocation2 + $0x3d8] sm:$0xff]
  %v2683 = vld [vmem:[#allocation2 + $0x3e0] sm:$0xff]
  %v2684 = vld [vmem:[#allocation2 + $0x3e8] sm:$0xff]
  %v2685 = vld [vmem:[#allocation2 + $0x3f0] sm:$0xff]
  %v2686 = vld [vmem:[#allocation2 + $0x3f8] sm:$0xff]
  %v2687 = vld [vmem:[#allocation2 + $0x400] sm:$0xff]
  %v2688 = vld [vmem:[#allocation2 + $0x408] sm:$0xff]
  %v2689 = vld [vmem:[#allocation2 + $0x410] sm:$0xff]
  %v2690 = vld [vmem:[#allocation2 + $0x418] sm:$0xff]
  %v2691 = vld [vmem:[#allocation2 + $0x420] sm:$0xff]
  %v2692 = vld [vmem:[#allocation2 + $0x428] sm:$0xff]
  %v2693 = vld [vmem:[#allocation2 + $0x430] sm:$0xff]
  %v2694 = vld [vmem:[#allocation2 + $0x438] sm:$0xff]
  %v2695 = vld [vmem:[#allocation2 + $0x440] sm:$0xff]
  %v2696 = vld [vmem:[#allocation2 + $0x448] sm:$0xff]
  %v2697 = vld [vmem:[#allocation2 + $0x450] sm:$0xff]
  %v2698 = vld [vmem:[#allocation2 + $0x458] sm:$0xff]
  %v2699 = vld [vmem:[#allocation2 + $0x460] sm:$0xff]
  %v2700 = vld [vmem:[#allocation2 + $0x468] sm:$0xff]
  %v2701 = vld [vmem:[#allocation2 + $0x470] sm:$0xff]
  %v2702 = vld [vmem:[#allocation2 + $0x478] sm:$0xff]
  %v2703 = vld [vmem:[#allocation2 + $0x480] sm:$0xff]
  %v2704 = vld [vmem:[#allocation2 + $0x488] sm:$0xff]
  %v2705 = vld [vmem:[#allocation2 + $0x490] sm:$0xff]
  %v2706 = vld [vmem:[#allocation2 + $0x498] sm:$0xff]
  %v2707 = vld [vmem:[#allocation2 + $0x4a0] sm:$0xff]
  %v2708 = vld [vmem:[#allocation2 + $0x4a8] sm:$0xff]
  %v2709 = vld [vmem:[#allocation2 + $0x4b0] sm:$0xff]
  %v2710 = vld [vmem:[#allocation2 + $0x4b8] sm:$0xff]
  %v2711 = vld [vmem:[#allocation2 + $0x4c0] sm:$0xff]
  %v2712 = vld [vmem:[#allocation2 + $0x4c8] sm:$0xff]
  %v2713 = vld [vmem:[#allocation2 + $0x4d0] sm:$0xff]
  %v2714 = vld [vmem:[#allocation2 + $0x4d8] sm:$0xff]
  %v2715 = vld [vmem:[#allocation2 + $0x4e0] sm:$0xff]
  %v2716 = vld [vmem:[#allocation2 + $0x4e8] sm:$0xff]
  %v2717 = vld [vmem:[#allocation2 + $0x4f0] sm:$0xff]
  %v2718 = vld [vmem:[#allocation2 + $0x4f8] sm:$0xff]
  %v2719 = vld [vmem:[#allocation2 + $0x500] sm:$0xff]
  %v2720 = vld [vmem:[#allocation2 + $0x508] sm:$0xff]
  %v2721 = vld [vmem:[#allocation2 + $0x510] sm:$0xff]
  %v2722 = vld [vmem:[#allocation2 + $0x518] sm:$0xff]
  %v2723 = vld [vmem:[#allocation2 + $0x520] sm:$0xff]
  %v2724 = vld [vmem:[#allocation2 + $0x528] sm:$0xff]
  %v2725 = vld [vmem:[#allocation2 + $0x530] sm:$0xff]
  %v2726 = vld [vmem:[#allocation2 + $0x538] sm:$0xff]
  %v2727 = vld [vmem:[#allocation2 + $0x540] sm:$0xff]
  %v2728 = vld [vmem:[#allocation2 + $0x548] sm:$0xff]
  %v2729 = vld [vmem:[#allocation2 + $0x550] sm:$0xff]
  %v2730 = vld [vmem:[#allocation2 + $0x558] sm:$0xff]
  %v2731 = vld [vmem:[#allocation2 + $0x560] sm:$0xff]
  %v2732 = vld [vmem:[#allocation2 + $0x568] sm:$0xff]
  %v2733 = vld [vmem:[#allocation2 + $0x570] sm:$0xff]
  %v2734 = vld [vmem:[#allocation2 + $0x578] sm:$0xff]
  %v2735 = vld [vmem:[#allocation2 + $0x580] sm:$0xff]
  %v2736 = vld [vmem:[#allocation2 + $0x588] sm:$0xff]
  %v2737 = vld [vmem:[#allocation2 + $0x590] sm:$0xff]
  %v2738 = vld [vmem:[#allocation2 + $0x598] sm:$0xff]
  %v2739 = vld [vmem:[#allocation2 + $0x5a0] sm:$0xff]
  %v2740 = vld [vmem:[#allocation2 + $0x5a8] sm:$0xff]
  %v2741 = vld [vmem:[#allocation2 + $0x5b0] sm:$0xff]
  %v2742 = vld [vmem:[#allocation2 + $0x5b8] sm:$0xff]
  %v2743 = vld [vmem:[#allocation2 + $0x5c0] sm:$0xff]
  %v2744 = vld [vmem:[#allocation2 + $0x5c8] sm:$0xff]
  %v2745 = vld [vmem:[#allocation2 + $0x5d0] sm:$0xff]
  %v2746 = vld [vmem:[#allocation2 + $0x5d8] sm:$0xff]
  %v2747 = vld [vmem:[#allocation2 + $0x5e0] sm:$0xff]
  %v2748 = vld [vmem:[#allocation2 + $0x5e8] sm:$0xff]
  %v2749 = vld [vmem:[#allocation2 + $0x5f0] sm:$0xff]
  %v2750 = vld [vmem:[#allocation2 + $0x5f8] sm:$0xff]
  %v2751 = vld [vmem:[#allocation2 + $0x600] sm:$0xff]
  %v2752 = vld [vmem:[#allocation2 + $0x608] sm:$0xff]
  %v2753 = vld [vmem:[#allocation2 + $0x610] sm:$0xff]
  %v2754 = vld [vmem:[#allocation2 + $0x618] sm:$0xff]
  %v2755 = vld [vmem:[#allocation2 + $0x620] sm:$0xff]
  %v2756 = vld [vmem:[#allocation2 + $0x628] sm:$0xff]
  %v2757 = vld [vmem:[#allocation2 + $0x630] sm:$0xff]
  %v2758 = vld [vmem:[#allocation2 + $0x638] sm:$0xff]
  %v2759 = vld [vmem:[#allocation2 + $0x640] sm:$0xff]
  %v2760 = vld [vmem:[#allocation2 + $0x648] sm:$0xff]
  %v2761 = vld [vmem:[#allocation2 + $0x650] sm:$0xff]
  %v2762 = vld [vmem:[#allocation2 + $0x658] sm:$0xff]
  %v2763 = vld [vmem:[#allocation2 + $0x660] sm:$0xff]
  %v2764 = vld [vmem:[#allocation2 + $0x668] sm:$0xff]
  %v2765 = vld [vmem:[#allocation2 + $0x670] sm:$0xff]
  %v2766 = vld [vmem:[#allocation2 + $0x678] sm:$0xff]
  %v2767 = vld [vmem:[#allocation2 + $0x680] sm:$0xff]
  %v2768 = vld [vmem:[#allocation2 + $0x688] sm:$0xff]
  %v2769 = vld [vmem:[#allocation2 + $0x690] sm:$0xff]
  %v2770 = vld [vmem:[#allocation2 + $0x698] sm:$0xff]
  %v2771 = vld [vmem:[#allocation2 + $0x6a0] sm:$0xff]
  %v2772 = vld [vmem:[#allocation2 + $0x6a8] sm:$0xff]
  %v2773 = vld [vmem:[#allocation2 + $0x6b0] sm:$0xff]
  %v2774 = vld [vmem:[#allocation2 + $0x6b8] sm:$0xff]
  %v2775 = vld [vmem:[#allocation2 + $0x6c0] sm:$0xf]
  %v2776 = vld [vmem:[#allocation2 + $0x6c8] sm:$0xf]
  %v2777 = vld [vmem:[#allocation2 + $0x6d0] sm:$0xf]
  %v2778 = vld [vmem:[#allocation2 + $0x6d8] sm:$0xf]
  %v2779 = vld [vmem:[#allocation2 + $0x6e0] sm:$0xf]
  %v2780 = vld [vmem:[#allocation2 + $0x6e8] sm:$0xf]
  %v2781 = vld [vmem:[#allocation2 + $0x6f0] sm:$0xf]
  %v2782 = vld [vmem:[#allocation2 + $0x6f8] sm:$0xf]
  %v2783 = vld [vmem:[#allocation2 + $0x700] sm:$0xf]
  %2784 = vmatprep.subr.mxu0 %v2560
  %2785 = vmatpush1.xpose.msra.mxu0 %v2559
  %2786 = vmatprep.subr.mxu0 %v2569
  %2787 = vmatpush1.xpose.msra.mxu0 %v2568
  %2788 = vmatprep.subr.mxu0 %v2578
  %2789 = vmatpush1.xpose.msra.mxu0 %v2577
  %2790 = vmatprep.subr.mxu0 %v2587
  %2791 = vmatpush1.xpose.msra.mxu0 %v2586
  %2792 = vmatprep.subr.mxu0 %v2596
  %2793 = vmatpush1.xpose.msra.mxu0 %v2595
  %2794 = vmatprep.subr.mxu0 %v2605
  %2795 = vmatpush1.xpose.msra.mxu0 %v2604
  %2796 = vmatprep.subr.mxu0 %v2614
  %2797 = vmatpush1.xpose.msra.mxu0 %v2613
  %2798 = vmatprep.subr.mxu0 %v2623
  %2799 = vmatpush1.xpose.msra.mxu0 %v2622
  %2800 = vmatprep.subr.mxu0 %v2632
  %2801 = vmatpush1.xpose.msra.mxu0 %v2631
  %2802 = vmatprep.subr.mxu0 %v2641
  %2803 = vmatpush1.xpose.msra.mxu0 %v2640
  %2804 = vmatprep.subr.mxu0 %v2650
  %2805 = vmatpush1.xpose.msra.mxu0 %v2649
  %2806 = vmatprep.subr.mxu0 %v2659
  %2807 = vmatpush1.xpose.msra.mxu0 %v2658
  %2808 = vmatprep.subr.mxu0 %v2668
  %2809 = vmatpush1.xpose.msra.mxu0 %v2667
  %2810 = vmatprep.subr.mxu0 %v2677
  %2811 = vmatpush1.xpose.msra.mxu0 %v2676
  %2812 = vmatprep.subr.mxu0 %v2686
  %2813 = vmatpush1.xpose.msra.mxu0 %v2685
  %2814 = vmatprep.subr.mxu0 %v2695
  %2815 = vmatpush1.xpose.msra.mxu0 %v2694
  %2816 = vmatprep.subr.mxu0 %v2704
  %2817 = vmatpush1.xpose.msra.mxu0 %v2703
  %2818 = vmatprep.subr.mxu0 %v2713
  %2819 = vmatpush1.xpose.msra.mxu0 %v2712
  %2820 = vmatprep.subr.mxu0 %v2722
  %2821 = vmatpush1.xpose.msra.mxu0 %v2721
  %2822 = vmatprep.subr.mxu0 %v2731
  %2823 = vmatpush1.xpose.msra.mxu0 %v2730
  %2824 = vmatprep.subr.mxu0 %v2740
  %2825 = vmatpush1.xpose.msra.mxu0 %v2739
  %2826 = vmatprep.subr.mxu0 %v2749
  %2827 = vmatpush1.xpose.msra.mxu0 %v2748
  %2828 = vmatprep.subr.mxu0 %v2758
  %2829 = vmatpush1.xpose.msra.mxu0 %v2757
  %2830 = vmatprep.subr.mxu0 %v2767
  %2831 = vmatpush1.xpose.msra.mxu0 %v2766
  %2832 = vmatprep.subr.mxu0 %v2776
  %2833 = vmatpush1.xpose.msra.mxu0 %v2775
  %2834 = vmatprep.subr.mxu0 0.0
  %2835 = vmatpush1.xpose.msra.mxu0 0.0
  %2836 = vmatprep.subr.mxu0 0.0
  %2837 = vmatpush1.xpose.msra.mxu0 0.0
  %2838 = vmatprep.subr.mxu0 0.0
  %2839 = vmatpush1.xpose.msra.mxu0 0.0
  %2840 = vmatprep.subr.mxu0 0.0
  %2841 = vmatpush1.xpose.msra.mxu0 0.0
  %2842 = vmatprep.subr.mxu0 0.0
  %2843 = vmatpush1.xpose.msra.mxu0 0.0
  %2844 = vmatprep.subr.mxu0 0.0
  %2845 = vmatpush1.xpose.msra.mxu0 0.0
  %2846 = vmatprep.subr.mxu0 0.0
  %2847 = vmatpush1.xpose.msra.mxu0 0.0
  %2848 = vmatprep.mubr.f32.mxu0 %v2272
  %2849 = vmatmul.mubr.f32.gmra.mrb[0].mxu0 %v2271
  %v2850 = vpop.f32.mrb[0].mxu0
  %v2851 = vadd.f32 0.0, %v2850
  %v2852 = vpop.f32.mrb[0].mxu0
  %v2853 = vadd.f32 0.0, %v2852
  %2854 = vmatprep.mubr.f32.mxu0 %v2281
  %2855 = vmatmul.mubr.f32.gmra.mrb[0].mxu0 %v2280
  %v2856 = vpop.f32.mrb[0].mxu0
  %v2857 = vadd.f32 0.0, %v2856
  %v2858 = vpop.f32.mrb[0].mxu0
  %v2859 = vadd.f32 0.0, %v2858
  %2860 = vmatprep.mubr.f32.mxu0 %v2290
  %2861 = vmatmul.mubr.f32.gmra.mrb[0].mxu0 %v2289
  %v2862 = vpop.f32.mrb[0].mxu0
  %v2863 = vadd.f32 0.0, %v2862
  %v2864 = vpop.f32.mrb[0].mxu0
  %v2865 = vadd.f32 0.0, %v2864
  %2866 = vmatprep.mubr.f32.mxu0 %v2299
  %2867 = vmatmul.mubr.f32.gmra.mrb[0].mxu0 %v2298
  %v2868 = vpop.f32.mrb[0].mxu0
  %v2869 = vadd.f32 0.0, %v2868
  %v2870 = vpop.f32.mrb[0].mxu0
  %v2871 = vadd.f32 0.0, %v2870
  %2872 = vmatprep.mubr.f32.mxu0 %v2308
  %2873 = vmatmul.mubr.f32.gmra.mrb[0].mxu0 %v2307
  %v2874 = vpop.f32.mrb[0].mxu0
  %v2875 = vadd.f32 0.0, %v2874
  %v2876 = vpop.f32.mrb[0].mxu0
  %v2877 = vadd.f32 0.0, %v2876
  %2878 = vmatprep.mubr.f32.mxu0 %v2317
  %2879 = vmatmul.mubr.f32.gmra.mrb[0].mxu0 %v2316
  %v2880 = vpop.f32.mrb[0].mxu0
  %v2881 = vadd.f32 0.0, %v2880
  %v2882 = vpop.f32.mrb[0].mxu0
  %v2883 = vadd.f32 0.0, %v2882
  %2884 = vmatprep.mubr.f32.mxu0 %v2326
  %2885 = vmatmul.mubr.f32.gmra.mrb[0].mxu0 %v2325
  %v2886 = vpop.f32.mrb[0].mxu0
  %v2887 = vadd.f32 0.0, %v2886
  %v2888 = vpop.f32.mrb[0].mxu0
  %v2889 = vadd.f32 0.0, %v2888
  %2890 = vmatprep.mubr.f32.mxu0 %v2335
  %2891 = vmatmul.mubr.f32.gmra.mrb[0].mxu0 %v2334
  %v2892 = vpop.f32.mrb[0].mxu0
  %v2893 = vadd.f32 0.0, %v2892
  %v2894 = vpop.f32.mrb[0].mxu0
  %v2895 = vadd.f32 0.0, %v2894
  %2896 = vmatprep.mubr.f32.mxu0 %v2344
  %2897 = vmatmul.mubr.f32.gmra.mrb[0].mxu0 %v2343
  %v2898 = vpop.f32.mrb[0].mxu0
  %v2899 = vadd.f32 0.0, %v2898
  %v2900 = vpop.f32.mrb[0].mxu0
  %v2901 = vadd.f32 0.0, %v2900
  %2902 = vmatprep.mubr.f32.mxu0 %v2353
  %2903 = vmatmul.mubr.f32.gmra.mrb[0].mxu0 %v2352
  %v2904 = vpop.f32.mrb[0].mxu0
  %v2905 = vadd.f32 0.0, %v2904
  %v2906 = vpop.f32.mrb[0].mxu0
  %v2907 = vadd.f32 0.0, %v2906
  %2908 = vmatprep.mubr.f32.mxu0 %v2362
  %2909 = vmatmul.mubr.f32.gmra.mrb[0].mxu0 %v2361
  %v2910 = vpop.f32.mrb[0].mxu0
  %v2911 = vadd.f32 0.0, %v2910
  %v2912 = vpop.f32.mrb[0].mxu0
  %v2913 = vadd.f32 0.0, %v2912
  %2914 = vmatprep.mubr.f32.mxu0 %v2371
  %2915 = vmatmul.mubr.f32.gmra.mrb[0].mxu0 %v2370
  %v2916 = vpop.f32.mrb[0].mxu0
  %v2917 = vadd.f32 0.0, %v2916
  %v2918 = vpop.f32.mrb[0].mxu0
  %v2919 = vadd.f32 0.0, %v2918
  %2920 = vmatprep.mubr.f32.mxu0 %v2380
  %2921 = vmatmul.mubr.f32.gmra.mrb[0].mxu0 %v2379
  %v2922 = vpop.f32.mrb[0].mxu0
  %v2923 = vadd.f32 0.0, %v2922
  %v2924 = vpop.f32.mrb[0].mxu0
  %v2925 = vadd.f32 0.0, %v2924
  %2926 = vmatprep.mubr.f32.mxu0 %v2389
  %2927 = vmatmul.mubr.f32.gmra.mrb[0].mxu0 %v2388
  %v2928 = vpop.f32.mrb[0].mxu0
  %v2929 = vadd.f32 0.0, %v2928
  %v2930 = vpop.f32.mrb[0].mxu0
  %v2931 = vadd.f32 0.0, %v2930
  %2932 = vmatprep.mubr.f32.mxu0 %v2398
  %2933 = vmatmul.mubr.f32.gmra.mrb[0].mxu0 %v2397
  %v2934 = vpop.f32.mrb[0].mxu0
  %v2935 = vadd.f32 0.0, %v2934
  %v2936 = vpop.f32.mrb[0].mxu0
  %v2937 = vadd.f32 0.0, %v2936
  %2938 = vmatprep.mubr.f32.mxu0 %v2407
  %2939 = vmatmul.mubr.f32.gmra.mrb[0].mxu0 %v2406
  %v2940 = vpop.f32.mrb[0].mxu0
  %v2941 = vadd.f32 0.0, %v2940
  %v2942 = vpop.f32.mrb[0].mxu0
  %v2943 = vadd.f32 0.0, %v2942
  %2944 = vmatprep.mubr.f32.mxu0 %v2416
  %2945 = vmatmul.mubr.f32.gmra.mrb[0].mxu0 %v2415
  %v2946 = vpop.f32.mrb[0].mxu0
  %v2947 = vadd.f32 0.0, %v2946
  %v2948 = vpop.f32.mrb[0].mxu0
  %v2949 = vadd.f32 0.0, %v2948
  %2950 = vmatprep.mubr.f32.mxu0 %v2425
  %2951 = vmatmul.mubr.f32.gmra.mrb[0].mxu0 %v2424
  %v2952 = vpop.f32.mrb[0].mxu0
  %v2953 = vadd.f32 0.0, %v2952
  %v2954 = vpop.f32.mrb[0].mxu0
  %v2955 = vadd.f32 0.0, %v2954
  %2956 = vmatprep.mubr.f32.mxu0 %v2434
  %2957 = vmatmul.mubr.f32.gmra.mrb[0].mxu0 %v2433
  %v2958 = vpop.f32.mrb[0].mxu0
  %v2959 = vadd.f32 0.0, %v2958
  %v2960 = vpop.f32.mrb[0].mxu0
  %v2961 = vadd.f32 0.0, %v2960
  %2962 = vmatprep.mubr.f32.mxu0 %v2443
  %2963 = vmatmul.mubr.f32.gmra.mrb[0].mxu0 %v2442
  %v2964 = vpop.f32.mrb[0].mxu0
  %v2965 = vadd.f32 0.0, %v2964
  %v2966 = vpop.f32.mrb[0].mxu0
  %v2967 = vadd.f32 0.0, %v2966
  %2968 = vmatprep.mubr.f32.mxu0 %v2452
  %2969 = vmatmul.mubr.f32.gmra.mrb[0].mxu0 %v2451
  %v2970 = vpop.f32.mrb[0].mxu0
  %v2971 = vadd.f32 0.0, %v2970
  %v2972 = vpop.f32.mrb[0].mxu0
  %v2973 = vadd.f32 0.0, %v2972
  %2974 = vmatprep.mubr.f32.mxu0 %v2461
  %2975 = vmatmul.mubr.f32.gmra.mrb[0].mxu0 %v2460
  %v2976 = vpop.f32.mrb[0].mxu0
  %v2977 = vadd.f32 0.0, %v2976
  %v2978 = vpop.f32.mrb[0].mxu0
  %v2979 = vadd.f32 0.0, %v2978
  %2980 = vmatprep.mubr.f32.mxu0 %v2470
  %2981 = vmatmul.mubr.f32.gmra.mrb[0].mxu0 %v2469
  %v2982 = vpop.f32.mrb[0].mxu0
  %v2983 = vadd.f32 0.0, %v2982
  %v2984 = vpop.f32.mrb[0].mxu0
  %v2985 = vadd.f32 0.0, %v2984
  %2986 = vmatprep.mubr.f32.mxu0 %v2479
  %2987 = vmatmul.mubr.f32.gmra.mrb[0].mxu0 %v2478
  %v2988 = vpop.f32.mrb[0].mxu0
  %v2989 = vadd.f32 0.0, %v2988
  %v2990 = vpop.f32.mrb[0].mxu0
  %v2991 = vadd.f32 0.0, %v2990
  %2992 = vmatprep.mubr.f32.mxu0 %v2488
  %2993 = vmatmul.mubr.f32.gmra.mrb[0].mxu0 %v2487
  %v2994 = vpop.f32.mrb[0].mxu0
  %v2995 = vadd.f32 0.0, %v2994
  %v2996 = vpop.f32.mrb[0].mxu0
  %v2997 = vadd.f32 0.0, %v2996
  %2998 = vmatprep.mubr.f32.mxu0 %v2497
  %2999 = vmatmul.mubr.f32.gmra.mrb[0].mxu0 %v2496
  %v3000 = vpop.f32.mrb[0].mxu0
  %v3001 = vadd.f32 0.0, %v3000
  %v3002 = vpop.f32.mrb[0].mxu0
  %v3003 = vadd.f32 0.0, %v3002
  %3004 = vmatprep.mubr.f32.mxu0 %v2506
  %3005 = vmatmul.mubr.f32.gmra.mrb[0].mxu0 %v2505
  %v3006 = vpop.f32.mrb[0].mxu0
  %v3007 = vadd.f32 0.0, %v3006
  %v3008 = vpop.f32.mrb[0].mxu0
  %v3009 = vadd.f32 0.0, %v3008
  %3010 = vmatprep.mubr.f32.mxu0 %v2515
  %3011 = vmatmul.mubr.f32.gmra.mrb[0].mxu0 %v2514
  %v3012 = vpop.f32.mrb[0].mxu0
  %v3013 = vadd.f32 0.0, %v3012
  %v3014 = vpop.f32.mrb[0].mxu0
  %v3015 = vadd.f32 0.0, %v3014
  %3016 = vmatprep.mubr.f32.mxu0 %v2524
  %3017 = vmatmul.mubr.f32.gmra.mrb[0].mxu0 %v2523
  %v3018 = vpop.f32.mrb[0].mxu0
  %v3019 = vadd.f32 0.0, %v3018
  %v3020 = vpop.f32.mrb[0].mxu0
  %v3021 = vadd.f32 0.0, %v3020
  %3022 = vmatprep.mubr.f32.mxu0 %v2533
  %3023 = vmatmul.mubr.f32.gmra.mrb[0].mxu0 %v2532
  %v3024 = vpop.f32.mrb[0].mxu0
  %v3025 = vadd.f32 0.0, %v3024
  %v3026 = vpop.f32.mrb[0].mxu0
  %v3027 = vadd.f32 0.0, %v3026
  %3028 = vmatprep.mubr.f32.mxu0 %v2542
  %3029 = vmatmul.mubr.f32.gmra.mrb[0].mxu0 %v2541
  %v3030 = vpop.f32.mrb[0].mxu0
  %v3031 = vadd.f32 0.0, %v3030
  %v3032 = vpop.f32.mrb[0].mxu0
  %v3033 = vadd.f32 0.0, %v3032
  %3034 = vmatprep.mubr.f32.mxu0 %v2551
  %3035 = vmatmul.mubr.f32.gmra.mrb[0].mxu0 %v2550
  %v3036 = vpop.f32.mrb[0].mxu0
  %v3037 = vadd.f32 0.0, %v3036
  %v3038 = vpop.f32.mrb[0].mxu0
  %v3039 = vadd.f32 0.0, %v3038
  %3040 = vdwg.mxu0
  %3041 = vmatprep.subr.mxu0 %v2562
  %3042 = vmatpush1.xpose.msra.mxu0 %v2561
  %3043 = vmatprep.subr.mxu0 %v2571
  %3044 = vmatpush1.xpose.msra.mxu0 %v2570
  %3045 = vmatprep.subr.mxu0 %v2580
  %3046 = vmatpush1.xpose.msra.mxu0 %v2579
  %3047 = vmatprep.subr.mxu0 %v2589
  %3048 = vmatpush1.xpose.msra.mxu0 %v2588
  %3049 = vmatprep.subr.mxu0 %v2598
  %3050 = vmatpush1.xpose.msra.mxu0 %v2597
  %3051 = vmatprep.subr.mxu0 %v2607
  %3052 = vmatpush1.xpose.msra.mxu0 %v2606
  %3053 = vmatprep.subr.mxu0 %v2616
  %3054 = vmatpush1.xpose.msra.mxu0 %v2615
  %3055 = vmatprep.subr.mxu0 %v2625
  %3056 = vmatpush1.xpose.msra.mxu0 %v2624
  %3057 = vmatprep.subr.mxu0 %v2634
  %3058 = vmatpush1.xpose.msra.mxu0 %v2633
  %3059 = vmatprep.subr.mxu0 %v2643
  %3060 = vmatpush1.xpose.msra.mxu0 %v2642
  %3061 = vmatprep.subr.mxu0 %v2652
  %3062 = vmatpush1.xpose.msra.mxu0 %v2651
  %3063 = vmatprep.subr.mxu0 %v2661
  %3064 = vmatpush1.xpose.msra.mxu0 %v2660
  %3065 = vmatprep.subr.mxu0 %v2670
  %3066 = vmatpush1.xpose.msra.mxu0 %v2669
  %3067 = vmatprep.subr.mxu0 %v2679
  %3068 = vmatpush1.xpose.msra.mxu0 %v2678
  %3069 = vmatprep.subr.mxu0 %v2688
  %3070 = vmatpush1.xpose.msra.mxu0 %v2687
  %3071 = vmatprep.subr.mxu0 %v2697
  %3072 = vmatpush1.xpose.msra.mxu0 %v2696
  %3073 = vmatprep.subr.mxu0 %v2706
  %3074 = vmatpush1.xpose.msra.mxu0 %v2705
  %3075 = vmatprep.subr.mxu0 %v2715
  %3076 = vmatpush1.xpose.msra.mxu0 %v2714
  %3077 = vmatprep.subr.mxu0 %v2724
  %3078 = vmatpush1.xpose.msra.mxu0 %v2723
  %3079 = vmatprep.subr.mxu0 %v2733
  %3080 = vmatpush1.xpose.msra.mxu0 %v2732
  %3081 = vmatprep.subr.mxu0 %v2742
  %3082 = vmatpush1.xpose.msra.mxu0 %v2741
  %3083 = vmatprep.subr.mxu0 %v2751
  %3084 = vmatpush1.xpose.msra.mxu0 %v2750
  %3085 = vmatprep.subr.mxu0 %v2760
  %3086 = vmatpush1.xpose.msra.mxu0 %v2759
  %3087 = vmatprep.subr.mxu0 %v2769
  %3088 = vmatpush1.xpose.msra.mxu0 %v2768
  %3089 = vmatprep.subr.mxu0 %v2778
  %3090 = vmatpush1.xpose.msra.mxu0 %v2777
  %3091 = vmatprep.subr.mxu0 0.0
  %3092 = vmatpush1.xpose.msra.mxu0 0.0
  %3093 = vmatprep.subr.mxu0 0.0
  %3094 = vmatpush1.xpose.msra.mxu0 0.0
  %3095 = vmatprep.subr.mxu0 0.0
  %3096 = vmatpush1.xpose.msra.mxu0 0.0
  %3097 = vmatprep.subr.mxu0 0.0
  %3098 = vmatpush1.xpose.msra.mxu0 0.0
  %3099 = vmatprep.subr.mxu0 0.0
  %3100 = vmatpush1.xpose.msra.mxu0 0.0
  %3101 = vmatprep.subr.mxu0 0.0
  %3102 = vmatpush1.xpose.msra.mxu0 0.0
  %3103 = vmatprep.subr.mxu0 0.0
  %3104 = vmatpush1.xpose.msra.mxu0 0.0
  %3105 = vmatprep.mubr.f32.mxu0 %v2274
  %3106 = vmatmul.mubr.f32.gmra.mrb[0].mxu0 %v2273
  %v3107 = vpop.f32.mrb[0].mxu0
  %v3108 = vadd.f32 %v2851, %v3107
  %v3109 = vpop.f32.mrb[0].mxu0
  %v3110 = vadd.f32 %v2853, %v3109
  %3111 = vmatprep.mubr.f32.mxu0 %v2283
  %3112 = vmatmul.mubr.f32.gmra.mrb[0].mxu0 %v2282
  %v3113 = vpop.f32.mrb[0].mxu0
  %v3114 = vadd.f32 %v2857, %v3113
  %v3115 = vpop.f32.mrb[0].mxu0
  %v3116 = vadd.f32 %v2859, %v3115
  %3117 = vmatprep.mubr.f32.mxu0 %v2292
  %3118 = vmatmul.mubr.f32.gmra.mrb[0].mxu0 %v2291
  %v3119 = vpop.f32.mrb[0].mxu0
  %v3120 = vadd.f32 %v2863, %v3119
  %v3121 = vpop.f32.mrb[0].mxu0
  %v3122 = vadd.f32 %v2865, %v3121
  %3123 = vmatprep.mubr.f32.mxu0 %v2301
  %3124 = vmatmul.mubr.f32.gmra.mrb[0].mxu0 %v2300
  %v3125 = vpop.f32.mrb[0].mxu0
  %v3126 = vadd.f32 %v2869, %v3125
  %v3127 = vpop.f32.mrb[0].mxu0
  %v3128 = vadd.f32 %v2871, %v3127
  %3129 = vmatprep.mubr.f32.mxu0 %v2310
  %3130 = vmatmul.mubr.f32.gmra.mrb[0].mxu0 %v2309
  %v3131 = vpop.f32.mrb[0].mxu0
  %v3132 = vadd.f32 %v2875, %v3131
  %v3133 = vpop.f32.mrb[0].mxu0
  %v3134 = vadd.f32 %v2877, %v3133
  %3135 = vmatprep.mubr.f32.mxu0 %v2319
  %3136 = vmatmul.mubr.f32.gmra.mrb[0].mxu0 %v2318
  %v3137 = vpop.f32.mrb[0].mxu0
  %v3138 = vadd.f32 %v2881, %v3137
  %v3139 = vpop.f32.mrb[0].mxu0
  %v3140 = vadd.f32 %v2883, %v3139
  %3141 = vmatprep.mubr.f32.mxu0 %v2328
  %3142 = vmatmul.mubr.f32.gmra.mrb[0].mxu0 %v2327
  %v3143 = vpop.f32.mrb[0].mxu0
  %v3144 = vadd.f32 %v2887, %v3143
  %v3145 = vpop.f32.mrb[0].mxu0
  %v3146 = vadd.f32 %v2889, %v3145
  %3147 = vmatprep.mubr.f32.mxu0 %v2337
  %3148 = vmatmul.mubr.f32.gmra.mrb[0].mxu0 %v2336
  %v3149 = vpop.f32.mrb[0].mxu0
  %v3150 = vadd.f32 %v2893, %v3149
  %v3151 = vpop.f32.mrb[0].mxu0
  %v3152 = vadd.f32 %v2895, %v3151
  %3153 = vmatprep.mubr.f32.mxu0 %v2346
  %3154 = vmatmul.mubr.f32.gmra.mrb[0].mxu0 %v2345
  %v3155 = vpop.f32.mrb[0].mxu0
  %v3156 = vadd.f32 %v2899, %v3155
  %v3157 = vpop.f32.mrb[0].mxu0
  %v3158 = vadd.f32 %v2901, %v3157
  %3159 = vmatprep.mubr.f32.mxu0 %v2355
  %3160 = vmatmul.mubr.f32.gmra.mrb[0].mxu0 %v2354
  %v3161 = vpop.f32.mrb[0].mxu0
  %v3162 = vadd.f32 %v2905, %v3161
  %v3163 = vpop.f32.mrb[0].mxu0
  %v3164 = vadd.f32 %v2907, %v3163
  %3165 = vmatprep.mubr.f32.mxu0 %v2364
  %3166 = vmatmul.mubr.f32.gmra.mrb[0].mxu0 %v2363
  %v3167 = vpop.f32.mrb[0].mxu0
  %v3168 = vadd.f32 %v2911, %v3167
  %v3169 = vpop.f32.mrb[0].mxu0
  %v3170 = vadd.f32 %v2913, %v3169
  %3171 = vmatprep.mubr.f32.mxu0 %v2373
  %3172 = vmatmul.mubr.f32.gmra.mrb[0].mxu0 %v2372
  %v3173 = vpop.f32.mrb[0].mxu0
  %v3174 = vadd.f32 %v2917, %v3173
  %v3175 = vpop.f32.mrb[0].mxu0
  %v3176 = vadd.f32 %v2919, %v3175
  %3177 = vmatprep.mubr.f32.mxu0 %v2382
  %3178 = vmatmul.mubr.f32.gmra.mrb[0].mxu0 %v2381
  %v3179 = vpop.f32.mrb[0].mxu0
  %v3180 = vadd.f32 %v2923, %v3179
  %v3181 = vpop.f32.mrb[0].mxu0
  %v3182 = vadd.f32 %v2925, %v3181
  %3183 = vmatprep.mubr.f32.mxu0 %v2391
  %3184 = vmatmul.mubr.f32.gmra.mrb[0].mxu0 %v2390
  %v3185 = vpop.f32.mrb[0].mxu0
  %v3186 = vadd.f32 %v2929, %v3185
  %v3187 = vpop.f32.mrb[0].mxu0
  %v3188 = vadd.f32 %v2931, %v3187
  %3189 = vmatprep.mubr.f32.mxu0 %v2400
  %3190 = vmatmul.mubr.f32.gmra.mrb[0].mxu0 %v2399
  %v3191 = vpop.f32.mrb[0].mxu0
  %v3192 = vadd.f32 %v2935, %v3191
  %v3193 = vpop.f32.mrb[0].mxu0
  %v3194 = vadd.f32 %v2937, %v3193
  %3195 = vmatprep.mubr.f32.mxu0 %v2409
  %3196 = vmatmul.mubr.f32.gmra.mrb[0].mxu0 %v2408
  %v3197 = vpop.f32.mrb[0].mxu0
  %v3198 = vadd.f32 %v2941, %v3197
  %v3199 = vpop.f32.mrb[0].mxu0
  %v3200 = vadd.f32 %v2943, %v3199
  %3201 = vmatprep.mubr.f32.mxu0 %v2418
  %3202 = vmatmul.mubr.f32.gmra.mrb[0].mxu0 %v2417
  %v3203 = vpop.f32.mrb[0].mxu0
  %v3204 = vadd.f32 %v2947, %v3203
  %v3205 = vpop.f32.mrb[0].mxu0
  %v3206 = vadd.f32 %v2949, %v3205
  %3207 = vmatprep.mubr.f32.mxu0 %v2427
  %3208 = vmatmul.mubr.f32.gmra.mrb[0].mxu0 %v2426
  %v3209 = vpop.f32.mrb[0].mxu0
  %v3210 = vadd.f32 %v2953, %v3209
  %v3211 = vpop.f32.mrb[0].mxu0
  %v3212 = vadd.f32 %v2955, %v3211
  %3213 = vmatprep.mubr.f32.mxu0 %v2436
  %3214 = vmatmul.mubr.f32.gmra.mrb[0].mxu0 %v2435
  %v3215 = vpop.f32.mrb[0].mxu0
  %v3216 = vadd.f32 %v2959, %v3215
  %v3217 = vpop.f32.mrb[0].mxu0
  %v3218 = vadd.f32 %v2961, %v3217
  %3219 = vmatprep.mubr.f32.mxu0 %v2445
  %3220 = vmatmul.mubr.f32.gmra.mrb[0].mxu0 %v2444
  %v3221 = vpop.f32.mrb[0].mxu0
  %v3222 = vadd.f32 %v2965, %v3221
  %v3223 = vpop.f32.mrb[0].mxu0
  %v3224 = vadd.f32 %v2967, %v3223
  %3225 = vmatprep.mubr.f32.mxu0 %v2454
  %3226 = vmatmul.mubr.f32.gmra.mrb[0].mxu0 %v2453
  %v3227 = vpop.f32.mrb[0].mxu0
  %v3228 = vadd.f32 %v2971, %v3227
  %v3229 = vpop.f32.mrb[0].mxu0
  %v3230 = vadd.f32 %v2973, %v3229
  %3231 = vmatprep.mubr.f32.mxu0 %v2463
  %3232 = vmatmul.mubr.f32.gmra.mrb[0].mxu0 %v2462
  %v3233 = vpop.f32.mrb[0].mxu0
  %v3234 = vadd.f32 %v2977, %v3233
  %v3235 = vpop.f32.mrb[0].mxu0
  %v3236 = vadd.f32 %v2979, %v3235
  %3237 = vmatprep.mubr.f32.mxu0 %v2472
  %3238 = vmatmul.mubr.f32.gmra.mrb[0].mxu0 %v2471
  %v3239 = vpop.f32.mrb[0].mxu0
  %v3240 = vadd.f32 %v2983, %v3239
  %v3241 = vpop.f32.mrb[0].mxu0
  %v3242 = vadd.f32 %v2985, %v3241
  %3243 = vmatprep.mubr.f32.mxu0 %v2481
  %3244 = vmatmul.mubr.f32.gmra.mrb[0].mxu0 %v2480
  %v3245 = vpop.f32.mrb[0].mxu0
  %v3246 = vadd.f32 %v2989, %v3245
  %v3247 = vpop.f32.mrb[0].mxu0
  %v3248 = vadd.f32 %v2991, %v3247
  %3249 = vmatprep.mubr.f32.mxu0 %v2490
  %3250 = vmatmul.mubr.f32.gmra.mrb[0].mxu0 %v2489
  %v3251 = vpop.f32.mrb[0].mxu0
  %v3252 = vadd.f32 %v2995, %v3251
  %v3253 = vpop.f32.mrb[0].mxu0
  %v3254 = vadd.f32 %v2997, %v3253
  %3255 = vmatprep.mubr.f32.mxu0 %v2499
  %3256 = vmatmul.mubr.f32.gmra.mrb[0].mxu0 %v2498
  %v3257 = vpop.f32.mrb[0].mxu0
  %v3258 = vadd.f32 %v3001, %v3257
  %v3259 = vpop.f32.mrb[0].mxu0
  %v3260 = vadd.f32 %v3003, %v3259
  %3261 = vmatprep.mubr.f32.mxu0 %v2508
  %3262 = vmatmul.mubr.f32.gmra.mrb[0].mxu0 %v2507
  %v3263 = vpop.f32.mrb[0].mxu0
  %v3264 = vadd.f32 %v3007, %v3263
  %v3265 = vpop.f32.mrb[0].mxu0
  %v3266 = vadd.f32 %v3009, %v3265
  %3267 = vmatprep.mubr.f32.mxu0 %v2517
  %3268 = vmatmul.mubr.f32.gmra.mrb[0].mxu0 %v2516
  %v3269 = vpop.f32.mrb[0].mxu0
  %v3270 = vadd.f32 %v3013, %v3269
  %v3271 = vpop.f32.mrb[0].mxu0
  %v3272 = vadd.f32 %v3015, %v3271
  %3273 = vmatprep.mubr.f32.mxu0 %v2526
  %3274 = vmatmul.mubr.f32.gmra.mrb[0].mxu0 %v2525
  %v3275 = vpop.f32.mrb[0].mxu0
  %v3276 = vadd.f32 %v3019, %v3275
  %v3277 = vpop.f32.mrb[0].mxu0
  %v3278 = vadd.f32 %v3021, %v3277
  %3279 = vmatprep.mubr.f32.mxu0 %v2535
  %3280 = vmatmul.mubr.f32.gmra.mrb[0].mxu0 %v2534
  %v3281 = vpop.f32.mrb[0].mxu0
  %v3282 = vadd.f32 %v3025, %v3281
  %v3283 = vpop.f32.mrb[0].mxu0
  %v3284 = vadd.f32 %v3027, %v3283
  %3285 = vmatprep.mubr.f32.mxu0 %v2544
  %3286 = vmatmul.mubr.f32.gmra.mrb[0].mxu0 %v2543
  %v3287 = vpop.f32.mrb[0].mxu0
  %v3288 = vadd.f32 %v3031, %v3287
  %v3289 = vpop.f32.mrb[0].mxu0
  %v3290 = vadd.f32 %v3033, %v3289
  %3291 = vmatprep.mubr.f32.mxu0 %v2553
  %3292 = vmatmul.mubr.f32.gmra.mrb[0].mxu0 %v2552
  %v3293 = vpop.f32.mrb[0].mxu0
  %v3294 = vadd.f32 %v3037, %v3293
  %v3295 = vpop.f32.mrb[0].mxu0
  %v3296 = vadd.f32 %v3039, %v3295
  %3297 = vdwg.mxu0
  %3298 = vmatprep.subr.mxu0 %v2564
  %3299 = vmatpush1.xpose.msra.mxu0 %v2563
  %3300 = vmatprep.subr.mxu0 %v2573
  %3301 = vmatpush1.xpose.msra.mxu0 %v2572
  %3302 = vmatprep.subr.mxu0 %v2582
  %3303 = vmatpush1.xpose.msra.mxu0 %v2581
  %3304 = vmatprep.subr.mxu0 %v2591
  %3305 = vmatpush1.xpose.msra.mxu0 %v2590
  %3306 = vmatprep.subr.mxu0 %v2600
  %3307 = vmatpush1.xpose.msra.mxu0 %v2599
  %3308 = vmatprep.subr.mxu0 %v2609
  %3309 = vmatpush1.xpose.msra.mxu0 %v2608
  %3310 = vmatprep.subr.mxu0 %v2618
  %3311 = vmatpush1.xpose.msra.mxu0 %v2617
  %3312 = vmatprep.subr.mxu0 %v2627
  %3313 = vmatpush1.xpose.msra.mxu0 %v2626
  %3314 = vmatprep.subr.mxu0 %v2636
  %3315 = vmatpush1.xpose.msra.mxu0 %v2635
  %3316 = vmatprep.subr.mxu0 %v2645
  %3317 = vmatpush1.xpose.msra.mxu0 %v2644
  %3318 = vmatprep.subr.mxu0 %v2654
  %3319 = vmatpush1.xpose.msra.mxu0 %v2653
  %3320 = vmatprep.subr.mxu0 %v2663
  %3321 = vmatpush1.xpose.msra.mxu0 %v2662
  %3322 = vmatprep.subr.mxu0 %v2672
  %3323 = vmatpush1.xpose.msra.mxu0 %v2671
  %3324 = vmatprep.subr.mxu0 %v2681
  %3325 = vmatpush1.xpose.msra.mxu0 %v2680
  %3326 = vmatprep.subr.mxu0 %v2690
  %3327 = vmatpush1.xpose.msra.mxu0 %v2689
  %3328 = vmatprep.subr.mxu0 %v2699
  %3329 = vmatpush1.xpose.msra.mxu0 %v2698
  %3330 = vmatprep.subr.mxu0 %v2708
  %3331 = vmatpush1.xpose.msra.mxu0 %v2707
  %3332 = vmatprep.subr.mxu0 %v2717
  %3333 = vmatpush1.xpose.msra.mxu0 %v2716
  %3334 = vmatprep.subr.mxu0 %v2726
  %3335 = vmatpush1.xpose.msra.mxu0 %v2725
  %3336 = vmatprep.subr.mxu0 %v2735
  %3337 = vmatpush1.xpose.msra.mxu0 %v2734
  %3338 = vmatprep.subr.mxu0 %v2744
  %3339 = vmatpush1.xpose.msra.mxu0 %v2743
  %3340 = vmatprep.subr.mxu0 %v2753
  %3341 = vmatpush1.xpose.msra.mxu0 %v2752
  %3342 = vmatprep.subr.mxu0 %v2762
  %3343 = vmatpush1.xpose.msra.mxu0 %v2761
  %3344 = vmatprep.subr.mxu0 %v2771
  %3345 = vmatpush1.xpose.msra.mxu0 %v2770
  %3346 = vmatprep.subr.mxu0 %v2780
  %3347 = vmatpush1.xpose.msra.mxu0 %v2779
  %3348 = vmatprep.subr.mxu0 0.0
  %3349 = vmatpush1.xpose.msra.mxu0 0.0
  %3350 = vmatprep.subr.mxu0 0.0
  %3351 = vmatpush1.xpose.msra.mxu0 0.0
  %3352 = vmatprep.subr.mxu0 0.0
  %3353 = vmatpush1.xpose.msra.mxu0 0.0
  %3354 = vmatprep.subr.mxu0 0.0
  %3355 = vmatpush1.xpose.msra.mxu0 0.0
  %3356 = vmatprep.subr.mxu0 0.0
  %3357 = vmatpush1.xpose.msra.mxu0 0.0
  %3358 = vmatprep.subr.mxu0 0.0
  %3359 = vmatpush1.xpose.msra.mxu0 0.0
  %3360 = vmatprep.subr.mxu0 0.0
  %3361 = vmatpush1.xpose.msra.mxu0 0.0
  %3362 = vmatprep.mubr.f32.mxu0 %v2276
  %3363 = vmatmul.mubr.f32.gmra.mrb[0].mxu0 %v2275
  %v3364 = vpop.f32.mrb[0].mxu0
  %v3365 = vadd.f32 %v3108, %v3364
  %v3366 = vpop.f32.mrb[0].mxu0
  %v3367 = vadd.f32 %v3110, %v3366
  %3368 = vmatprep.mubr.f32.mxu0 %v2285
  %3369 = vmatmul.mubr.f32.gmra.mrb[0].mxu0 %v2284
  %v3370 = vpop.f32.mrb[0].mxu0
  %v3371 = vadd.f32 %v3114, %v3370
  %v3372 = vpop.f32.mrb[0].mxu0
  %v3373 = vadd.f32 %v3116, %v3372
  %3374 = vmatprep.mubr.f32.mxu0 %v2294
  %3375 = vmatmul.mubr.f32.gmra.mrb[0].mxu0 %v2293
  %v3376 = vpop.f32.mrb[0].mxu0
  %v3377 = vadd.f32 %v3120, %v3376
  %v3378 = vpop.f32.mrb[0].mxu0
  %v3379 = vadd.f32 %v3122, %v3378
  %3380 = vmatprep.mubr.f32.mxu0 %v2303
  %3381 = vmatmul.mubr.f32.gmra.mrb[0].mxu0 %v2302
  %v3382 = vpop.f32.mrb[0].mxu0
  %v3383 = vadd.f32 %v3126, %v3382
  %v3384 = vpop.f32.mrb[0].mxu0
  %v3385 = vadd.f32 %v3128, %v3384
  %3386 = vmatprep.mubr.f32.mxu0 %v2312
  %3387 = vmatmul.mubr.f32.gmra.mrb[0].mxu0 %v2311
  %v3388 = vpop.f32.mrb[0].mxu0
  %v3389 = vadd.f32 %v3132, %v3388
  %v3390 = vpop.f32.mrb[0].mxu0
  %v3391 = vadd.f32 %v3134, %v3390
  %3392 = vmatprep.mubr.f32.mxu0 %v2321
  %3393 = vmatmul.mubr.f32.gmra.mrb[0].mxu0 %v2320
  %v3394 = vpop.f32.mrb[0].mxu0
  %v3395 = vadd.f32 %v3138, %v3394
  %v3396 = vpop.f32.mrb[0].mxu0
  %v3397 = vadd.f32 %v3140, %v3396
  %3398 = vmatprep.mubr.f32.mxu0 %v2330
  %3399 = vmatmul.mubr.f32.gmra.mrb[0].mxu0 %v2329
  %v3400 = vpop.f32.mrb[0].mxu0
  %v3401 = vadd.f32 %v3144, %v3400
  %v3402 = vpop.f32.mrb[0].mxu0
  %v3403 = vadd.f32 %v3146, %v3402
  %3404 = vmatprep.mubr.f32.mxu0 %v2339
  %3405 = vmatmul.mubr.f32.gmra.mrb[0].mxu0 %v2338
  %v3406 = vpop.f32.mrb[0].mxu0
  %v3407 = vadd.f32 %v3150, %v3406
  %v3408 = vpop.f32.mrb[0].mxu0
  %v3409 = vadd.f32 %v3152, %v3408
  %3410 = vmatprep.mubr.f32.mxu0 %v2348
  %3411 = vmatmul.mubr.f32.gmra.mrb[0].mxu0 %v2347
  %v3412 = vpop.f32.mrb[0].mxu0
  %v3413 = vadd.f32 %v3156, %v3412
  %v3414 = vpop.f32.mrb[0].mxu0
  %v3415 = vadd.f32 %v3158, %v3414
  %3416 = vmatprep.mubr.f32.mxu0 %v2357
  %3417 = vmatmul.mubr.f32.gmra.mrb[0].mxu0 %v2356
  %v3418 = vpop.f32.mrb[0].mxu0
  %v3419 = vadd.f32 %v3162, %v3418
  %v3420 = vpop.f32.mrb[0].mxu0
  %v3421 = vadd.f32 %v3164, %v3420
  %3422 = vmatprep.mubr.f32.mxu0 %v2366
  %3423 = vmatmul.mubr.f32.gmra.mrb[0].mxu0 %v2365
  %v3424 = vpop.f32.mrb[0].mxu0
  %v3425 = vadd.f32 %v3168, %v3424
  %v3426 = vpop.f32.mrb[0].mxu0
  %v3427 = vadd.f32 %v3170, %v3426
  %3428 = vmatprep.mubr.f32.mxu0 %v2375
  %3429 = vmatmul.mubr.f32.gmra.mrb[0].mxu0 %v2374
  %v3430 = vpop.f32.mrb[0].mxu0
  %v3431 = vadd.f32 %v3174, %v3430
  %v3432 = vpop.f32.mrb[0].mxu0
  %v3433 = vadd.f32 %v3176, %v3432
  %3434 = vmatprep.mubr.f32.mxu0 %v2384
  %3435 = vmatmul.mubr.f32.gmra.mrb[0].mxu0 %v2383
  %v3436 = vpop.f32.mrb[0].mxu0
  %v3437 = vadd.f32 %v3180, %v3436
  %v3438 = vpop.f32.mrb[0].mxu0
  %v3439 = vadd.f32 %v3182, %v3438
  %3440 = vmatprep.mubr.f32.mxu0 %v2393
  %3441 = vmatmul.mubr.f32.gmra.mrb[0].mxu0 %v2392
  %v3442 = vpop.f32.mrb[0].mxu0
  %v3443 = vadd.f32 %v3186, %v3442
  %v3444 = vpop.f32.mrb[0].mxu0
  %v3445 = vadd.f32 %v3188, %v3444
  %3446 = vmatprep.mubr.f32.mxu0 %v2402
  %3447 = vmatmul.mubr.f32.gmra.mrb[0].mxu0 %v2401
  %v3448 = vpop.f32.mrb[0].mxu0
  %v3449 = vadd.f32 %v3192, %v3448
  %v3450 = vpop.f32.mrb[0].mxu0
  %v3451 = vadd.f32 %v3194, %v3450
  %3452 = vmatprep.mubr.f32.mxu0 %v2411
  %3453 = vmatmul.mubr.f32.gmra.mrb[0].mxu0 %v2410
  %v3454 = vpop.f32.mrb[0].mxu0
  %v3455 = vadd.f32 %v3198, %v3454
  %v3456 = vpop.f32.mrb[0].mxu0
  %v3457 = vadd.f32 %v3200, %v3456
  %3458 = vmatprep.mubr.f32.mxu0 %v2420
  %3459 = vmatmul.mubr.f32.gmra.mrb[0].mxu0 %v2419
  %v3460 = vpop.f32.mrb[0].mxu0
  %v3461 = vadd.f32 %v3204, %v3460
  %v3462 = vpop.f32.mrb[0].mxu0
  %v3463 = vadd.f32 %v3206, %v3462
  %3464 = vmatprep.mubr.f32.mxu0 %v2429
  %3465 = vmatmul.mubr.f32.gmra.mrb[0].mxu0 %v2428
  %v3466 = vpop.f32.mrb[0].mxu0
  %v3467 = vadd.f32 %v3210, %v3466
  %v3468 = vpop.f32.mrb[0].mxu0
  %v3469 = vadd.f32 %v3212, %v3468
  %3470 = vmatprep.mubr.f32.mxu0 %v2438
  %3471 = vmatmul.mubr.f32.gmra.mrb[0].mxu0 %v2437
  %v3472 = vpop.f32.mrb[0].mxu0
  %v3473 = vadd.f32 %v3216, %v3472
  %v3474 = vpop.f32.mrb[0].mxu0
  %v3475 = vadd.f32 %v3218, %v3474
  %3476 = vmatprep.mubr.f32.mxu0 %v2447
  %3477 = vmatmul.mubr.f32.gmra.mrb[0].mxu0 %v2446
  %v3478 = vpop.f32.mrb[0].mxu0
  %v3479 = vadd.f32 %v3222, %v3478
  %v3480 = vpop.f32.mrb[0].mxu0
  %v3481 = vadd.f32 %v3224, %v3480
  %3482 = vmatprep.mubr.f32.mxu0 %v2456
  %3483 = vmatmul.mubr.f32.gmra.mrb[0].mxu0 %v2455
  %v3484 = vpop.f32.mrb[0].mxu0
  %v3485 = vadd.f32 %v3228, %v3484
  %v3486 = vpop.f32.mrb[0].mxu0
  %v3487 = vadd.f32 %v3230, %v3486
  %3488 = vmatprep.mubr.f32.mxu0 %v2465
  %3489 = vmatmul.mubr.f32.gmra.mrb[0].mxu0 %v2464
  %v3490 = vpop.f32.mrb[0].mxu0
  %v3491 = vadd.f32 %v3234, %v3490
  %v3492 = vpop.f32.mrb[0].mxu0
  %v3493 = vadd.f32 %v3236, %v3492
  %3494 = vmatprep.mubr.f32.mxu0 %v2474
  %3495 = vmatmul.mubr.f32.gmra.mrb[0].mxu0 %v2473
  %v3496 = vpop.f32.mrb[0].mxu0
  %v3497 = vadd.f32 %v3240, %v3496
  %v3498 = vpop.f32.mrb[0].mxu0
  %v3499 = vadd.f32 %v3242, %v3498
  %3500 = vmatprep.mubr.f32.mxu0 %v2483
  %3501 = vmatmul.mubr.f32.gmra.mrb[0].mxu0 %v2482
  %v3502 = vpop.f32.mrb[0].mxu0
  %v3503 = vadd.f32 %v3246, %v3502
  %v3504 = vpop.f32.mrb[0].mxu0
  %v3505 = vadd.f32 %v3248, %v3504
  %3506 = vmatprep.mubr.f32.mxu0 %v2492
  %3507 = vmatmul.mubr.f32.gmra.mrb[0].mxu0 %v2491
  %v3508 = vpop.f32.mrb[0].mxu0
  %v3509 = vadd.f32 %v3252, %v3508
  %v3510 = vpop.f32.mrb[0].mxu0
  %v3511 = vadd.f32 %v3254, %v3510
  %3512 = vmatprep.mubr.f32.mxu0 %v2501
  %3513 = vmatmul.mubr.f32.gmra.mrb[0].mxu0 %v2500
  %v3514 = vpop.f32.mrb[0].mxu0
  %v3515 = vadd.f32 %v3258, %v3514
  %v3516 = vpop.f32.mrb[0].mxu0
  %v3517 = vadd.f32 %v3260, %v3516
  %3518 = vmatprep.mubr.f32.mxu0 %v2510
  %3519 = vmatmul.mubr.f32.gmra.mrb[0].mxu0 %v2509
  %v3520 = vpop.f32.mrb[0].mxu0
  %v3521 = vadd.f32 %v3264, %v3520
  %v3522 = vpop.f32.mrb[0].mxu0
  %v3523 = vadd.f32 %v3266, %v3522
  %3524 = vmatprep.mubr.f32.mxu0 %v2519
  %3525 = vmatmul.mubr.f32.gmra.mrb[0].mxu0 %v2518
  %v3526 = vpop.f32.mrb[0].mxu0
  %v3527 = vadd.f32 %v3270, %v3526
  %v3528 = vpop.f32.mrb[0].mxu0
  %v3529 = vadd.f32 %v3272, %v3528
  %3530 = vmatprep.mubr.f32.mxu0 %v2528
  %3531 = vmatmul.mubr.f32.gmra.mrb[0].mxu0 %v2527
  %v3532 = vpop.f32.mrb[0].mxu0
  %v3533 = vadd.f32 %v3276, %v3532
  %v3534 = vpop.f32.mrb[0].mxu0
  %v3535 = vadd.f32 %v3278, %v3534
  %3536 = vmatprep.mubr.f32.mxu0 %v2537
  %3537 = vmatmul.mubr.f32.gmra.mrb[0].mxu0 %v2536
  %v3538 = vpop.f32.mrb[0].mxu0
  %v3539 = vadd.f32 %v3282, %v3538
  %v3540 = vpop.f32.mrb[0].mxu0
  %v3541 = vadd.f32 %v3284, %v3540
  %3542 = vmatprep.mubr.f32.mxu0 %v2546
  %3543 = vmatmul.mubr.f32.gmra.mrb[0].mxu0 %v2545
  %v3544 = vpop.f32.mrb[0].mxu0
  %v3545 = vadd.f32 %v3288, %v3544
  %v3546 = vpop.f32.mrb[0].mxu0
  %v3547 = vadd.f32 %v3290, %v3546
  %3548 = vmatprep.mubr.f32.mxu0 %v2555
  %3549 = vmatmul.mubr.f32.gmra.mrb[0].mxu0 %v2554
  %v3550 = vpop.f32.mrb[0].mxu0
  %v3551 = vadd.f32 %v3294, %v3550
  %v3552 = vpop.f32.mrb[0].mxu0
  %v3553 = vadd.f32 %v3296, %v3552
  %3554 = vdwg.mxu0
  %3555 = vmatprep.subr.mxu0 %v2566
  %3556 = vmatpush1.xpose.msra.mxu0 %v2565
  %3557 = vmatprep.subr.mxu0 %v2575
  %3558 = vmatpush1.xpose.msra.mxu0 %v2574
  %3559 = vmatprep.subr.mxu0 %v2584
  %3560 = vmatpush1.xpose.msra.mxu0 %v2583
  %3561 = vmatprep.subr.mxu0 %v2593
  %3562 = vmatpush1.xpose.msra.mxu0 %v2592
  %3563 = vmatprep.subr.mxu0 %v2602
  %3564 = vmatpush1.xpose.msra.mxu0 %v2601
  %3565 = vmatprep.subr.mxu0 %v2611
  %3566 = vmatpush1.xpose.msra.mxu0 %v2610
  %3567 = vmatprep.subr.mxu0 %v2620
  %3568 = vmatpush1.xpose.msra.mxu0 %v2619
  %3569 = vmatprep.subr.mxu0 %v2629
  %3570 = vmatpush1.xpose.msra.mxu0 %v2628
  %3571 = vmatprep.subr.mxu0 %v2638
  %3572 = vmatpush1.xpose.msra.mxu0 %v2637
  %3573 = vmatprep.subr.mxu0 %v2647
  %3574 = vmatpush1.xpose.msra.mxu0 %v2646
  %3575 = vmatprep.subr.mxu0 %v2656
  %3576 = vmatpush1.xpose.msra.mxu0 %v2655
  %3577 = vmatprep.subr.mxu0 %v2665
  %3578 = vmatpush1.xpose.msra.mxu0 %v2664
  %3579 = vmatprep.subr.mxu0 %v2674
  %3580 = vmatpush1.xpose.msra.mxu0 %v2673
  %3581 = vmatprep.subr.mxu0 %v2683
  %3582 = vmatpush1.xpose.msra.mxu0 %v2682
  %3583 = vmatprep.subr.mxu0 %v2692
  %3584 = vmatpush1.xpose.msra.mxu0 %v2691
  %3585 = vmatprep.subr.mxu0 %v2701
  %3586 = vmatpush1.xpose.msra.mxu0 %v2700
  %3587 = vmatprep.subr.mxu0 %v2710
  %3588 = vmatpush1.xpose.msra.mxu0 %v2709
  %3589 = vmatprep.subr.mxu0 %v2719
  %3590 = vmatpush1.xpose.msra.mxu0 %v2718
  %3591 = vmatprep.subr.mxu0 %v2728
  %3592 = vmatpush1.xpose.msra.mxu0 %v2727
  %3593 = vmatprep.subr.mxu0 %v2737
  %3594 = vmatpush1.xpose.msra.mxu0 %v2736
  %3595 = vmatprep.subr.mxu0 %v2746
  %3596 = vmatpush1.xpose.msra.mxu0 %v2745
  %3597 = vmatprep.subr.mxu0 %v2755
  %3598 = vmatpush1.xpose.msra.mxu0 %v2754
  %3599 = vmatprep.subr.mxu0 %v2764
  %3600 = vmatpush1.xpose.msra.mxu0 %v2763
  %3601 = vmatprep.subr.mxu0 %v2773
  %3602 = vmatpush1.xpose.msra.mxu0 %v2772
  %3603 = vmatprep.subr.mxu0 %v2782
  %3604 = vmatpush1.xpose.msra.mxu0 %v2781
  %3605 = vmatprep.subr.mxu0 0.0
  %3606 = vmatpush1.xpose.msra.mxu0 0.0
  %3607 = vmatprep.subr.mxu0 0.0
  %3608 = vmatpush1.xpose.msra.mxu0 0.0
  %3609 = vmatprep.subr.mxu0 0.0
  %3610 = vmatpush1.xpose.msra.mxu0 0.0
  %3611 = vmatprep.subr.mxu0 0.0
  %3612 = vmatpush1.xpose.msra.mxu0 0.0
  %3613 = vmatprep.subr.mxu0 0.0
  %3614 = vmatpush1.xpose.msra.mxu0 0.0
  %3615 = vmatprep.subr.mxu0 0.0
  %3616 = vmatpush1.xpose.msra.mxu0 0.0
  %3617 = vmatprep.subr.mxu0 0.0
  %3618 = vmatpush1.xpose.msra.mxu0 0.0
  %3619 = vmatprep.mubr.f32.mxu0 %v2278
  %3620 = vmatmul.mubr.f32.gmra.mrb[0].mxu0 %v2277
  %v3621 = vpop.f32.mrb[0].mxu0
  %v3622 = vadd.f32 %v3365, %v3621
  %v3623 = vpop.f32.mrb[0].mxu0
  %v3624 = vadd.f32 %v3367, %v3623
  %3625 = vmatprep.mubr.f32.mxu0 %v2287
  %3626 = vmatmul.mubr.f32.gmra.mrb[0].mxu0 %v2286
  %v3627 = vpop.f32.mrb[0].mxu0
  %v3628 = vadd.f32 %v3371, %v3627
  %v3629 = vpop.f32.mrb[0].mxu0
  %v3630 = vadd.f32 %v3373, %v3629
  %3631 = vmatprep.mubr.f32.mxu0 %v2296
  %3632 = vmatmul.mubr.f32.gmra.mrb[0].mxu0 %v2295
  %v3633 = vpop.f32.mrb[0].mxu0
  %v3634 = vadd.f32 %v3377, %v3633
  %v3635 = vpop.f32.mrb[0].mxu0
  %v3636 = vadd.f32 %v3379, %v3635
  %3637 = vmatprep.mubr.f32.mxu0 %v2305
  %3638 = vmatmul.mubr.f32.gmra.mrb[0].mxu0 %v2304
  %v3639 = vpop.f32.mrb[0].mxu0
  %v3640 = vadd.f32 %v3383, %v3639
  %v3641 = vpop.f32.mrb[0].mxu0
  %v3642 = vadd.f32 %v3385, %v3641
  %3643 = vmatprep.mubr.f32.mxu0 %v2314
  %3644 = vmatmul.mubr.f32.gmra.mrb[0].mxu0 %v2313
  %v3645 = vpop.f32.mrb[0].mxu0
  %v3646 = vadd.f32 %v3389, %v3645
  %v3647 = vpop.f32.mrb[0].mxu0
  %v3648 = vadd.f32 %v3391, %v3647
  %3649 = vmatprep.mubr.f32.mxu0 %v2323
  %3650 = vmatmul.mubr.f32.gmra.mrb[0].mxu0 %v2322
  %v3651 = vpop.f32.mrb[0].mxu0
  %v3652 = vadd.f32 %v3395, %v3651
  %v3653 = vpop.f32.mrb[0].mxu0
  %v3654 = vadd.f32 %v3397, %v3653
  %3655 = vmatprep.mubr.f32.mxu0 %v2332
  %3656 = vmatmul.mubr.f32.gmra.mrb[0].mxu0 %v2331
  %v3657 = vpop.f32.mrb[0].mxu0
  %v3658 = vadd.f32 %v3401, %v3657
  %v3659 = vpop.f32.mrb[0].mxu0
  %v3660 = vadd.f32 %v3403, %v3659
  %3661 = vmatprep.mubr.f32.mxu0 %v2341
  %3662 = vmatmul.mubr.f32.gmra.mrb[0].mxu0 %v2340
  %v3663 = vpop.f32.mrb[0].mxu0
  %v3664 = vadd.f32 %v3407, %v3663
  %v3665 = vpop.f32.mrb[0].mxu0
  %v3666 = vadd.f32 %v3409, %v3665
  %3667 = vmatprep.mubr.f32.mxu0 %v2350
  %3668 = vmatmul.mubr.f32.gmra.mrb[0].mxu0 %v2349
  %v3669 = vpop.f32.mrb[0].mxu0
  %v3670 = vadd.f32 %v3413, %v3669
  %v3671 = vpop.f32.mrb[0].mxu0
  %v3672 = vadd.f32 %v3415, %v3671
  %3673 = vmatprep.mubr.f32.mxu0 %v2359
  %3674 = vmatmul.mubr.f32.gmra.mrb[0].mxu0 %v2358
  %v3675 = vpop.f32.mrb[0].mxu0
  %v3676 = vadd.f32 %v3419, %v3675
  %v3677 = vpop.f32.mrb[0].mxu0
  %v3678 = vadd.f32 %v3421, %v3677
  %3679 = vmatprep.mubr.f32.mxu0 %v2368
  %3680 = vmatmul.mubr.f32.gmra.mrb[0].mxu0 %v2367
  %v3681 = vpop.f32.mrb[0].mxu0
  %v3682 = vadd.f32 %v3425, %v3681
  %v3683 = vpop.f32.mrb[0].mxu0
  %v3684 = vadd.f32 %v3427, %v3683
  %3685 = vmatprep.mubr.f32.mxu0 %v2377
  %3686 = vmatmul.mubr.f32.gmra.mrb[0].mxu0 %v2376
  %v3687 = vpop.f32.mrb[0].mxu0
  %v3688 = vadd.f32 %v3431, %v3687
  %v3689 = vpop.f32.mrb[0].mxu0
  %v3690 = vadd.f32 %v3433, %v3689
  %3691 = vmatprep.mubr.f32.mxu0 %v2386
  %3692 = vmatmul.mubr.f32.gmra.mrb[0].mxu0 %v2385
  %v3693 = vpop.f32.mrb[0].mxu0
  %v3694 = vadd.f32 %v3437, %v3693
  %v3695 = vpop.f32.mrb[0].mxu0
  %v3696 = vadd.f32 %v3439, %v3695
  %3697 = vmatprep.mubr.f32.mxu0 %v2395
  %3698 = vmatmul.mubr.f32.gmra.mrb[0].mxu0 %v2394
  %v3699 = vpop.f32.mrb[0].mxu0
  %v3700 = vadd.f32 %v3443, %v3699
  %v3701 = vpop.f32.mrb[0].mxu0
  %v3702 = vadd.f32 %v3445, %v3701
  %3703 = vmatprep.mubr.f32.mxu0 %v2404
  %3704 = vmatmul.mubr.f32.gmra.mrb[0].mxu0 %v2403
  %v3705 = vpop.f32.mrb[0].mxu0
  %v3706 = vadd.f32 %v3449, %v3705
  %v3707 = vpop.f32.mrb[0].mxu0
  %v3708 = vadd.f32 %v3451, %v3707
  %3709 = vmatprep.mubr.f32.mxu0 %v2413
  %3710 = vmatmul.mubr.f32.gmra.mrb[0].mxu0 %v2412
  %v3711 = vpop.f32.mrb[0].mxu0
  %v3712 = vadd.f32 %v3455, %v3711
  %v3713 = vpop.f32.mrb[0].mxu0
  %v3714 = vadd.f32 %v3457, %v3713
  %3715 = vmatprep.mubr.f32.mxu0 %v2422
  %3716 = vmatmul.mubr.f32.gmra.mrb[0].mxu0 %v2421
  %v3717 = vpop.f32.mrb[0].mxu0
  %v3718 = vadd.f32 %v3461, %v3717
  %v3719 = vpop.f32.mrb[0].mxu0
  %v3720 = vadd.f32 %v3463, %v3719
  %3721 = vmatprep.mubr.f32.mxu0 %v2431
  %3722 = vmatmul.mubr.f32.gmra.mrb[0].mxu0 %v2430
  %v3723 = vpop.f32.mrb[0].mxu0
  %v3724 = vadd.f32 %v3467, %v3723
  %v3725 = vpop.f32.mrb[0].mxu0
  %v3726 = vadd.f32 %v3469, %v3725
  %3727 = vmatprep.mubr.f32.mxu0 %v2440
  %3728 = vmatmul.mubr.f32.gmra.mrb[0].mxu0 %v2439
  %v3729 = vpop.f32.mrb[0].mxu0
  %v3730 = vadd.f32 %v3473, %v3729
  %v3731 = vpop.f32.mrb[0].mxu0
  %v3732 = vadd.f32 %v3475, %v3731
  %3733 = vmatprep.mubr.f32.mxu0 %v2449
  %3734 = vmatmul.mubr.f32.gmra.mrb[0].mxu0 %v2448
  %v3735 = vpop.f32.mrb[0].mxu0
  %v3736 = vadd.f32 %v3479, %v3735
  %v3737 = vpop.f32.mrb[0].mxu0
  %v3738 = vadd.f32 %v3481, %v3737
  %3739 = vmatprep.mubr.f32.mxu0 %v2458
  %3740 = vmatmul.mubr.f32.gmra.mrb[0].mxu0 %v2457
  %v3741 = vpop.f32.mrb[0].mxu0
  %v3742 = vadd.f32 %v3485, %v3741
  %v3743 = vpop.f32.mrb[0].mxu0
  %v3744 = vadd.f32 %v3487, %v3743
  %3745 = vmatprep.mubr.f32.mxu0 %v2467
  %3746 = vmatmul.mubr.f32.gmra.mrb[0].mxu0 %v2466
  %v3747 = vpop.f32.mrb[0].mxu0
  %v3748 = vadd.f32 %v3491, %v3747
  %v3749 = vpop.f32.mrb[0].mxu0
  %v3750 = vadd.f32 %v3493, %v3749
  %3751 = vmatprep.mubr.f32.mxu0 %v2476
  %3752 = vmatmul.mubr.f32.gmra.mrb[0].mxu0 %v2475
  %v3753 = vpop.f32.mrb[0].mxu0
  %v3754 = vadd.f32 %v3497, %v3753
  %v3755 = vpop.f32.mrb[0].mxu0
  %v3756 = vadd.f32 %v3499, %v3755
  %3757 = vmatprep.mubr.f32.mxu0 %v2485
  %3758 = vmatmul.mubr.f32.gmra.mrb[0].mxu0 %v2484
  %v3759 = vpop.f32.mrb[0].mxu0
  %v3760 = vadd.f32 %v3503, %v3759
  %v3761 = vpop.f32.mrb[0].mxu0
  %v3762 = vadd.f32 %v3505, %v3761
  %3763 = vmatprep.mubr.f32.mxu0 %v2494
  %3764 = vmatmul.mubr.f32.gmra.mrb[0].mxu0 %v2493
  %v3765 = vpop.f32.mrb[0].mxu0
  %v3766 = vadd.f32 %v3509, %v3765
  %v3767 = vpop.f32.mrb[0].mxu0
  %v3768 = vadd.f32 %v3511, %v3767
  %3769 = vmatprep.mubr.f32.mxu0 %v2503
  %3770 = vmatmul.mubr.f32.gmra.mrb[0].mxu0 %v2502
  %v3771 = vpop.f32.mrb[0].mxu0
  %v3772 = vadd.f32 %v3515, %v3771
  %v3773 = vpop.f32.mrb[0].mxu0
  %v3774 = vadd.f32 %v3517, %v3773
  %3775 = vmatprep.mubr.f32.mxu0 %v2512
  %3776 = vmatmul.mubr.f32.gmra.mrb[0].mxu0 %v2511
  %v3777 = vpop.f32.mrb[0].mxu0
  %v3778 = vadd.f32 %v3521, %v3777
  %v3779 = vpop.f32.mrb[0].mxu0
  %v3780 = vadd.f32 %v3523, %v3779
  %3781 = vmatprep.mubr.f32.mxu0 %v2521
  %3782 = vmatmul.mubr.f32.gmra.mrb[0].mxu0 %v2520
  %v3783 = vpop.f32.mrb[0].mxu0
  %v3784 = vadd.f32 %v3527, %v3783
  %v3785 = vpop.f32.mrb[0].mxu0
  %v3786 = vadd.f32 %v3529, %v3785
  %3787 = vmatprep.mubr.f32.mxu0 %v2530
  %3788 = vmatmul.mubr.f32.gmra.mrb[0].mxu0 %v2529
  %v3789 = vpop.f32.mrb[0].mxu0
  %v3790 = vadd.f32 %v3533, %v3789
  %v3791 = vpop.f32.mrb[0].mxu0
  %v3792 = vadd.f32 %v3535, %v3791
  %3793 = vmatprep.mubr.f32.mxu0 %v2539
  %3794 = vmatmul.mubr.f32.gmra.mrb[0].mxu0 %v2538
  %v3795 = vpop.f32.mrb[0].mxu0
  %v3796 = vadd.f32 %v3539, %v3795
  %v3797 = vpop.f32.mrb[0].mxu0
  %v3798 = vadd.f32 %v3541, %v3797
  %3799 = vmatprep.mubr.f32.mxu0 %v2548
  %3800 = vmatmul.mubr.f32.gmra.mrb[0].mxu0 %v2547
  %v3801 = vpop.f32.mrb[0].mxu0
  %v3802 = vadd.f32 %v3545, %v3801
  %v3803 = vpop.f32.mrb[0].mxu0
  %v3804 = vadd.f32 %v3547, %v3803
  %3805 = vmatprep.mubr.f32.mxu0 %v2557
  %3806 = vmatmul.mubr.f32.gmra.mrb[0].mxu0 %v2556
  %v3807 = vpop.f32.mrb[0].mxu0
  %v3808 = vadd.f32 %v3551, %v3807
  %v3809 = vpop.f32.mrb[0].mxu0
  %v3810 = vadd.f32 %v3553, %v3809
  %3811 = vdwg.mxu0
  %3812 = vmatprep.subr.mxu0 0.0
  %3813 = vmatpush1.xpose.msra.mxu0 %v2567
  %3814 = vmatprep.subr.mxu0 0.0
  %3815 = vmatpush1.xpose.msra.mxu0 %v2576
  %3816 = vmatprep.subr.mxu0 0.0
  %3817 = vmatpush1.xpose.msra.mxu0 %v2585
  %3818 = vmatprep.subr.mxu0 0.0
  %3819 = vmatpush1.xpose.msra.mxu0 %v2594
  %3820 = vmatprep.subr.mxu0 0.0
  %3821 = vmatpush1.xpose.msra.mxu0 %v2603
  %3822 = vmatprep.subr.mxu0 0.0
  %3823 = vmatpush1.xpose.msra.mxu0 %v2612
  %3824 = vmatprep.subr.mxu0 0.0
  %3825 = vmatpush1.xpose.msra.mxu0 %v2621
  %3826 = vmatprep.subr.mxu0 0.0
  %3827 = vmatpush1.xpose.msra.mxu0 %v2630
  %3828 = vmatprep.subr.mxu0 0.0
  %3829 = vmatpush1.xpose.msra.mxu0 %v2639
  %3830 = vmatprep.subr.mxu0 0.0
  %3831 = vmatpush1.xpose.msra.mxu0 %v2648
  %3832 = vmatprep.subr.mxu0 0.0
  %3833 = vmatpush1.xpose.msra.mxu0 %v2657
  %3834 = vmatprep.subr.mxu0 0.0
  %3835 = vmatpush1.xpose.msra.mxu0 %v2666
  %3836 = vmatprep.subr.mxu0 0.0
  %3837 = vmatpush1.xpose.msra.mxu0 %v2675
  %3838 = vmatprep.subr.mxu0 0.0
  %3839 = vmatpush1.xpose.msra.mxu0 %v2684
  %3840 = vmatprep.subr.mxu0 0.0
  %3841 = vmatpush1.xpose.msra.mxu0 %v2693
  %3842 = vmatprep.subr.mxu0 0.0
  %3843 = vmatpush1.xpose.msra.mxu0 %v2702
  %3844 = vmatprep.subr.mxu0 0.0
  %3845 = vmatpush1.xpose.msra.mxu0 %v2711
  %3846 = vmatprep.subr.mxu0 0.0
  %3847 = vmatpush1.xpose.msra.mxu0 %v2720
  %3848 = vmatprep.subr.mxu0 0.0
  %3849 = vmatpush1.xpose.msra.mxu0 %v2729
  %3850 = vmatprep.subr.mxu0 0.0
  %3851 = vmatpush1.xpose.msra.mxu0 %v2738
  %3852 = vmatprep.subr.mxu0 0.0
  %3853 = vmatpush1.xpose.msra.mxu0 %v2747
  %3854 = vmatprep.subr.mxu0 0.0
  %3855 = vmatpush1.xpose.msra.mxu0 %v2756
  %3856 = vmatprep.subr.mxu0 0.0
  %3857 = vmatpush1.xpose.msra.mxu0 %v2765
  %3858 = vmatprep.subr.mxu0 0.0
  %3859 = vmatpush1.xpose.msra.mxu0 %v2774
  %3860 = vmatprep.subr.mxu0 0.0
  %3861 = vmatpush1.xpose.msra.mxu0 %v2783
  %3862 = vmatprep.subr.mxu0 0.0
  %3863 = vmatpush1.xpose.msra.mxu0 0.0
  %3864 = vmatprep.subr.mxu0 0.0
  %3865 = vmatpush1.xpose.msra.mxu0 0.0
  %3866 = vmatprep.subr.mxu0 0.0
  %3867 = vmatpush1.xpose.msra.mxu0 0.0
  %3868 = vmatprep.subr.mxu0 0.0
  %3869 = vmatpush1.xpose.msra.mxu0 0.0
  %3870 = vmatprep.subr.mxu0 0.0
  %3871 = vmatpush1.xpose.msra.mxu0 0.0
  %3872 = vmatprep.subr.mxu0 0.0
  %3873 = vmatpush1.xpose.msra.mxu0 0.0
  %3874 = vmatprep.subr.mxu0 0.0
  %3875 = vmatpush1.xpose.msra.mxu0 0.0
  %3876 = vmatprep.mubr.f32.mxu0 0.0
  %3877 = vmatmul.mubr.f32.gmra.mrb[0].mxu0 %v2279
  %v3878 = vpop.f32.mrb[0].mxu0
  %v3879 = vadd.f32 %v3622, %v3878
  %v3880 = vpop.f32.mrb[0].mxu0
  %v3881 = vadd.f32 %v3624, %v3880
  %3882 = vmatprep.mubr.f32.mxu0 0.0
  %3883 = vmatmul.mubr.f32.gmra.mrb[0].mxu0 %v2288
  %v3884 = vpop.f32.mrb[0].mxu0
  %v3885 = vadd.f32 %v3628, %v3884
  %v3886 = vpop.f32.mrb[0].mxu0
  %v3887 = vadd.f32 %v3630, %v3886
  %3888 = vmatprep.mubr.f32.mxu0 0.0
  %3889 = vmatmul.mubr.f32.gmra.mrb[0].mxu0 %v2297
  %v3890 = vpop.f32.mrb[0].mxu0
  %v3891 = vadd.f32 %v3634, %v3890
  %v3892 = vpop.f32.mrb[0].mxu0
  %v3893 = vadd.f32 %v3636, %v3892
  %3894 = vmatprep.mubr.f32.mxu0 0.0
  %3895 = vmatmul.mubr.f32.gmra.mrb[0].mxu0 %v2306
  %v3896 = vpop.f32.mrb[0].mxu0
  %v3897 = vadd.f32 %v3640, %v3896
  %v3898 = vpop.f32.mrb[0].mxu0
  %v3899 = vadd.f32 %v3642, %v3898
  %3900 = vmatprep.mubr.f32.mxu0 0.0
  %3901 = vmatmul.mubr.f32.gmra.mrb[0].mxu0 %v2315
  %v3902 = vpop.f32.mrb[0].mxu0
  %v3903 = vadd.f32 %v3646, %v3902
  %v3904 = vpop.f32.mrb[0].mxu0
  %v3905 = vadd.f32 %v3648, %v3904
  %3906 = vmatprep.mubr.f32.mxu0 0.0
  %3907 = vmatmul.mubr.f32.gmra.mrb[0].mxu0 %v2324
  %v3908 = vpop.f32.mrb[0].mxu0
  %v3909 = vadd.f32 %v3652, %v3908
  %v3910 = vpop.f32.mrb[0].mxu0
  %v3911 = vadd.f32 %v3654, %v3910
  %3912 = vmatprep.mubr.f32.mxu0 0.0
  %3913 = vmatmul.mubr.f32.gmra.mrb[0].mxu0 %v2333
  %v3914 = vpop.f32.mrb[0].mxu0
  %v3915 = vadd.f32 %v3658, %v3914
  %v3916 = vpop.f32.mrb[0].mxu0
  %v3917 = vadd.f32 %v3660, %v3916
  %3918 = vmatprep.mubr.f32.mxu0 0.0
  %3919 = vmatmul.mubr.f32.gmra.mrb[0].mxu0 %v2342
  %v3920 = vpop.f32.mrb[0].mxu0
  %v3921 = vadd.f32 %v3664, %v3920
  %v3922 = vpop.f32.mrb[0].mxu0
  %v3923 = vadd.f32 %v3666, %v3922
  %3924 = vmatprep.mubr.f32.mxu0 0.0
  %3925 = vmatmul.mubr.f32.gmra.mrb[0].mxu0 %v2351
  %v3926 = vpop.f32.mrb[0].mxu0
  %v3927 = vadd.f32 %v3670, %v3926
  %v3928 = vpop.f32.mrb[0].mxu0
  %v3929 = vadd.f32 %v3672, %v3928
  %3930 = vmatprep.mubr.f32.mxu0 0.0
  %3931 = vmatmul.mubr.f32.gmra.mrb[0].mxu0 %v2360
  %v3932 = vpop.f32.mrb[0].mxu0
  %v3933 = vadd.f32 %v3676, %v3932
  %v3934 = vpop.f32.mrb[0].mxu0
  %v3935 = vadd.f32 %v3678, %v3934
  %3936 = vmatprep.mubr.f32.mxu0 0.0
  %3937 = vmatmul.mubr.f32.gmra.mrb[0].mxu0 %v2369
  %v3938 = vpop.f32.mrb[0].mxu0
  %v3939 = vadd.f32 %v3682, %v3938
  %v3940 = vpop.f32.mrb[0].mxu0
  %v3941 = vadd.f32 %v3684, %v3940
  %3942 = vmatprep.mubr.f32.mxu0 0.0
  %3943 = vmatmul.mubr.f32.gmra.mrb[0].mxu0 %v2378
  %v3944 = vpop.f32.mrb[0].mxu0
  %v3945 = vadd.f32 %v3688, %v3944
  %v3946 = vpop.f32.mrb[0].mxu0
  %v3947 = vadd.f32 %v3690, %v3946
  %3948 = vmatprep.mubr.f32.mxu0 0.0
  %3949 = vmatmul.mubr.f32.gmra.mrb[0].mxu0 %v2387
  %v3950 = vpop.f32.mrb[0].mxu0
  %v3951 = vadd.f32 %v3694, %v3950
  %v3952 = vpop.f32.mrb[0].mxu0
  %v3953 = vadd.f32 %v3696, %v3952
  %3954 = vmatprep.mubr.f32.mxu0 0.0
  %3955 = vmatmul.mubr.f32.gmra.mrb[0].mxu0 %v2396
  %v3956 = vpop.f32.mrb[0].mxu0
  %v3957 = vadd.f32 %v3700, %v3956
  %v3958 = vpop.f32.mrb[0].mxu0
  %v3959 = vadd.f32 %v3702, %v3958
  %3960 = vmatprep.mubr.f32.mxu0 0.0
  %3961 = vmatmul.mubr.f32.gmra.mrb[0].mxu0 %v2405
  %v3962 = vpop.f32.mrb[0].mxu0
  %v3963 = vadd.f32 %v3706, %v3962
  %v3964 = vpop.f32.mrb[0].mxu0
  %v3965 = vadd.f32 %v3708, %v3964
  %3966 = vmatprep.mubr.f32.mxu0 0.0
  %3967 = vmatmul.mubr.f32.gmra.mrb[0].mxu0 %v2414
  %v3968 = vpop.f32.mrb[0].mxu0
  %v3969 = vadd.f32 %v3712, %v3968
  %v3970 = vpop.f32.mrb[0].mxu0
  %v3971 = vadd.f32 %v3714, %v3970
  %3972 = vmatprep.mubr.f32.mxu0 0.0
  %3973 = vmatmul.mubr.f32.gmra.mrb[0].mxu0 %v2423
  %v3974 = vpop.f32.mrb[0].mxu0
  %v3975 = vadd.f32 %v3718, %v3974
  %v3976 = vpop.f32.mrb[0].mxu0
  %v3977 = vadd.f32 %v3720, %v3976
  %3978 = vmatprep.mubr.f32.mxu0 0.0
  %3979 = vmatmul.mubr.f32.gmra.mrb[0].mxu0 %v2432
  %v3980 = vpop.f32.mrb[0].mxu0
  %v3981 = vadd.f32 %v3724, %v3980
  %v3982 = vpop.f32.mrb[0].mxu0
  %v3983 = vadd.f32 %v3726, %v3982
  %3984 = vmatprep.mubr.f32.mxu0 0.0
  %3985 = vmatmul.mubr.f32.gmra.mrb[0].mxu0 %v2441
  %v3986 = vpop.f32.mrb[0].mxu0
  %v3987 = vadd.f32 %v3730, %v3986
  %v3988 = vpop.f32.mrb[0].mxu0
  %v3989 = vadd.f32 %v3732, %v3988
  %3990 = vmatprep.mubr.f32.mxu0 0.0
  %3991 = vmatmul.mubr.f32.gmra.mrb[0].mxu0 %v2450
  %v3992 = vpop.f32.mrb[0].mxu0
  %v3993 = vadd.f32 %v3736, %v3992
  %v3994 = vpop.f32.mrb[0].mxu0
  %v3995 = vadd.f32 %v3738, %v3994
  %3996 = vmatprep.mubr.f32.mxu0 0.0
  %3997 = vmatmul.mubr.f32.gmra.mrb[0].mxu0 %v2459
  %v3998 = vpop.f32.mrb[0].mxu0
  %v3999 = vadd.f32 %v3742, %v3998
  %v4000 = vpop.f32.mrb[0].mxu0
  %v4001 = vadd.f32 %v3744, %v4000
  %4002 = vmatprep.mubr.f32.mxu0 0.0
  %4003 = vmatmul.mubr.f32.gmra.mrb[0].mxu0 %v2468
  %v4004 = vpop.f32.mrb[0].mxu0
  %v4005 = vadd.f32 %v3748, %v4004
  %v4006 = vpop.f32.mrb[0].mxu0
  %v4007 = vadd.f32 %v3750, %v4006
  %4008 = vmatprep.mubr.f32.mxu0 0.0
  %4009 = vmatmul.mubr.f32.gmra.mrb[0].mxu0 %v2477
  %v4010 = vpop.f32.mrb[0].mxu0
  %v4011 = vadd.f32 %v3754, %v4010
  %v4012 = vpop.f32.mrb[0].mxu0
  %v4013 = vadd.f32 %v3756, %v4012
  %4014 = vmatprep.mubr.f32.mxu0 0.0
  %4015 = vmatmul.mubr.f32.gmra.mrb[0].mxu0 %v2486
  %v4016 = vpop.f32.mrb[0].mxu0
  %v4017 = vadd.f32 %v3760, %v4016
  %v4018 = vpop.f32.mrb[0].mxu0
  %v4019 = vadd.f32 %v3762, %v4018
  %4020 = vmatprep.mubr.f32.mxu0 0.0
  %4021 = vmatmul.mubr.f32.gmra.mrb[0].mxu0 %v2495
  %v4022 = vpop.f32.mrb[0].mxu0
  %v4023 = vadd.f32 %v3766, %v4022
  %v4024 = vpop.f32.mrb[0].mxu0
  %v4025 = vadd.f32 %v3768, %v4024
  %4026 = vmatprep.mubr.f32.mxu0 0.0
  %4027 = vmatmul.mubr.f32.gmra.mrb[0].mxu0 %v2504
  %v4028 = vpop.f32.mrb[0].mxu0
  %v4029 = vadd.f32 %v3772, %v4028
  %v4030 = vpop.f32.mrb[0].mxu0
  %v4031 = vadd.f32 %v3774, %v4030
  %4032 = vmatprep.mubr.f32.mxu0 0.0
  %4033 = vmatmul.mubr.f32.gmra.mrb[0].mxu0 %v2513
  %v4034 = vpop.f32.mrb[0].mxu0
  %v4035 = vadd.f32 %v3778, %v4034
  %v4036 = vpop.f32.mrb[0].mxu0
  %v4037 = vadd.f32 %v3780, %v4036
  %4038 = vmatprep.mubr.f32.mxu0 0.0
  %4039 = vmatmul.mubr.f32.gmra.mrb[0].mxu0 %v2522
  %v4040 = vpop.f32.mrb[0].mxu0
  %v4041 = vadd.f32 %v3784, %v4040
  %v4042 = vpop.f32.mrb[0].mxu0
  %v4043 = vadd.f32 %v3786, %v4042
  %4044 = vmatprep.mubr.f32.mxu0 0.0
  %4045 = vmatmul.mubr.f32.gmra.mrb[0].mxu0 %v2531
  %v4046 = vpop.f32.mrb[0].mxu0
  %v4047 = vadd.f32 %v3790, %v4046
  %v4048 = vpop.f32.mrb[0].mxu0
  %v4049 = vadd.f32 %v3792, %v4048
  %4050 = vmatprep.mubr.f32.mxu0 0.0
  %4051 = vmatmul.mubr.f32.gmra.mrb[0].mxu0 %v2540
  %v4052 = vpop.f32.mrb[0].mxu0
  %v4053 = vadd.f32 %v3796, %v4052
  %v4054 = vpop.f32.mrb[0].mxu0
  %v4055 = vadd.f32 %v3798, %v4054
  %4056 = vmatprep.mubr.f32.mxu0 0.0
  %4057 = vmatmul.mubr.f32.gmra.mrb[0].mxu0 %v2549
  %v4058 = vpop.f32.mrb[0].mxu0
  %v4059 = vadd.f32 %v3802, %v4058
  %v4060 = vpop.f32.mrb[0].mxu0
  %v4061 = vadd.f32 %v3804, %v4060
  %4062 = vmatprep.mubr.f32.mxu0 0.0
  %4063 = vmatmul.mubr.f32.gmra.mrb[0].mxu0 %v2558
  %v4064 = vpop.f32.mrb[0].mxu0
  %v4065 = vadd.f32 %v3808, %v4064
  %v4066 = vpop.f32.mrb[0].mxu0
  %v4067 = vadd.f32 %v3810, %v4066
  %4068 = vdwg.mxu0
  %4069 = vst [vmem:[%s3] sm:$0xff] %v3879
  %vm4070 = vcmask 556032
  %4071 = vst.msk [vmem:[%s3 + $0x8] sm:$0xff] %vm4070, %v3881
  %4072 = vst [vmem:[%s3 + $0x10] sm:$0xff] %v3885
  %4073 = vst.msk [vmem:[%s3 + $0x18] sm:$0xff] %vm4070, %v3887
  %4074 = vst [vmem:[%s3 + $0x20] sm:$0xff] %v3891
  %4075 = vst.msk [vmem:[%s3 + $0x28] sm:$0xff] %vm4070, %v3893
  %4076 = vst [vmem:[%s3 + $0x30] sm:$0xff] %v3897
  %4077 = vst.msk [vmem:[%s3 + $0x38] sm:$0xff] %vm4070, %v3899
  %4078 = vst [vmem:[%s3 + $0x40] sm:$0xff] %v3903
  %4079 = vst.msk [vmem:[%s3 + $0x48] sm:$0xff] %vm4070, %v3905
  %4080 = vst [vmem:[%s3 + $0x50] sm:$0xff] %v3909
  %4081 = vst.msk [vmem:[%s3 + $0x58] sm:$0xff] %vm4070, %v3911
  %4082 = vst [vmem:[%s3 + $0x60] sm:$0xff] %v3915
  %4083 = vst.msk [vmem:[%s3 + $0x68] sm:$0xff] %vm4070, %v3917
  %4084 = vst [vmem:[%s3 + $0x70] sm:$0xff] %v3921
  %4085 = vst.msk [vmem:[%s3 + $0x78] sm:$0xff] %vm4070, %v3923
  %4086 = vst [vmem:[%s3 + $0x80] sm:$0xff] %v3927
  %4087 = vst.msk [vmem:[%s3 + $0x88] sm:$0xff] %vm4070, %v3929
  %4088 = vst [vmem:[%s3 + $0x90] sm:$0xff] %v3933
  %4089 = vst.msk [vmem:[%s3 + $0x98] sm:$0xff] %vm4070, %v3935
  %4090 = vst [vmem:[%s3 + $0xa0] sm:$0xff] %v3939
  %4091 = vst.msk [vmem:[%s3 + $0xa8] sm:$0xff] %vm4070, %v3941
  %4092 = vst [vmem:[%s3 + $0xb0] sm:$0xff] %v3945
  %4093 = vst.msk [vmem:[%s3 + $0xb8] sm:$0xff] %vm4070, %v3947
  %4094 = vst [vmem:[%s3 + $0xc0] sm:$0xff] %v3951
  %4095 = vst.msk [vmem:[%s3 + $0xc8] sm:$0xff] %vm4070, %v3953
  %4096 = vst [vmem:[%s3 + $0xd0] sm:$0xff] %v3957
  %4097 = vst.msk [vmem:[%s3 + $0xd8] sm:$0xff] %vm4070, %v3959
  %4098 = vst [vmem:[%s3 + $0xe0] sm:$0xff] %v3963
  %4099 = vst.msk [vmem:[%s3 + $0xe8] sm:$0xff] %vm4070, %v3965
  %4100 = vst [vmem:[%s3 + $0xf0] sm:$0xff] %v3969
  %4101 = vst.msk [vmem:[%s3 + $0xf8] sm:$0xff] %vm4070, %v3971
  %4102 = vst [vmem:[%s3 + $0x100] sm:$0xff] %v3975
  %4103 = vst.msk [vmem:[%s3 + $0x108] sm:$0xff] %vm4070, %v3977
  %4104 = vst [vmem:[%s3 + $0x110] sm:$0xff] %v3981
  %4105 = vst.msk [vmem:[%s3 + $0x118] sm:$0xff] %vm4070, %v3983
  %4106 = vst [vmem:[%s3 + $0x120] sm:$0xff] %v3987
  %4107 = vst.msk [vmem:[%s3 + $0x128] sm:$0xff] %vm4070, %v3989
  %4108 = vst [vmem:[%s3 + $0x130] sm:$0xff] %v3993
  %4109 = vst.msk [vmem:[%s3 + $0x138] sm:$0xff] %vm4070, %v3995
  %4110 = vst [vmem:[%s3 + $0x140] sm:$0xff] %v3999
  %4111 = vst.msk [vmem:[%s3 + $0x148] sm:$0xff] %vm4070, %v4001
  %4112 = vst [vmem:[%s3 + $0x150] sm:$0xff] %v4005
  %4113 = vst.msk [vmem:[%s3 + $0x158] sm:$0xff] %vm4070, %v4007
  %4114 = vst [vmem:[%s3 + $0x160] sm:$0xff] %v4011
  %4115 = vst.msk [vmem:[%s3 + $0x168] sm:$0xff] %vm4070, %v4013
  %4116 = vst [vmem:[%s3 + $0x170] sm:$0xff] %v4017
  %4117 = vst.msk [vmem:[%s3 + $0x178] sm:$0xff] %vm4070, %v4019
  %4118 = vst [vmem:[%s3 + $0x180] sm:$0xff] %v4023
  %4119 = vst.msk [vmem:[%s3 + $0x188] sm:$0xff] %vm4070, %v4025
  %4120 = vst [vmem:[%s3 + $0x190] sm:$0xff] %v4029
  %4121 = vst.msk [vmem:[%s3 + $0x198] sm:$0xff] %vm4070, %v4031
  %4122 = vst [vmem:[%s3 + $0x1a0] sm:$0xff] %v4035
  %4123 = vst.msk [vmem:[%s3 + $0x1a8] sm:$0xff] %vm4070, %v4037
  %4124 = vst [vmem:[%s3 + $0x1b0] sm:$0xff] %v4041
  %4125 = vst.msk [vmem:[%s3 + $0x1b8] sm:$0xff] %vm4070, %v4043
  %4126 = vst [vmem:[%s3 + $0x1c0] sm:$0xff] %v4047
  %4127 = vst.msk [vmem:[%s3 + $0x1c8] sm:$0xff] %vm4070, %v4049
  %4128 = vst [vmem:[%s3 + $0x1d0] sm:$0xff] %v4053
  %4129 = vst.msk [vmem:[%s3 + $0x1d8] sm:$0xff] %vm4070, %v4055
  %4130 = vst [vmem:[%s3 + $0x1e0] sm:$0xff] %v4059
  %4131 = vst.msk [vmem:[%s3 + $0x1e8] sm:$0xff] %vm4070, %v4061
  %4132 = vst [vmem:[%s3 + $0x1f0] sm:$0xff] %v4065
  %4133 = vst.msk [vmem:[%s3 + $0x1f8] sm:$0xff] %vm4070, %v4067
  // Predicated region
  $region14: #{kernel_generated_3_forward.1} parent=0 // pred_check
    _
  $region15: #{kernel_generated_3_forward.1} parent=0 // pred_check_branch
    %4135 = sbr.rel (0) target = $region17
  $region16: #{kernel_generated_3_forward.1} parent=0 // pred_region
    _
  $region17: #{kernel_generated_3_forward.1} parent=0 // pred_fallthru
    _
  // Predicated region
  $region18: #{kernel_generated_3_forward.1} parent=0 // pred_check
    _
  $region19: #{kernel_generated_3_forward.1} parent=0 // pred_check_branch
    %4137 = sbr.rel (0) target = $region21
  $region20: #{kernel_generated_3_forward.1} parent=0 // pred_region
    _
  $region21: #{kernel_generated_3_forward.1} parent=0 // pred_fallthru
    _

</llo_original>
